<compile_context>
chip_gen: v5e
topology: v5e:2x2
jax: 0.10.0
libtpu: 0.0.40
codegen_flags: <defaults>
</compile_context>

<pallas_src>
import functools

import jax
import jax.numpy as jnp
from jax.experimental import pallas as pl
from jax.experimental.pallas import tpu as pltpu

DIM_CMD = 2
DIM_IMU = 600
DIM_IN = DIM_CMD + DIM_IMU          # 602
DIM_H_IMU = 256
DIM_O_IMU = 2
DIM_H = 32

# MACs per batch row (first matmul uses the zero-padded 602-row W1).
_MACS_PER_ROW = (DIM_IN * DIM_H_IMU + DIM_H_IMU * DIM_H_IMU
                 + DIM_H_IMU * DIM_O_IMU + (DIM_CMD + DIM_O_IMU) * DIM_H
                 + DIM_H * DIM_H + DIM_H * 1)
_WEIGHT_ELEMS = (DIM_IN * DIM_H_IMU + DIM_H_IMU * DIM_H_IMU + DIM_H_IMU * DIM_O_IMU
                 + (DIM_CMD + DIM_O_IMU) * DIM_H + DIM_H * DIM_H + DIM_H)
_BIAS_ELEMS = DIM_H_IMU + DIM_H_IMU + DIM_O_IMU + DIM_H + DIM_H + 1


def _control_kernel(x_ref,
                    w1_ref, b1_ref, w2_ref, b2_ref, w3_ref, b3_ref,
                    wb1c_ref, wb1i_ref, bb1_ref, wb2_ref, bb2_ref,
                    wc_ref, bc_ref,
                    out_ref):
    f32, bf16 = jnp.float32, jnp.bfloat16

    # x arrives untouched (f32) straight from HBM; the bf16 downcast happens
    # here on slack VPU slots instead of as a separate XLA pass over HBM.
    x = x_ref[...].astype(bf16)                     # [TB, 602]
    cmd = x[:, :DIM_CMD]                            # [TB, 2] lane-aligned slice

    # --- imu MLP 600 -> 256 -> 256 -> 2, ReLU after each layer -------------
    # w1 was zero-padded with two leading rows, so the full 602-wide row can
    # be fed to the MXU directly (the cmd columns multiply zeros).
    h = jnp.dot(x, w1_ref[...], preferred_element_type=f32) + b1_ref[...]
    h = jnp.maximum(h, 0.0).astype(bf16)
    h = jnp.dot(h, w2_ref[...], preferred_element_type=f32) + b2_ref[...]
    h = jnp.maximum(h, 0.0).astype(bf16)
    imu_out = jnp.dot(h, w3_ref[...], preferred_element_type=f32) + b3_ref[...]
    imu_out = jnp.maximum(imu_out, 0.0).astype(bf16)            # [TB, 2]

    # --- base MLP on concat([cmd, imu_out]) : (2+2) -> 32 -> 32 ------------
    # concat avoided by splitting the first base weight into its row blocks:
    # concat([a, b]) @ W == a @ W[:2] + b @ W[2:].
    hid = (jnp.dot(cmd, wb1c_ref[...], preferred_element_type=f32)
           + jnp.dot(imu_out, wb1i_ref[...], preferred_element_type=f32)
           + bb1_ref[...])
    hid = jnp.maximum(hid, 0.0).astype(bf16)
    hid = jnp.dot(hid, wb2_ref[...], preferred_element_type=f32) + bb2_ref[...]
    hid = jnp.maximum(hid, 0.0).astype(bf16)                    # [TB, 32]

    # --- curvature head + tanh (f32 EUP) ------------------------------------
    c = jnp.dot(hid, wc_ref[...], preferred_element_type=f32) + bc_ref[...]
    out_ref[...] = jnp.tanh(c)                                  # [TB, 1]
    # TODO(synk): the review's lane-dense [1, TB] output would replace the
    # masked (TB,1) stores / strided writeback DMA, but producing it needs an
    # in-kernel sublane->lane transpose (~TB/8 serial XLU ops with nothing
    # left to overlap) or transposed-operand dot_generals.  At 4 output bytes
    # vs 2408 input bytes per row the kernel is input-DMA/MXU bound and the
    # narrow tail rides on slack vst/EUP slots, so the (TB,1) layout is kept.


def _round_up(n, m):
    return ((n + m - 1) // m) * m


@functools.partial(jax.jit, static_argnames=("tile_b",))
def control_forward(x, params, *, tile_b=2048):
    """Control forward pass. x: [B, 602] f32 -> [B, 1] f32."""
    B = x.shape[0]
    (w1, b1, w2, b2, w3, b3, wb1, bb1, wb2, bb2, wc, bc) = params
    bf16, f32 = jnp.bfloat16, jnp.float32

    # Batch tile: large (amortizes the ~0.35 us per-grid-step overhead), a
    # multiple of 256 (MXU M tile / bf16 sublane packing), and capped at
    # round_up(ceil(B/2), 256) so a v7x chip always gets >= 2 grid tiles to
    # split over its two TensorCores.
    half_b = _round_up(max(1, -(-B // 2)), 256)
    tile_b = max(256, min(_round_up(tile_b, 256), half_b))
    num_tiles = pl.cdiv(B, tile_b)            # ragged last block handled by Pallas

    # Weights in bf16 (native MXU rate, half the resident-weight VMEM/DMA),
    # biases as f32 rows.  w1 gets two leading zero rows so the first matmul
    # consumes x un-split: concat([cmd, imu]) @ [[0]; [w1]] == imu @ w1.
    w1x = jnp.concatenate([jnp.zeros((DIM_CMD, DIM_H_IMU), w1.dtype), w1], axis=0)
    weight_args = (
        w1x.astype(bf16), b1.reshape(1, -1).astype(f32),
        w2.astype(bf16), b2.reshape(1, -1).astype(f32),
        w3.astype(bf16), b3.reshape(1, -1).astype(f32),
        wb1[:DIM_CMD].astype(bf16),           # [2, 32]  cmd rows
        wb1[DIM_CMD:].astype(bf16),           # [2, 32]  imu_out rows
        bb1.reshape(1, -1).astype(f32),
        wb2.astype(bf16), bb2.reshape(1, -1).astype(f32),
        wc.astype(bf16), bc.reshape(1, -1).astype(f32),
    )

    def weight_spec(shape):
        # Constant block index -> DMA'd once, stays VMEM-resident.
        return pl.BlockSpec(shape, lambda i: (0, 0))

    in_specs = ([pl.BlockSpec((tile_b, DIM_IN), lambda i: (i, 0))]
                + [weight_spec(w.shape) for w in weight_args])

    bp = num_tiles * tile_b
    cost = pl.CostEstimate(
        flops=2 * _MACS_PER_ROW * bp,
        transcendentals=bp,                    # one tanh per computed row
        bytes_accessed=(B * DIM_IN * 4        # f32 activations in
                        + B * 4               # f32 output
                        + _WEIGHT_ELEMS * 2 + _BIAS_ELEMS * 4),
    )

    return pl.pallas_call(
        _control_kernel,
        out_shape=jax.ShapeDtypeStruct((B, 1), f32),
        grid=(num_tiles,),
        in_specs=in_specs,
        out_specs=pl.BlockSpec((tile_b, 1), lambda i: (i, 0)),
        compiler_params=pltpu.CompilerParams(
            dimension_semantics=("parallel",),      # v7x: shard batch over 2 TCs
            vmem_limit_bytes=48 * 1024 * 1024,      # <= v7x's 64 MiB physical VMEM
        ),
        cost_estimate=cost,
    )(x, *weight_args)


def init_params(key):
    """Deterministic PyTorch-Linear-style init: U(-1/sqrt(fan_in), 1/sqrt(fan_in))."""
    def linear(key, fan_in, fan_out):
        kw, kb = jax.random.split(key)
        bound = 1.0 / jnp.sqrt(fan_in)
        w = jax.random.uniform(kw, (fan_in, fan_out), jnp.float32, -bound, bound)
        b = jax.random.uniform(kb, (fan_out,), jnp.float32, -bound, bound)
        return w, b

    keys = jax.random.split(key, 6)
    w1, b1 = linear(keys[0], DIM_IMU, DIM_H_IMU)             # imu layer 1: 600 -> 256
    w2, b2 = linear(keys[1], DIM_H_IMU, DIM_H_IMU)           # imu layer 2: 256 -> 256
    w3, b3 = linear(keys[2], DIM_H_IMU, DIM_O_IMU)           # imu layer 3: 256 -> 2
    wb1, bb1 = linear(keys[3], DIM_CMD + DIM_O_IMU, DIM_H)   # base layer 1: 4 -> 32
    wb2, bb2 = linear(keys[4], DIM_H, DIM_H)                 # base layer 2: 32 -> 32
    wc, bc = linear(keys[5], DIM_H, 1)                       # curvature: 32 -> 1
    return (w1, b1, w2, b2, w3, b3, wb1, bb1, wb2, bb2, wc, bc)


def control_reference(x, params):
    """Pure-JAX f32 reference mirroring the PyTorch forward exactly."""
    (w1, b1, w2, b2, w3, b3, wb1, bb1, wb2, bb2, wc, bc) = params
    cmd, imu = x[:, :DIM_CMD], x[:, DIM_CMD:]
    h = jax.nn.relu(imu @ w1 + b1)
    h = jax.nn.relu(h @ w2 + b2)
    imu_out = jax.nn.relu(h @ w3 + b3)
    hid = jnp.concatenate([cmd, imu_out], axis=-1)
    hid = jax.nn.relu(hid @ wb1 + bb1)
    hid = jax.nn.relu(hid @ wb2 + bb2)
    return jnp.tanh(hid @ wc + bc)


if __name__ == "__main__":
    key = jax.random.PRNGKey(0)
    k_params, k_x = jax.random.split(key)
    params = init_params(k_params)

    # Small smoke test (single tile, masked/ragged batch block).
    B = 8
    x = jax.random.normal(k_x, (B, DIM_IN), jnp.float32)        # [8, 602]
    out = jax.block_until_ready(control_forward(x, params))
    ref = control_reference(x, params)
    assert out.shape == (B, 1), out.shape
    # bf16 weights/activations with f32 accumulation -> loose tolerance vs f32 ref.
    assert jnp.allclose(out, ref, atol=5e-2, rtol=5e-2), \
        float(jnp.max(jnp.abs(out - ref)))

    # Larger, non-multiple-of-tile batch: exercises the multi-tile grid
    # (>= 2 tiles -> both v7x TCs) and the ragged last block.
    B2 = 1000
    x2 = jax.random.normal(jax.random.PRNGKey(1), (B2, DIM_IN), jnp.float32)
    out2 = jax.block_until_ready(control_forward(x2, params))
    ref2 = control_reference(x2, params)
    assert out2.shape == (B2, 1), out2.shape
    assert jnp.allclose(out2, ref2, atol=5e-2, rtol=5e-2), \
        float(jnp.max(jnp.abs(out2 - ref2)))

    print("KERNEL_OK")
</pallas_src>

<mosaic_0001>
module attributes {stable_mosaic.version = 11 : i64} {
  func.func @_control_kernel(%arg0: i32, %arg1: memref<256x602xf32, #tpu.memory_space<vmem>>, %arg2: memref<602x256xbf16, #tpu.memory_space<vmem>>, %arg3: memref<1x256xf32, #tpu.memory_space<vmem>>, %arg4: memref<256x256xbf16, #tpu.memory_space<vmem>>, %arg5: memref<1x256xf32, #tpu.memory_space<vmem>>, %arg6: memref<256x2xbf16, #tpu.memory_space<vmem>>, %arg7: memref<1x2xf32, #tpu.memory_space<vmem>>, %arg8: memref<2x32xbf16, #tpu.memory_space<vmem>>, %arg9: memref<2x32xbf16, #tpu.memory_space<vmem>>, %arg10: memref<1x32xf32, #tpu.memory_space<vmem>>, %arg11: memref<32x32xbf16, #tpu.memory_space<vmem>>, %arg12: memref<1x32xf32, #tpu.memory_space<vmem>>, %arg13: memref<32x1xbf16, #tpu.memory_space<vmem>>, %arg14: memref<1x1xf32, #tpu.memory_space<vmem>>, %arg15: memref<256x1xf32, #tpu.memory_space<vmem>>) attributes {dimension_semantics = [#tpu.dimension_semantics<parallel>], iteration_bounds = array<i64: 1>, scalar_prefetch = 0 : i64, scratch_operands = 0 : i64, tpu.core_type = #tpu.core_type<tc>, window_params = [{transform_indices = @transform_0, window_bounds = array<i64: 256, 602>}, {pipeline_mode = #tpu.pipeline_mode<synchronous>, transform_indices = @transform_1, window_bounds = array<i64: 602, 256>}, {pipeline_mode = #tpu.pipeline_mode<synchronous>, transform_indices = @transform_2, window_bounds = array<i64: 1, 256>}, {pipeline_mode = #tpu.pipeline_mode<synchronous>, transform_indices = @transform_3, window_bounds = array<i64: 256, 256>}, {pipeline_mode = #tpu.pipeline_mode<synchronous>, transform_indices = @transform_4, window_bounds = array<i64: 1, 256>}, {pipeline_mode = #tpu.pipeline_mode<synchronous>, transform_indices = @transform_5, window_bounds = array<i64: 256, 2>}, {pipeline_mode = #tpu.pipeline_mode<synchronous>, transform_indices = @transform_6, window_bounds = array<i64: 1, 2>}, {pipeline_mode = #tpu.pipeline_mode<synchronous>, transform_indices = @transform_7, window_bounds = array<i64: 2, 32>}, {pipeline_mode = #tpu.pipeline_mode<synchronous>, transform_indices = @transform_8, window_bounds = array<i64: 2, 32>}, {pipeline_mode = #tpu.pipeline_mode<synchronous>, transform_indices = @transform_9, window_bounds = array<i64: 1, 32>}, {pipeline_mode = #tpu.pipeline_mode<synchronous>, transform_indices = @transform_10, window_bounds = array<i64: 32, 32>}, {pipeline_mode = #tpu.pipeline_mode<synchronous>, transform_indices = @transform_11, window_bounds = array<i64: 1, 32>}, {pipeline_mode = #tpu.pipeline_mode<synchronous>, transform_indices = @transform_12, window_bounds = array<i64: 32, 1>}, {pipeline_mode = #tpu.pipeline_mode<synchronous>, transform_indices = @transform_13, window_bounds = array<i64: 1, 1>}, {transform_indices = @transform_14, window_bounds = array<i64: 256, 1>}]} {
    %c0 = arith.constant 0 : index
    %c0_0 = arith.constant 0 : index
    %0 = vector.load %arg1[%c0, %c0_0] : memref<256x602xf32, #tpu.memory_space<vmem>>, vector<256x602xf32>
    %1 = arith.truncf %0 : vector<256x602xf32> to vector<256x602xbf16>
    %2 = vector.extract_strided_slice %1 {offsets = [0, 0], sizes = [256, 2], strides = [1, 1]} : vector<256x602xbf16> to vector<256x2xbf16>
    %c0_1 = arith.constant 0 : index
    %c0_2 = arith.constant 0 : index
    %3 = vector.load %arg2[%c0_1, %c0_2] : memref<602x256xbf16, #tpu.memory_space<vmem>>, vector<602x256xbf16>
    %cst = arith.constant dense<0.000000e+00> : vector<256x256xf32>
    %4 = tpu.matmul %1, %3, %cst {dimension_numbers = #tpu.dot_dimension_numbers<[1], [0], [0], [1], [0, 0, 1, 1], [], []>} : vector<256x602xbf16>, vector<602x256xbf16>, vector<256x256xf32> -> vector<256x256xf32>
    %c0_3 = arith.constant 0 : index
    %c0_4 = arith.constant 0 : index
    %5 = vector.load %arg3[%c0_3, %c0_4] : memref<1x256xf32, #tpu.memory_space<vmem>>, vector<1x256xf32>
    %6 = vector.broadcast %5 : vector<1x256xf32> to vector<256x256xf32>
    %7 = arith.addf %4, %6 : vector<256x256xf32>
    %cst_5 = arith.constant 0.000000e+00 : f32
    %8 = vector.broadcast %cst_5 : f32 to vector<256x256xf32>
    %9 = arith.maximumf %7, %8 : vector<256x256xf32>
    %10 = arith.truncf %9 : vector<256x256xf32> to vector<256x256xbf16>
    %c0_6 = arith.constant 0 : index
    %c0_7 = arith.constant 0 : index
    %11 = vector.load %arg4[%c0_6, %c0_7] : memref<256x256xbf16, #tpu.memory_space<vmem>>, vector<256x256xbf16>
    %cst_8 = arith.constant dense<0.000000e+00> : vector<256x256xf32>
    %12 = tpu.matmul %10, %11, %cst_8 {dimension_numbers = #tpu.dot_dimension_numbers<[1], [0], [0], [1], [0, 0, 1, 1], [], []>} : vector<256x256xbf16>, vector<256x256xbf16>, vector<256x256xf32> -> vector<256x256xf32>
    %c0_9 = arith.constant 0 : index
    %c0_10 = arith.constant 0 : index
    %13 = vector.load %arg5[%c0_9, %c0_10] : memref<1x256xf32, #tpu.memory_space<vmem>>, vector<1x256xf32>
    %14 = vector.broadcast %13 : vector<1x256xf32> to vector<256x256xf32>
    %15 = arith.addf %12, %14 : vector<256x256xf32>
    %cst_11 = arith.constant 0.000000e+00 : f32
    %16 = vector.broadcast %cst_11 : f32 to vector<256x256xf32>
    %17 = arith.maximumf %15, %16 : vector<256x256xf32>
    %18 = arith.truncf %17 : vector<256x256xf32> to vector<256x256xbf16>
    %c0_12 = arith.constant 0 : index
    %c0_13 = arith.constant 0 : index
    %19 = vector.load %arg6[%c0_12, %c0_13] : memref<256x2xbf16, #tpu.memory_space<vmem>>, vector<256x2xbf16>
    %cst_14 = arith.constant dense<0.000000e+00> : vector<256x2xf32>
    %20 = tpu.matmul %18, %19, %cst_14 {dimension_numbers = #tpu.dot_dimension_numbers<[1], [0], [0], [1], [0, 0, 1, 1], [], []>} : vector<256x256xbf16>, vector<256x2xbf16>, vector<256x2xf32> -> vector<256x2xf32>
    %c0_15 = arith.constant 0 : index
    %c0_16 = arith.constant 0 : index
    %21 = vector.load %arg7[%c0_15, %c0_16] : memref<1x2xf32, #tpu.memory_space<vmem>>, vector<1x2xf32>
    %22 = vector.broadcast %21 : vector<1x2xf32> to vector<256x2xf32>
    %23 = arith.addf %20, %22 : vector<256x2xf32>
    %cst_17 = arith.constant 0.000000e+00 : f32
    %24 = vector.broadcast %cst_17 : f32 to vector<256x2xf32>
    %25 = arith.maximumf %23, %24 : vector<256x2xf32>
    %26 = arith.truncf %25 : vector<256x2xf32> to vector<256x2xbf16>
    %c0_18 = arith.constant 0 : index
    %c0_19 = arith.constant 0 : index
    %27 = vector.load %arg8[%c0_18, %c0_19] : memref<2x32xbf16, #tpu.memory_space<vmem>>, vector<2x32xbf16>
    %cst_20 = arith.constant dense<0.000000e+00> : vector<256x32xf32>
    %28 = tpu.matmul %2, %27, %cst_20 {dimension_numbers = #tpu.dot_dimension_numbers<[1], [0], [0], [1], [0, 0, 1, 1], [], []>} : vector<256x2xbf16>, vector<2x32xbf16>, vector<256x32xf32> -> vector<256x32xf32>
    %c0_21 = arith.constant 0 : index
    %c0_22 = arith.constant 0 : index
    %29 = vector.load %arg9[%c0_21, %c0_22] : memref<2x32xbf16, #tpu.memory_space<vmem>>, vector<2x32xbf16>
    %cst_23 = arith.constant dense<0.000000e+00> : vector<256x32xf32>
    %30 = tpu.matmul %26, %29, %cst_23 {dimension_numbers = #tpu.dot_dimension_numbers<[1], [0], [0], [1], [0, 0, 1, 1], [], []>} : vector<256x2xbf16>, vector<2x32xbf16>, vector<256x32xf32> -> vector<256x32xf32>
    %31 = arith.addf %28, %30 : vector<256x32xf32>
    %c0_24 = arith.constant 0 : index
    %c0_25 = arith.constant 0 : index
    %32 = vector.load %arg10[%c0_24, %c0_25] : memref<1x32xf32, #tpu.memory_space<vmem>>, vector<1x32xf32>
    %33 = vector.broadcast %32 : vector<1x32xf32> to vector<256x32xf32>
    %34 = arith.addf %31, %33 : vector<256x32xf32>
    %cst_26 = arith.constant 0.000000e+00 : f32
    %35 = vector.broadcast %cst_26 : f32 to vector<256x32xf32>
    %36 = arith.maximumf %34, %35 : vector<256x32xf32>
    %37 = arith.truncf %36 : vector<256x32xf32> to vector<256x32xbf16>
    %c0_27 = arith.constant 0 : index
    %c0_28 = arith.constant 0 : index
    %38 = vector.load %arg11[%c0_27, %c0_28] : memref<32x32xbf16, #tpu.memory_space<vmem>>, vector<32x32xbf16>
    %cst_29 = arith.constant dense<0.000000e+00> : vector<256x32xf32>
    %39 = tpu.matmul %37, %38, %cst_29 {dimension_numbers = #tpu.dot_dimension_numbers<[1], [0], [0], [1], [0, 0, 1, 1], [], []>} : vector<256x32xbf16>, vector<32x32xbf16>, vector<256x32xf32> -> vector<256x32xf32>
    %c0_30 = arith.constant 0 : index
    %c0_31 = arith.constant 0 : index
    %40 = vector.load %arg12[%c0_30, %c0_31] : memref<1x32xf32, #tpu.memory_space<vmem>>, vector<1x32xf32>
    %41 = vector.broadcast %40 : vector<1x32xf32> to vector<256x32xf32>
    %42 = arith.addf %39, %41 : vector<256x32xf32>
    %cst_32 = arith.constant 0.000000e+00 : f32
    %43 = vector.broadcast %cst_32 : f32 to vector<256x32xf32>
    %44 = arith.maximumf %42, %43 : vector<256x32xf32>
    %45 = arith.truncf %44 : vector<256x32xf32> to vector<256x32xbf16>
    %c0_33 = arith.constant 0 : index
    %c0_34 = arith.constant 0 : index
    %46 = vector.load %arg13[%c0_33, %c0_34] : memref<32x1xbf16, #tpu.memory_space<vmem>>, vector<32x1xbf16>
    %cst_35 = arith.constant dense<0.000000e+00> : vector<256x1xf32>
    %47 = tpu.matmul %45, %46, %cst_35 {dimension_numbers = #tpu.dot_dimension_numbers<[1], [0], [0], [1], [0, 0, 1, 1], [], []>} : vector<256x32xbf16>, vector<32x1xbf16>, vector<256x1xf32> -> vector<256x1xf32>
    %c0_36 = arith.constant 0 : index
    %c0_37 = arith.constant 0 : index
    %48 = vector.load %arg14[%c0_36, %c0_37] : memref<1x1xf32, #tpu.memory_space<vmem>>, vector<1x1xf32>
    %49 = vector.broadcast %48 : vector<1x1xf32> to vector<256x1xf32>
    %50 = arith.addf %47, %49 : vector<256x1xf32>
    %51 = math.tanh %50 : vector<256x1xf32>
    %c0_38 = arith.constant 0 : index
    %c0_39 = arith.constant 0 : index
    %52 = vector.load %arg15[%c0_38, %c0_39] : memref<256x1xf32, #tpu.memory_space<vmem>>, vector<256x1xf32>
    tpu.vector_store %arg15[%c0_38, %c0_39], %51 {strides = array<i32>} : memref<256x1xf32, #tpu.memory_space<vmem>>, vector<256x1xf32>,
    return
  }
  func.func @transform_0(%arg0: i32) -> (i32, i32) {
    %c0_i32 = arith.constant 0 : i32
    %c0_i32_0 = arith.constant 0 : i32
    return %arg0, %c0_i32 : i32, i32
  }
  func.func @transform_1(%arg0: i32) -> (i32, i32) {
    %c0_i32 = arith.constant 0 : i32
    %c0_i32_0 = arith.constant 0 : i32
    %c0_i32_1 = arith.constant 0 : i32
    return %c0_i32, %c0_i32_0 : i32, i32
  }
  func.func @transform_2(%arg0: i32) -> (i32, i32) {
    %c0_i32 = arith.constant 0 : i32
    %c0_i32_0 = arith.constant 0 : i32
    %c0_i32_1 = arith.constant 0 : i32
    return %c0_i32, %c0_i32_0 : i32, i32
  }
  func.func @transform_3(%arg0: i32) -> (i32, i32) {
    %c0_i32 = arith.constant 0 : i32
    %c0_i32_0 = arith.constant 0 : i32
    %c0_i32_1 = arith.constant 0 : i32
    return %c0_i32, %c0_i32_0 : i32, i32
  }
  func.func @transform_4(%arg0: i32) -> (i32, i32) {
    %c0_i32 = arith.constant 0 : i32
    %c0_i32_0 = arith.constant 0 : i32
    %c0_i32_1 = arith.constant 0 : i32
    return %c0_i32, %c0_i32_0 : i32, i32
  }
  func.func @transform_5(%arg0: i32) -> (i32, i32) {
    %c0_i32 = arith.constant 0 : i32
    %c0_i32_0 = arith.constant 0 : i32
    %c0_i32_1 = arith.constant 0 : i32
    return %c0_i32, %c0_i32_0 : i32, i32
  }
  func.func @transform_6(%arg0: i32) -> (i32, i32) {
    %c0_i32 = arith.constant 0 : i32
    %c0_i32_0 = arith.constant 0 : i32
    %c0_i32_1 = arith.constant 0 : i32
    return %c0_i32, %c0_i32_0 : i32, i32
  }
  func.func @transform_7(%arg0: i32) -> (i32, i32) {
    %c0_i32 = arith.constant 0 : i32
    %c0_i32_0 = arith.constant 0 : i32
    %c0_i32_1 = arith.constant 0 : i32
    return %c0_i32, %c0_i32_0 : i32, i32
  }
  func.func @transform_8(%arg0: i32) -> (i32, i32) {
    %c0_i32 = arith.constant 0 : i32
    %c0_i32_0 = arith.constant 0 : i32
    %c0_i32_1 = arith.constant 0 : i32
    return %c0_i32, %c0_i32_0 : i32, i32
  }
  func.func @transform_9(%arg0: i32) -> (i32, i32) {
    %c0_i32 = arith.constant 0 : i32
    %c0_i32_0 = arith.constant 0 : i32
    %c0_i32_1 = arith.constant 0 : i32
    return %c0_i32, %c0_i32_0 : i32, i32
  }
  func.func @transform_10(%arg0: i32) -> (i32, i32) {
    %c0_i32 = arith.constant 0 : i32
    %c0_i32_0 = arith.constant 0 : i32
    %c0_i32_1 = arith.constant 0 : i32
    return %c0_i32, %c0_i32_0 : i32, i32
  }
  func.func @transform_11(%arg0: i32) -> (i32, i32) {
    %c0_i32 = arith.constant 0 : i32
    %c0_i32_0 = arith.constant 0 : i32
    %c0_i32_1 = arith.constant 0 : i32
    return %c0_i32, %c0_i32_0 : i32, i32
  }
  func.func @transform_12(%arg0: i32) -> (i32, i32) {
    %c0_i32 = arith.constant 0 : i32
    %c0_i32_0 = arith.constant 0 : i32
    %c0_i32_1 = arith.constant 0 : i32
    return %c0_i32, %c0_i32_0 : i32, i32
  }
  func.func @transform_13(%arg0: i32) -> (i32, i32) {
    %c0_i32 = arith.constant 0 : i32
    %c0_i32_0 = arith.constant 0 : i32
    %c0_i32_1 = arith.constant 0 : i32
    return %c0_i32, %c0_i32_0 : i32, i32
  }
  func.func @transform_14(%arg0: i32) -> (i32, i32) {
    %c0_i32 = arith.constant 0 : i32
    %c0_i32_0 = arith.constant 0 : i32
    return %arg0, %c0_i32 : i32, i32
  }
}

</mosaic_0001>

<llo_original>
// kernel: control_forward.1
$region0: #{control_forward.1}
  #allocation0 [shape = 'u32[]', space=smem, size = 0x4, offset = 0x4, fixed_abs, tag = 'smem constant byte address 0x4 - core index']
  #allocation1 [shape = 'u32[72,128]{1,0:T(1,128)}', space=vmem, size = 0x9000, scoped, tag = 'internal scratch']
  #allocation2 [shape = 'f32[1,1]{1,0:T(1,128)S(1)}', space=vmem, size = 0x200, scoped, tag = 'scoped memory for control_forward.1']
  %s0 = inlined_call_operand.vmem [shape: f32[8,602], index: 0, kind: input, shape index: {}]
  %s1 = inlined_call_operand.vmem [shape: bf16[602,256], index: 1, kind: input, shape index: {}]
  %s2 = inlined_call_operand.vmem [shape: f32[1,256], index: 2, kind: input, shape index: {}]
  %s3 = inlined_call_operand.vmem [shape: bf16[256,256], index: 3, kind: input, shape index: {}]
  %s4 = inlined_call_operand.vmem [shape: f32[1,256], index: 4, kind: input, shape index: {}]
  %s5 = inlined_call_operand.vmem [shape: bf16[256,2], index: 5, kind: input, shape index: {}]
  %s6 = inlined_call_operand.vmem [shape: f32[1,2], index: 6, kind: input, shape index: {}]
  %s7 = inlined_call_operand.vmem [shape: bf16[2,32], index: 7, kind: input, shape index: {}]
  %s8 = inlined_call_operand.vmem [shape: bf16[2,32], index: 8, kind: input, shape index: {}]
  %s9 = inlined_call_operand.vmem [shape: f32[1,32], index: 9, kind: input, shape index: {}]
  %s10 = inlined_call_operand.vmem [shape: bf16[32,32], index: 10, kind: input, shape index: {}]
  %s11 = inlined_call_operand.vmem [shape: f32[1,32], index: 11, kind: input, shape index: {}]
  %s12 = inlined_call_operand.vmem [shape: bf16[32,1], index: 12, kind: input, shape index: {}]
  %s13 = inlined_call_operand.<no memory space> [shape: f32[1,1], index: 13, kind: input, shape index: {}]
  %s14 = inlined_call_operand.vmem [shape: f32[8,1], index: 14, kind: output, shape index: {}]
  %s15 = sld [smem:[#allocation0]]
  $region100: #{control_forward.1} parent=0
    _
  %s17 = ssub.s32 1, %s15
  %s18 = scalar_select 0, %s17, %s15
  %v19 = vstv %s13
  %20 = vst [vmem:[#allocation2] sm:$0x1] %v19
  $region1: #{control_forward.1} parent=0
    #allocation3 [shape = 'u8[131072]{0}', space=vmem, size = 0x20000, scoped, tag = 'output window, operand 0, single buffered']
    // Predicated region
    $region2: #{control_forward.1} parent=1 // pred_check
      _
    $region3: #{control_forward.1} parent=1 // pred_check_branch
      %22 = sbr.rel (0) target = $region5
    $region4: #{control_forward.1} parent=1 // pred_region
      _
    $region5: #{control_forward.1} parent=1 // pred_fallthru
      _
    // Predicated region
    $region6: #{control_forward.1} parent=1 // pred_check
      _
    $region7: #{control_forward.1} parent=1 // pred_check_branch
      %24 = sbr.rel (0) target = $region9
    $region8: #{control_forward.1} parent=1 // pred_region
      _
    $region9: #{control_forward.1} parent=1 // pred_fallthru
      _
    // Predicated region
    $region10: #{control_forward.1} parent=1 // pred_check
      _
    $region11: #{control_forward.1} parent=1 // pred_check_branch
      %26 = sbr.rel (0) target = $region13
    $region12: #{control_forward.1} parent=1 // pred_region
      _
    $region13: #{control_forward.1} parent=1 // pred_fallthru
      _
    // Predicated region
    $region14: #{control_forward.1} parent=1 // pred_check
      _
    $region15: #{control_forward.1} parent=1 // pred_check_branch
      %28 = sbr.rel (0) target = $region17
    $region16: #{control_forward.1} parent=1 // pred_region
      _
    $region17: #{control_forward.1} parent=1 // pred_fallthru
      _
    // Predicated region
    $region18: #{control_forward.1} parent=1 // pred_check
      _
    $region19: #{control_forward.1} parent=1 // pred_check_branch
      %30 = sbr.rel (0) target = $region21
    $region20: #{control_forward.1} parent=1 // pred_region
      _
    $region21: #{control_forward.1} parent=1 // pred_fallthru
      _
    // Predicated region
    $region22: #{control_forward.1} parent=1 // pred_check
      _
    $region23: #{control_forward.1} parent=1 // pred_check_branch
      %32 = sbr.rel (0) target = $region25
    $region24: #{control_forward.1} parent=1 // pred_region
      _
    $region25: #{control_forward.1} parent=1 // pred_fallthru
      _
    // Predicated region
    $region26: #{control_forward.1} parent=1 // pred_check
      _
    $region27: #{control_forward.1} parent=1 // pred_check_branch
      %34 = sbr.rel (0) target = $region29
    $region28: #{control_forward.1} parent=1 // pred_region
      _
    $region29: #{control_forward.1} parent=1 // pred_fallthru
      _
    // Predicated region
    $region30: #{control_forward.1} parent=1 // pred_check
      _
    $region31: #{control_forward.1} parent=1 // pred_check_branch
      %36 = sbr.rel (0) target = $region33
    $region32: #{control_forward.1} parent=1 // pred_region
      _
    $region33: #{control_forward.1} parent=1 // pred_fallthru
      _
    // Predicated region
    $region34: #{control_forward.1} parent=1 // pred_check
      _
    $region35: #{control_forward.1} parent=1 // pred_check_branch
      %38 = sbr.rel (0) target = $region37
    $region36: #{control_forward.1} parent=1 // pred_region
      _
    $region37: #{control_forward.1} parent=1 // pred_fallthru
      _
    // Predicated region
    $region38: #{control_forward.1} parent=1 // pred_check
      _
    $region39: #{control_forward.1} parent=1 // pred_check_branch
      %40 = sbr.rel (0) target = $region41
    $region40: #{control_forward.1} parent=1 // pred_region
      _
    $region41: #{control_forward.1} parent=1 // pred_fallthru
      _
    // Predicated region
    $region42: #{control_forward.1} parent=1 // pred_check
      _
    $region43: #{control_forward.1} parent=1 // pred_check_branch
      %42 = sbr.rel (0) target = $region45
    $region44: #{control_forward.1} parent=1 // pred_region
      _
    $region45: #{control_forward.1} parent=1 // pred_fallthru
      _
    // Predicated region
    $region46: #{control_forward.1} parent=1 // pred_check
      _
    $region47: #{control_forward.1} parent=1 // pred_check_branch
      %44 = sbr.rel (0) target = $region49
    $region48: #{control_forward.1} parent=1 // pred_region
      _
    $region49: #{control_forward.1} parent=1 // pred_fallthru
      _
    // Predicated region
    $region50: #{control_forward.1} parent=1 // pred_check
      _
    $region51: #{control_forward.1} parent=1 // pred_check_branch
      %46 = sbr.rel (0) target = $region53
    $region52: #{control_forward.1} parent=1 // pred_region
      _
    $region53: #{control_forward.1} parent=1 // pred_fallthru
      _
    // Predicated region
    $region54: #{control_forward.1} parent=1 // pred_check
      _
    $region55: #{control_forward.1} parent=1 // pred_check_branch
      %48 = sbr.rel (0) target = $region57
    $region56: #{control_forward.1} parent=1 // pred_region
      _
    $region57: #{control_forward.1} parent=1 // pred_fallthru
      _
    %v50 = vld [vmem:[%s0] sm:$0xff]
    %v51 = vld [vmem:[%s0 + $0x8] sm:$0xff]
    %v52 = vld [vmem:[%s0 + $0x10] sm:$0xff]
    %v53 = vld [vmem:[%s0 + $0x18] sm:$0xff]
    %v54 = vld [vmem:[%s0 + $0x20] sm:$0xff]
    %v55 = vld [vmem:[%s0 + $0x28] sm:$0xff]
    %v56 = vld [vmem:[%s0 + $0x30] sm:$0xff]
    %v57 = vld [vmem:[%s0 + $0x38] sm:$0xff]
    %v58 = vld [vmem:[%s0 + $0x40] sm:$0xff]
    %v59 = vld [vmem:[%s0 + $0x48] sm:$0xff]
    %v60 = vld [vmem:[%s0 + $0x50] sm:$0xff]
    %v61 = vld [vmem:[%s0 + $0x58] sm:$0xff]
    %v62 = vld [vmem:[%s0 + $0x60] sm:$0xff]
    %v63 = vld [vmem:[%s0 + $0x68] sm:$0xff]
    %v64 = vld [vmem:[%s0 + $0x70] sm:$0xff]
    %v65 = vld [vmem:[%s0 + $0x78] sm:$0xff]
    %v66 = vld [vmem:[%s0 + $0x80] sm:$0xff]
    %v67 = vld [vmem:[%s0 + $0x88] sm:$0xff]
    %v68 = vld [vmem:[%s0 + $0x90] sm:$0xff]
    %v69 = vld [vmem:[%s0 + $0x98] sm:$0xff]
    %v70 = vld [vmem:[%s0 + $0xa0] sm:$0xff]
    %v71 = vld [vmem:[%s0 + $0xa8] sm:$0xff]
    %v72 = vld [vmem:[%s0 + $0xb0] sm:$0xff]
    %v73 = vld [vmem:[%s0 + $0xb8] sm:$0xff]
    %v74 = vld [vmem:[%s0 + $0xc0] sm:$0xff]
    %v75 = vld [vmem:[%s0 + $0xc8] sm:$0xff]
    %v76 = vld [vmem:[%s0 + $0xd0] sm:$0xff]
    %v77 = vld [vmem:[%s0 + $0xd8] sm:$0xff]
    %v78 = vld [vmem:[%s0 + $0xe0] sm:$0xff]
    %v79 = vld [vmem:[%s0 + $0xe8] sm:$0xff]
    %v80 = vld [vmem:[%s0 + $0xf0] sm:$0xff]
    %v81 = vld [vmem:[%s0 + $0xf8] sm:$0xff]
    %v82 = vld [vmem:[%s0 + $0x100] sm:$0xff]
    %v83 = vld [vmem:[%s0 + $0x108] sm:$0xff]
    %v84 = vld [vmem:[%s0 + $0x110] sm:$0xff]
    %v85 = vld [vmem:[%s0 + $0x118] sm:$0xff]
    %v86 = vld [vmem:[%s0 + $0x120] sm:$0xff]
    %v87 = vld [vmem:[%s0 + $0x128] sm:$0xff]
    %v88 = vld [vmem:[%s0 + $0x130] sm:$0xff]
    %v89 = vld [vmem:[%s0 + $0x138] sm:$0xff]
    %v90 = vld [vmem:[%s0 + $0x140] sm:$0xff]
    %v91 = vld [vmem:[%s0 + $0x148] sm:$0xff]
    %v92 = vld [vmem:[%s0 + $0x150] sm:$0xff]
    %v93 = vld [vmem:[%s0 + $0x158] sm:$0xff]
    %v94 = vld [vmem:[%s0 + $0x160] sm:$0xff]
    %v95 = vld [vmem:[%s0 + $0x168] sm:$0xff]
    %v96 = vld [vmem:[%s0 + $0x170] sm:$0xff]
    %v97 = vld [vmem:[%s0 + $0x178] sm:$0xff]
    %v98 = vld [vmem:[%s0 + $0x180] sm:$0xff]
    %v99 = vld [vmem:[%s0 + $0x188] sm:$0xff]
    %v100 = vld [vmem:[%s0 + $0x190] sm:$0xff]
    %v101 = vld [vmem:[%s0 + $0x198] sm:$0xff]
    %v102 = vld [vmem:[%s0 + $0x1a0] sm:$0xff]
    %v103 = vld [vmem:[%s0 + $0x1a8] sm:$0xff]
    %v104 = vld [vmem:[%s0 + $0x1b0] sm:$0xff]
    %v105 = vld [vmem:[%s0 + $0x1b8] sm:$0xff]
    %v106 = vld [vmem:[%s0 + $0x1c0] sm:$0xff]
    %v107 = vld [vmem:[%s0 + $0x1c8] sm:$0xff]
    %v108 = vld [vmem:[%s0 + $0x1d0] sm:$0xff]
    %v109 = vld [vmem:[%s0 + $0x1d8] sm:$0xff]
    %v110 = vld [vmem:[%s0 + $0x1e0] sm:$0xff]
    %v111 = vld [vmem:[%s0 + $0x1e8] sm:$0xff]
    %v112 = vld [vmem:[%s0 + $0x1f0] sm:$0xff]
    %v113 = vld [vmem:[%s0 + $0x1f8] sm:$0xff]
    %v114 = vld [vmem:[%s0 + $0x200] sm:$0xff]
    %v115 = vld [vmem:[%s0 + $0x208] sm:$0xff]
    %v116 = vld [vmem:[%s0 + $0x210] sm:$0xff]
    %v117 = vld [vmem:[%s0 + $0x218] sm:$0xff]
    %v118 = vld [vmem:[%s0 + $0x220] sm:$0xff]
    %v119 = vld [vmem:[%s0 + $0x228] sm:$0xff]
    %v120 = vld [vmem:[%s0 + $0x230] sm:$0xff]
    %v121 = vld [vmem:[%s0 + $0x238] sm:$0xff]
    %v122 = vld [vmem:[%s0 + $0x240] sm:$0xff]
    %v123 = vld [vmem:[%s0 + $0x248] sm:$0xff]
    %v124 = vld [vmem:[%s0 + $0x250] sm:$0xff]
    %v125 = vld [vmem:[%s0 + $0x258] sm:$0xff]
    %v126 = vld [vmem:[%s0 + $0x260] sm:$0xff]
    %v127 = vld [vmem:[%s0 + $0x268] sm:$0xff]
    %v128 = vld [vmem:[%s0 + $0x270] sm:$0xff]
    %v129 = vld [vmem:[%s0 + $0x278] sm:$0xff]
    %v130 = vld [vmem:[%s0 + $0x280] sm:$0xff]
    %v131 = vld [vmem:[%s0 + $0x288] sm:$0xff]
    %v132 = vld [vmem:[%s0 + $0x290] sm:$0xff]
    %v133 = vld [vmem:[%s0 + $0x298] sm:$0xff]
    %v134 = vld [vmem:[%s0 + $0x2a0] sm:$0xff]
    %v135 = vld [vmem:[%s0 + $0x2a8] sm:$0xff]
    %v136 = vld [vmem:[%s0 + $0x2b0] sm:$0xff]
    %v137 = vld [vmem:[%s0 + $0x2b8] sm:$0xff]
    %v138 = vld [vmem:[%s0 + $0x2c0] sm:$0xff]
    %v139 = vld [vmem:[%s0 + $0x2c8] sm:$0xff]
    %v140 = vld [vmem:[%s0 + $0x2d0] sm:$0xff]
    %v141 = vld [vmem:[%s0 + $0x2d8] sm:$0xff]
    %v142 = vld [vmem:[%s0 + $0x2e0] sm:$0xff]
    %v143 = vld [vmem:[%s0 + $0x2e8] sm:$0xff]
    %v144 = vld [vmem:[%s0 + $0x2f0] sm:$0xff]
    %v145 = vld [vmem:[%s0 + $0x2f8] sm:$0xff]
    %v146 = vld [vmem:[%s0 + $0x300] sm:$0xff]
    %v147 = vld [vmem:[%s0 + $0x308] sm:$0xff]
    %v148 = vld [vmem:[%s0 + $0x310] sm:$0xff]
    %v149 = vld [vmem:[%s0 + $0x318] sm:$0xff]
    %v150 = vld [vmem:[%s0 + $0x320] sm:$0xff]
    %v151 = vld [vmem:[%s0 + $0x328] sm:$0xff]
    %v152 = vld [vmem:[%s0 + $0x330] sm:$0xff]
    %v153 = vld [vmem:[%s0 + $0x338] sm:$0xff]
    %v154 = vld [vmem:[%s0 + $0x340] sm:$0xff]
    %v155 = vld [vmem:[%s0 + $0x348] sm:$0xff]
    %v156 = vld [vmem:[%s0 + $0x350] sm:$0xff]
    %v157 = vld [vmem:[%s0 + $0x358] sm:$0xff]
    %v158 = vld [vmem:[%s0 + $0x360] sm:$0xff]
    %v159 = vld [vmem:[%s0 + $0x368] sm:$0xff]
    %v160 = vld [vmem:[%s0 + $0x370] sm:$0xff]
    %v161 = vld [vmem:[%s0 + $0x378] sm:$0xff]
    %v162 = vld [vmem:[%s0 + $0x380] sm:$0xff]
    %v163 = vld [vmem:[%s0 + $0x388] sm:$0xff]
    %v164 = vld [vmem:[%s0 + $0x390] sm:$0xff]
    %v165 = vld [vmem:[%s0 + $0x398] sm:$0xff]
    %v166 = vld [vmem:[%s0 + $0x3a0] sm:$0xff]
    %v167 = vld [vmem:[%s0 + $0x3a8] sm:$0xff]
    %v168 = vld [vmem:[%s0 + $0x3b0] sm:$0xff]
    %v169 = vld [vmem:[%s0 + $0x3b8] sm:$0xff]
    %v170 = vld [vmem:[%s0 + $0x3c0] sm:$0xff]
    %v171 = vld [vmem:[%s0 + $0x3c8] sm:$0xff]
    %v172 = vld [vmem:[%s0 + $0x3d0] sm:$0xff]
    %v173 = vld [vmem:[%s0 + $0x3d8] sm:$0xff]
    %v174 = vld [vmem:[%s0 + $0x3e0] sm:$0xff]
    %v175 = vld [vmem:[%s0 + $0x3e8] sm:$0xff]
    %v176 = vld [vmem:[%s0 + $0x3f0] sm:$0xff]
    %v177 = vld [vmem:[%s0 + $0x3f8] sm:$0xff]
    %v178 = vld [vmem:[%s0 + $0x400] sm:$0xff]
    %v179 = vld [vmem:[%s0 + $0x408] sm:$0xff]
    %v180 = vld [vmem:[%s0 + $0x410] sm:$0xff]
    %v181 = vld [vmem:[%s0 + $0x418] sm:$0xff]
    %v182 = vld [vmem:[%s0 + $0x420] sm:$0xff]
    %v183 = vld [vmem:[%s0 + $0x428] sm:$0xff]
    %v184 = vld [vmem:[%s0 + $0x430] sm:$0xff]
    %v185 = vld [vmem:[%s0 + $0x438] sm:$0xff]
    %v186 = vld [vmem:[%s0 + $0x440] sm:$0xff]
    %v187 = vld [vmem:[%s0 + $0x448] sm:$0xff]
    %v188 = vld [vmem:[%s0 + $0x450] sm:$0xff]
    %v189 = vld [vmem:[%s0 + $0x458] sm:$0xff]
    %v190 = vld [vmem:[%s0 + $0x460] sm:$0xff]
    %v191 = vld [vmem:[%s0 + $0x468] sm:$0xff]
    %v192 = vld [vmem:[%s0 + $0x470] sm:$0xff]
    %v193 = vld [vmem:[%s0 + $0x478] sm:$0xff]
    %v194 = vld [vmem:[%s0 + $0x480] sm:$0xff]
    %v195 = vld [vmem:[%s0 + $0x488] sm:$0xff]
    %v196 = vld [vmem:[%s0 + $0x490] sm:$0xff]
    %v197 = vld [vmem:[%s0 + $0x498] sm:$0xff]
    %v198 = vld [vmem:[%s0 + $0x4a0] sm:$0xff]
    %v199 = vld [vmem:[%s0 + $0x4a8] sm:$0xff]
    %v200 = vld [vmem:[%s0 + $0x4b0] sm:$0xff]
    %v201 = vld [vmem:[%s0 + $0x4b8] sm:$0xff]
    %v202 = vld [vmem:[%s0 + $0x4c0] sm:$0xff]
    %v203 = vld [vmem:[%s0 + $0x4c8] sm:$0xff]
    %v204 = vld [vmem:[%s0 + $0x4d0] sm:$0xff]
    %v205 = vld [vmem:[%s0 + $0x4d8] sm:$0xff]
    %v206 = vld [vmem:[%s0 + $0x4e0] sm:$0xff]
    %v207 = vld [vmem:[%s0 + $0x4e8] sm:$0xff]
    %v208 = vld [vmem:[%s0 + $0x4f0] sm:$0xff]
    %v209 = vld [vmem:[%s0 + $0x4f8] sm:$0xff]
    %v210 = vpack.c.bf16 %v51, %v50
    %v211 = vpack.c.bf16 %v53, %v52
    %v212 = vpack.c.bf16 %v54, %v54
    %v213 = vpack.c.bf16 %v56, %v55
    %v214 = vpack.c.bf16 %v58, %v57
    %v215 = vpack.c.bf16 %v59, %v59
    %v216 = vpack.c.bf16 %v61, %v60
    %v217 = vpack.c.bf16 %v63, %v62
    %v218 = vpack.c.bf16 %v64, %v64
    %v219 = vpack.c.bf16 %v66, %v65
    %v220 = vpack.c.bf16 %v68, %v67
    %v221 = vpack.c.bf16 %v69, %v69
    %v222 = vpack.c.bf16 %v71, %v70
    %v223 = vpack.c.bf16 %v73, %v72
    %v224 = vpack.c.bf16 %v74, %v74
    %v225 = vpack.c.bf16 %v76, %v75
    %v226 = vpack.c.bf16 %v78, %v77
    %v227 = vpack.c.bf16 %v79, %v79
    %v228 = vpack.c.bf16 %v81, %v80
    %v229 = vpack.c.bf16 %v83, %v82
    %v230 = vpack.c.bf16 %v84, %v84
    %v231 = vpack.c.bf16 %v86, %v85
    %v232 = vpack.c.bf16 %v88, %v87
    %v233 = vpack.c.bf16 %v89, %v89
    %v234 = vpack.c.bf16 %v91, %v90
    %v235 = vpack.c.bf16 %v93, %v92
    %v236 = vpack.c.bf16 %v94, %v94
    %v237 = vpack.c.bf16 %v96, %v95
    %v238 = vpack.c.bf16 %v98, %v97
    %v239 = vpack.c.bf16 %v99, %v99
    %v240 = vpack.c.bf16 %v101, %v100
    %v241 = vpack.c.bf16 %v103, %v102
    %v242 = vpack.c.bf16 %v104, %v104
    %v243 = vpack.c.bf16 %v106, %v105
    %v244 = vpack.c.bf16 %v108, %v107
    %v245 = vpack.c.bf16 %v109, %v109
    %v246 = vpack.c.bf16 %v111, %v110
    %v247 = vpack.c.bf16 %v113, %v112
    %v248 = vpack.c.bf16 %v114, %v114
    %v249 = vpack.c.bf16 %v116, %v115
    %v250 = vpack.c.bf16 %v118, %v117
    %v251 = vpack.c.bf16 %v119, %v119
    %v252 = vpack.c.bf16 %v121, %v120
    %v253 = vpack.c.bf16 %v123, %v122
    %v254 = vpack.c.bf16 %v124, %v124
    %v255 = vpack.c.bf16 %v126, %v125
    %v256 = vpack.c.bf16 %v128, %v127
    %v257 = vpack.c.bf16 %v129, %v129
    %v258 = vpack.c.bf16 %v131, %v130
    %v259 = vpack.c.bf16 %v133, %v132
    %v260 = vpack.c.bf16 %v134, %v134
    %v261 = vpack.c.bf16 %v136, %v135
    %v262 = vpack.c.bf16 %v138, %v137
    %v263 = vpack.c.bf16 %v139, %v139
    %v264 = vpack.c.bf16 %v141, %v140
    %v265 = vpack.c.bf16 %v143, %v142
    %v266 = vpack.c.bf16 %v144, %v144
    %v267 = vpack.c.bf16 %v146, %v145
    %v268 = vpack.c.bf16 %v148, %v147
    %v269 = vpack.c.bf16 %v149, %v149
    %v270 = vpack.c.bf16 %v151, %v150
    %v271 = vpack.c.bf16 %v153, %v152
    %v272 = vpack.c.bf16 %v154, %v154
    %v273 = vpack.c.bf16 %v156, %v155
    %v274 = vpack.c.bf16 %v158, %v157
    %v275 = vpack.c.bf16 %v159, %v159
    %v276 = vpack.c.bf16 %v161, %v160
    %v277 = vpack.c.bf16 %v163, %v162
    %v278 = vpack.c.bf16 %v164, %v164
    %v279 = vpack.c.bf16 %v166, %v165
    %v280 = vpack.c.bf16 %v168, %v167
    %v281 = vpack.c.bf16 %v169, %v169
    %v282 = vpack.c.bf16 %v171, %v170
    %v283 = vpack.c.bf16 %v173, %v172
    %v284 = vpack.c.bf16 %v174, %v174
    %v285 = vpack.c.bf16 %v176, %v175
    %v286 = vpack.c.bf16 %v178, %v177
    %v287 = vpack.c.bf16 %v179, %v179
    %v288 = vpack.c.bf16 %v181, %v180
    %v289 = vpack.c.bf16 %v183, %v182
    %v290 = vpack.c.bf16 %v184, %v184
    %v291 = vpack.c.bf16 %v186, %v185
    %v292 = vpack.c.bf16 %v188, %v187
    %v293 = vpack.c.bf16 %v189, %v189
    %v294 = vpack.c.bf16 %v191, %v190
    %v295 = vpack.c.bf16 %v193, %v192
    %v296 = vpack.c.bf16 %v194, %v194
    %v297 = vpack.c.bf16 %v196, %v195
    %v298 = vpack.c.bf16 %v198, %v197
    %v299 = vpack.c.bf16 %v199, %v199
    %v300 = vpack.c.bf16 %v201, %v200
    %v301 = vpack.c.bf16 %v203, %v202
    %v302 = vpack.c.bf16 %v204, %v204
    %v303 = vpack.c.bf16 %v206, %v205
    %v304 = vpack.c.bf16 %v208, %v207
    %v305 = vpack.c.bf16 %v209, %v209
    %v306 = vld [vmem:[%s1] sm:$0xff]
    %v307 = vld [vmem:[%s1 + $0x8] sm:$0xff]
    %v308 = vld [vmem:[%s1 + $0x10] sm:$0xff]
    %v309 = vld [vmem:[%s1 + $0x18] sm:$0xff]
    %v310 = vld [vmem:[%s1 + $0x20] sm:$0xff]
    %v311 = vld [vmem:[%s1 + $0x28] sm:$0xff]
    %v312 = vld [vmem:[%s1 + $0x30] sm:$0xff]
    %v313 = vld [vmem:[%s1 + $0x38] sm:$0xff]
    %v314 = vld [vmem:[%s1 + $0x40] sm:$0xff]
    %v315 = vld [vmem:[%s1 + $0x48] sm:$0xff]
    %v316 = vld [vmem:[%s1 + $0x50] sm:$0xff]
    %v317 = vld [vmem:[%s1 + $0x58] sm:$0xff]
    %v318 = vld [vmem:[%s1 + $0x60] sm:$0xff]
    %v319 = vld [vmem:[%s1 + $0x68] sm:$0xff]
    %v320 = vld [vmem:[%s1 + $0x70] sm:$0xff]
    %v321 = vld [vmem:[%s1 + $0x78] sm:$0xff]
    %v322 = vld [vmem:[%s1 + $0x80] sm:$0xff]
    %v323 = vld [vmem:[%s1 + $0x88] sm:$0xff]
    %v324 = vld [vmem:[%s1 + $0x90] sm:$0xff]
    %v325 = vld [vmem:[%s1 + $0x98] sm:$0xff]
    %v326 = vld [vmem:[%s1 + $0xa0] sm:$0xff]
    %v327 = vld [vmem:[%s1 + $0xa8] sm:$0xff]
    %v328 = vld [vmem:[%s1 + $0xb0] sm:$0xff]
    %v329 = vld [vmem:[%s1 + $0xb8] sm:$0xff]
    %v330 = vld [vmem:[%s1 + $0xc0] sm:$0xff]
    %v331 = vld [vmem:[%s1 + $0xc8] sm:$0xff]
    %v332 = vld [vmem:[%s1 + $0xd0] sm:$0xff]
    %v333 = vld [vmem:[%s1 + $0xd8] sm:$0xff]
    %v334 = vld [vmem:[%s1 + $0xe0] sm:$0xff]
    %v335 = vld [vmem:[%s1 + $0xe8] sm:$0xff]
    %v336 = vld [vmem:[%s1 + $0xf0] sm:$0xff]
    %v337 = vld [vmem:[%s1 + $0xf8] sm:$0xff]
    %v338 = vld [vmem:[%s1 + $0x100] sm:$0xff]
    %v339 = vld [vmem:[%s1 + $0x108] sm:$0xff]
    %v340 = vld [vmem:[%s1 + $0x110] sm:$0xff]
    %v341 = vld [vmem:[%s1 + $0x118] sm:$0xff]
    %v342 = vld [vmem:[%s1 + $0x120] sm:$0xff]
    %v343 = vld [vmem:[%s1 + $0x128] sm:$0xff]
    %v344 = vld [vmem:[%s1 + $0x130] sm:$0xff]
    %v345 = vld [vmem:[%s1 + $0x138] sm:$0xff]
    %v346 = vld [vmem:[%s1 + $0x140] sm:$0xff]
    %v347 = vld [vmem:[%s1 + $0x148] sm:$0xff]
    %v348 = vld [vmem:[%s1 + $0x150] sm:$0xff]
    %v349 = vld [vmem:[%s1 + $0x158] sm:$0xff]
    %v350 = vld [vmem:[%s1 + $0x160] sm:$0xff]
    %v351 = vld [vmem:[%s1 + $0x168] sm:$0xff]
    %v352 = vld [vmem:[%s1 + $0x170] sm:$0xff]
    %v353 = vld [vmem:[%s1 + $0x178] sm:$0xff]
    %v354 = vld [vmem:[%s1 + $0x180] sm:$0xff]
    %v355 = vld [vmem:[%s1 + $0x188] sm:$0xff]
    %v356 = vld [vmem:[%s1 + $0x190] sm:$0xff]
    %v357 = vld [vmem:[%s1 + $0x198] sm:$0xff]
    %v358 = vld [vmem:[%s1 + $0x1a0] sm:$0xff]
    %v359 = vld [vmem:[%s1 + $0x1a8] sm:$0xff]
    %v360 = vld [vmem:[%s1 + $0x1b0] sm:$0xff]
    %v361 = vld [vmem:[%s1 + $0x1b8] sm:$0xff]
    %v362 = vld [vmem:[%s1 + $0x1c0] sm:$0xff]
    %v363 = vld [vmem:[%s1 + $0x1c8] sm:$0xff]
    %v364 = vld [vmem:[%s1 + $0x1d0] sm:$0xff]
    %v365 = vld [vmem:[%s1 + $0x1d8] sm:$0xff]
    %v366 = vld [vmem:[%s1 + $0x1e0] sm:$0xff]
    %v367 = vld [vmem:[%s1 + $0x1e8] sm:$0xff]
    %v368 = vld [vmem:[%s1 + $0x1f0] sm:$0xff]
    %v369 = vld [vmem:[%s1 + $0x1f8] sm:$0xff]
    %v370 = vld [vmem:[%s1 + $0x200] sm:$0xff]
    %v371 = vld [vmem:[%s1 + $0x208] sm:$0xff]
    %v372 = vld [vmem:[%s1 + $0x210] sm:$0xff]
    %v373 = vld [vmem:[%s1 + $0x218] sm:$0xff]
    %v374 = vld [vmem:[%s1 + $0x220] sm:$0xff]
    %v375 = vld [vmem:[%s1 + $0x228] sm:$0xff]
    %v376 = vld [vmem:[%s1 + $0x230] sm:$0xff]
    %v377 = vld [vmem:[%s1 + $0x238] sm:$0xff]
    %v378 = vld [vmem:[%s1 + $0x240] sm:$0xff]
    %v379 = vld [vmem:[%s1 + $0x248] sm:$0xff]
    %v380 = vld [vmem:[%s1 + $0x250] sm:$0xff]
    %v381 = vld [vmem:[%s1 + $0x258] sm:$0x11]
    %v382 = vld [vmem:[%s2] sm:$0x3]
    %v384 = vperm.slane %v382, 0
    %v385 = vperm.slane %v382, 1
    %v484 = vunpack.c.l.b16 %v210
    %v485 = vunpack.c.h.b16 %v210
    %v486 = vunpack.c.l.b16 %v211
    %v487 = vunpack.c.h.b16 %v211
    %v488 = vunpack.c.l.b16 %v212
    %v489 = vunpack.c.l.b16 %v213
    %v490 = vunpack.c.h.b16 %v213
    %v491 = vunpack.c.l.b16 %v214
    %v492 = vunpack.c.h.b16 %v214
    %v493 = vunpack.c.l.b16 %v215
    %v494 = vunpack.c.l.b16 %v216
    %v495 = vunpack.c.h.b16 %v216
    %v496 = vunpack.c.l.b16 %v217
    %v497 = vunpack.c.h.b16 %v217
    %v498 = vunpack.c.l.b16 %v218
    %v499 = vunpack.c.l.b16 %v219
    %v500 = vunpack.c.h.b16 %v219
    %v501 = vunpack.c.l.b16 %v220
    %v502 = vunpack.c.h.b16 %v220
    %v503 = vunpack.c.l.b16 %v221
    %v504 = vunpack.c.l.b16 %v222
    %v505 = vunpack.c.h.b16 %v222
    %v506 = vunpack.c.l.b16 %v223
    %v507 = vunpack.c.h.b16 %v223
    %v508 = vunpack.c.l.b16 %v224
    %v509 = vunpack.c.l.b16 %v225
    %v510 = vunpack.c.h.b16 %v225
    %v511 = vunpack.c.l.b16 %v226
    %v512 = vunpack.c.h.b16 %v226
    %v513 = vunpack.c.l.b16 %v227
    %v514 = vunpack.c.l.b16 %v228
    %v515 = vunpack.c.h.b16 %v228
    %v516 = vunpack.c.l.b16 %v229
    %v517 = vunpack.c.h.b16 %v229
    %v518 = vunpack.c.l.b16 %v230
    %v519 = vunpack.c.l.b16 %v231
    %v520 = vunpack.c.h.b16 %v231
    %v521 = vunpack.c.l.b16 %v232
    %v522 = vunpack.c.h.b16 %v232
    %v523 = vunpack.c.l.b16 %v233
    %v524 = vunpack.c.l.b16 %v234
    %v525 = vunpack.c.h.b16 %v234
    %v526 = vunpack.c.l.b16 %v235
    %v527 = vunpack.c.h.b16 %v235
    %v528 = vunpack.c.l.b16 %v236
    %v529 = vunpack.c.l.b16 %v237
    %v530 = vunpack.c.h.b16 %v237
    %v531 = vunpack.c.l.b16 %v238
    %v532 = vunpack.c.h.b16 %v238
    %v533 = vunpack.c.l.b16 %v239
    %v534 = vunpack.c.l.b16 %v240
    %v535 = vunpack.c.h.b16 %v240
    %v536 = vunpack.c.l.b16 %v241
    %v537 = vunpack.c.h.b16 %v241
    %v538 = vunpack.c.l.b16 %v242
    %v539 = vunpack.c.l.b16 %v243
    %v540 = vunpack.c.h.b16 %v243
    %v541 = vunpack.c.l.b16 %v244
    %v542 = vunpack.c.h.b16 %v244
    %v543 = vunpack.c.l.b16 %v245
    %v544 = vunpack.c.l.b16 %v246
    %v545 = vunpack.c.h.b16 %v246
    %v546 = vunpack.c.l.b16 %v247
    %v547 = vunpack.c.h.b16 %v247
    %v548 = vunpack.c.l.b16 %v248
    %v549 = vunpack.c.l.b16 %v249
    %v550 = vunpack.c.h.b16 %v249
    %v551 = vunpack.c.l.b16 %v250
    %v552 = vunpack.c.h.b16 %v250
    %v553 = vunpack.c.l.b16 %v251
    %v554 = vunpack.c.l.b16 %v252
    %v555 = vunpack.c.h.b16 %v252
    %v556 = vunpack.c.l.b16 %v253
    %v557 = vunpack.c.h.b16 %v253
    %v558 = vunpack.c.l.b16 %v254
    %v559 = vunpack.c.l.b16 %v255
    %v560 = vunpack.c.h.b16 %v255
    %v561 = vunpack.c.l.b16 %v256
    %v562 = vunpack.c.h.b16 %v256
    %v563 = vunpack.c.l.b16 %v257
    %v564 = vunpack.c.l.b16 %v258
    %v565 = vunpack.c.h.b16 %v258
    %v566 = vunpack.c.l.b16 %v259
    %v567 = vunpack.c.h.b16 %v259
    %v568 = vunpack.c.l.b16 %v260
    %v569 = vunpack.c.l.b16 %v261
    %v570 = vunpack.c.h.b16 %v261
    %v571 = vunpack.c.l.b16 %v262
    %v572 = vunpack.c.h.b16 %v262
    %v573 = vunpack.c.l.b16 %v263
    %v574 = vunpack.c.l.b16 %v264
    %v575 = vunpack.c.h.b16 %v264
    %v576 = vunpack.c.l.b16 %v265
    %v577 = vunpack.c.h.b16 %v265
    %v578 = vunpack.c.l.b16 %v266
    %v579 = vunpack.c.l.b16 %v267
    %v580 = vunpack.c.h.b16 %v267
    %v581 = vunpack.c.l.b16 %v268
    %v582 = vunpack.c.h.b16 %v268
    %v583 = vunpack.c.l.b16 %v269
    %v584 = vunpack.c.l.b16 %v270
    %v585 = vunpack.c.h.b16 %v270
    %v586 = vunpack.c.l.b16 %v271
    %v587 = vunpack.c.h.b16 %v271
    %v588 = vunpack.c.l.b16 %v272
    %v589 = vunpack.c.l.b16 %v273
    %v590 = vunpack.c.h.b16 %v273
    %v591 = vunpack.c.l.b16 %v274
    %v592 = vunpack.c.h.b16 %v274
    %v593 = vunpack.c.l.b16 %v275
    %v594 = vunpack.c.l.b16 %v276
    %v595 = vunpack.c.h.b16 %v276
    %v596 = vunpack.c.l.b16 %v277
    %v597 = vunpack.c.h.b16 %v277
    %v598 = vunpack.c.l.b16 %v278
    %v599 = vunpack.c.l.b16 %v279
    %v600 = vunpack.c.h.b16 %v279
    %v601 = vunpack.c.l.b16 %v280
    %v602 = vunpack.c.h.b16 %v280
    %v603 = vunpack.c.l.b16 %v281
    %v604 = vunpack.c.l.b16 %v282
    %v605 = vunpack.c.h.b16 %v282
    %v606 = vunpack.c.l.b16 %v283
    %v607 = vunpack.c.h.b16 %v283
    %v608 = vunpack.c.l.b16 %v284
    %v609 = vunpack.c.l.b16 %v285
    %v610 = vunpack.c.h.b16 %v285
    %v611 = vunpack.c.l.b16 %v286
    %v612 = vunpack.c.h.b16 %v286
    %v613 = vunpack.c.l.b16 %v287
    %v614 = vunpack.c.l.b16 %v288
    %v615 = vunpack.c.h.b16 %v288
    %v616 = vunpack.c.l.b16 %v289
    %v617 = vunpack.c.h.b16 %v289
    %v618 = vunpack.c.l.b16 %v290
    %v619 = vunpack.c.l.b16 %v291
    %v620 = vunpack.c.h.b16 %v291
    %v621 = vunpack.c.l.b16 %v292
    %v622 = vunpack.c.h.b16 %v292
    %v623 = vunpack.c.l.b16 %v293
    %v624 = vunpack.c.l.b16 %v294
    %v625 = vunpack.c.h.b16 %v294
    %v626 = vunpack.c.l.b16 %v295
    %v627 = vunpack.c.h.b16 %v295
    %v628 = vunpack.c.l.b16 %v296
    %v629 = vunpack.c.l.b16 %v297
    %v630 = vunpack.c.h.b16 %v297
    %v631 = vunpack.c.l.b16 %v298
    %v632 = vunpack.c.h.b16 %v298
    %v633 = vunpack.c.l.b16 %v299
    %v634 = vunpack.c.l.b16 %v300
    %v635 = vunpack.c.h.b16 %v300
    %v636 = vunpack.c.l.b16 %v301
    %v637 = vunpack.c.h.b16 %v301
    %v638 = vunpack.c.l.b16 %v302
    %v639 = vunpack.c.l.b16 %v303
    %v640 = vunpack.c.h.b16 %v303
    %v641 = vunpack.c.l.b16 %v304
    %v642 = vunpack.c.h.b16 %v304
    %v643 = vunpack.c.l.b16 %v305
    %v644 = vpack.c.b16 %v489, %v484
    %v645 = vpack.c.b16 %v490, %v485
    %v646 = vpack.c.b16 %v491, %v486
    %v647 = vpack.c.b16 %v492, %v487
    %v648 = vpack.c.b16 %v493, %v488
    %v649 = vpack.c.b16 %v499, %v494
    %v650 = vpack.c.b16 %v500, %v495
    %v651 = vpack.c.b16 %v501, %v496
    %v652 = vpack.c.b16 %v502, %v497
    %v653 = vpack.c.b16 %v503, %v498
    %v654 = vpack.c.b16 %v509, %v504
    %v655 = vpack.c.b16 %v510, %v505
    %v656 = vpack.c.b16 %v511, %v506
    %v657 = vpack.c.b16 %v512, %v507
    %v658 = vpack.c.b16 %v513, %v508
    %v659 = vpack.c.b16 %v519, %v514
    %v660 = vpack.c.b16 %v520, %v515
    %v661 = vpack.c.b16 %v521, %v516
    %v662 = vpack.c.b16 %v522, %v517
    %v663 = vpack.c.b16 %v523, %v518
    %v664 = vpack.c.b16 %v529, %v524
    %v665 = vpack.c.b16 %v530, %v525
    %v666 = vpack.c.b16 %v531, %v526
    %v667 = vpack.c.b16 %v532, %v527
    %v668 = vpack.c.b16 %v533, %v528
    %v669 = vpack.c.b16 %v539, %v534
    %v670 = vpack.c.b16 %v540, %v535
    %v671 = vpack.c.b16 %v541, %v536
    %v672 = vpack.c.b16 %v542, %v537
    %v673 = vpack.c.b16 %v543, %v538
    %v674 = vpack.c.b16 %v549, %v544
    %v675 = vpack.c.b16 %v550, %v545
    %v676 = vpack.c.b16 %v551, %v546
    %v677 = vpack.c.b16 %v552, %v547
    %v678 = vpack.c.b16 %v553, %v548
    %v679 = vpack.c.b16 %v559, %v554
    %v680 = vpack.c.b16 %v560, %v555
    %v681 = vpack.c.b16 %v561, %v556
    %v682 = vpack.c.b16 %v562, %v557
    %v683 = vpack.c.b16 %v563, %v558
    %v684 = vpack.c.b16 %v569, %v564
    %v685 = vpack.c.b16 %v570, %v565
    %v686 = vpack.c.b16 %v571, %v566
    %v687 = vpack.c.b16 %v572, %v567
    %v688 = vpack.c.b16 %v573, %v568
    %v689 = vpack.c.b16 %v579, %v574
    %v690 = vpack.c.b16 %v580, %v575
    %v691 = vpack.c.b16 %v581, %v576
    %v692 = vpack.c.b16 %v582, %v577
    %v693 = vpack.c.b16 %v583, %v578
    %v694 = vpack.c.b16 %v589, %v584
    %v695 = vpack.c.b16 %v590, %v585
    %v696 = vpack.c.b16 %v591, %v586
    %v697 = vpack.c.b16 %v592, %v587
    %v698 = vpack.c.b16 %v593, %v588
    %v699 = vpack.c.b16 %v599, %v594
    %v700 = vpack.c.b16 %v600, %v595
    %v701 = vpack.c.b16 %v601, %v596
    %v702 = vpack.c.b16 %v602, %v597
    %v703 = vpack.c.b16 %v603, %v598
    %v704 = vpack.c.b16 %v609, %v604
    %v705 = vpack.c.b16 %v610, %v605
    %v706 = vpack.c.b16 %v611, %v606
    %v707 = vpack.c.b16 %v612, %v607
    %v708 = vpack.c.b16 %v613, %v608
    %v709 = vpack.c.b16 %v619, %v614
    %v710 = vpack.c.b16 %v620, %v615
    %v711 = vpack.c.b16 %v621, %v616
    %v712 = vpack.c.b16 %v622, %v617
    %v713 = vpack.c.b16 %v623, %v618
    %v714 = vpack.c.b16 %v629, %v624
    %v715 = vpack.c.b16 %v630, %v625
    %v716 = vpack.c.b16 %v631, %v626
    %v717 = vpack.c.b16 %v632, %v627
    %v718 = vpack.c.b16 %v633, %v628
    %v719 = vpack.c.b16 %v639, %v634
    %v720 = vpack.c.b16 %v640, %v635
    %v721 = vpack.c.b16 %v641, %v636
    %v722 = vpack.c.b16 %v642, %v637
    %v723 = vpack.c.b16 %v643, %v638
    %v864 = vunpack.c.l.b16 %v306
    %v865 = vunpack.c.h.b16 %v306
    %v866 = vunpack.c.l.b16 %v307
    %v867 = vunpack.c.h.b16 %v307
    %v868 = vunpack.c.l.b16 %v308
    %v869 = vunpack.c.h.b16 %v308
    %v870 = vunpack.c.l.b16 %v309
    %v871 = vunpack.c.h.b16 %v309
    %v872 = vunpack.c.l.b16 %v310
    %v873 = vunpack.c.h.b16 %v310
    %v874 = vunpack.c.l.b16 %v311
    %v875 = vunpack.c.h.b16 %v311
    %v876 = vunpack.c.l.b16 %v312
    %v877 = vunpack.c.h.b16 %v312
    %v878 = vunpack.c.l.b16 %v313
    %v879 = vunpack.c.h.b16 %v313
    %v880 = vunpack.c.l.b16 %v314
    %v881 = vunpack.c.h.b16 %v314
    %v882 = vunpack.c.l.b16 %v315
    %v883 = vunpack.c.h.b16 %v315
    %v884 = vunpack.c.l.b16 %v316
    %v885 = vunpack.c.h.b16 %v316
    %v886 = vunpack.c.l.b16 %v317
    %v887 = vunpack.c.h.b16 %v317
    %v888 = vunpack.c.l.b16 %v318
    %v889 = vunpack.c.h.b16 %v318
    %v890 = vunpack.c.l.b16 %v319
    %v891 = vunpack.c.h.b16 %v319
    %v892 = vunpack.c.l.b16 %v320
    %v893 = vunpack.c.h.b16 %v320
    %v894 = vunpack.c.l.b16 %v321
    %v895 = vunpack.c.h.b16 %v321
    %v896 = vunpack.c.l.b16 %v322
    %v897 = vunpack.c.h.b16 %v322
    %v898 = vunpack.c.l.b16 %v323
    %v899 = vunpack.c.h.b16 %v323
    %v900 = vunpack.c.l.b16 %v324
    %v901 = vunpack.c.h.b16 %v324
    %v902 = vunpack.c.l.b16 %v325
    %v903 = vunpack.c.h.b16 %v325
    %v904 = vunpack.c.l.b16 %v326
    %v905 = vunpack.c.h.b16 %v326
    %v906 = vunpack.c.l.b16 %v327
    %v907 = vunpack.c.h.b16 %v327
    %v908 = vunpack.c.l.b16 %v328
    %v909 = vunpack.c.h.b16 %v328
    %v910 = vunpack.c.l.b16 %v329
    %v911 = vunpack.c.h.b16 %v329
    %v912 = vunpack.c.l.b16 %v330
    %v913 = vunpack.c.h.b16 %v330
    %v914 = vunpack.c.l.b16 %v331
    %v915 = vunpack.c.h.b16 %v331
    %v916 = vunpack.c.l.b16 %v332
    %v917 = vunpack.c.h.b16 %v332
    %v918 = vunpack.c.l.b16 %v333
    %v919 = vunpack.c.h.b16 %v333
    %v920 = vunpack.c.l.b16 %v334
    %v921 = vunpack.c.h.b16 %v334
    %v922 = vunpack.c.l.b16 %v335
    %v923 = vunpack.c.h.b16 %v335
    %v924 = vunpack.c.l.b16 %v336
    %v925 = vunpack.c.h.b16 %v336
    %v926 = vunpack.c.l.b16 %v337
    %v927 = vunpack.c.h.b16 %v337
    %v928 = vunpack.c.l.b16 %v338
    %v929 = vunpack.c.h.b16 %v338
    %v930 = vunpack.c.l.b16 %v339
    %v931 = vunpack.c.h.b16 %v339
    %v932 = vunpack.c.l.b16 %v340
    %v933 = vunpack.c.h.b16 %v340
    %v934 = vunpack.c.l.b16 %v341
    %v935 = vunpack.c.h.b16 %v341
    %v936 = vunpack.c.l.b16 %v342
    %v937 = vunpack.c.h.b16 %v342
    %v938 = vunpack.c.l.b16 %v343
    %v939 = vunpack.c.h.b16 %v343
    %v940 = vunpack.c.l.b16 %v344
    %v941 = vunpack.c.h.b16 %v344
    %v942 = vunpack.c.l.b16 %v345
    %v943 = vunpack.c.h.b16 %v345
    %v944 = vunpack.c.l.b16 %v346
    %v945 = vunpack.c.h.b16 %v346
    %v946 = vunpack.c.l.b16 %v347
    %v947 = vunpack.c.h.b16 %v347
    %v948 = vunpack.c.l.b16 %v348
    %v949 = vunpack.c.h.b16 %v348
    %v950 = vunpack.c.l.b16 %v349
    %v951 = vunpack.c.h.b16 %v349
    %v952 = vunpack.c.l.b16 %v350
    %v953 = vunpack.c.h.b16 %v350
    %v954 = vunpack.c.l.b16 %v351
    %v955 = vunpack.c.h.b16 %v351
    %v956 = vunpack.c.l.b16 %v352
    %v957 = vunpack.c.h.b16 %v352
    %v958 = vunpack.c.l.b16 %v353
    %v959 = vunpack.c.h.b16 %v353
    %v960 = vunpack.c.l.b16 %v354
    %v961 = vunpack.c.h.b16 %v354
    %v962 = vunpack.c.l.b16 %v355
    %v963 = vunpack.c.h.b16 %v355
    %v964 = vunpack.c.l.b16 %v356
    %v965 = vunpack.c.h.b16 %v356
    %v966 = vunpack.c.l.b16 %v357
    %v967 = vunpack.c.h.b16 %v357
    %v968 = vunpack.c.l.b16 %v358
    %v969 = vunpack.c.h.b16 %v358
    %v970 = vunpack.c.l.b16 %v359
    %v971 = vunpack.c.h.b16 %v359
    %v972 = vunpack.c.l.b16 %v360
    %v973 = vunpack.c.h.b16 %v360
    %v974 = vunpack.c.l.b16 %v361
    %v975 = vunpack.c.h.b16 %v361
    %v976 = vunpack.c.l.b16 %v362
    %v977 = vunpack.c.h.b16 %v362
    %v978 = vunpack.c.l.b16 %v363
    %v979 = vunpack.c.h.b16 %v363
    %v980 = vunpack.c.l.b16 %v364
    %v981 = vunpack.c.h.b16 %v364
    %v982 = vunpack.c.l.b16 %v365
    %v983 = vunpack.c.h.b16 %v365
    %v984 = vunpack.c.l.b16 %v366
    %v985 = vunpack.c.h.b16 %v366
    %v986 = vunpack.c.l.b16 %v367
    %v987 = vunpack.c.h.b16 %v367
    %v988 = vunpack.c.l.b16 %v368
    %v989 = vunpack.c.h.b16 %v368
    %v990 = vunpack.c.l.b16 %v369
    %v991 = vunpack.c.h.b16 %v369
    %v992 = vunpack.c.l.b16 %v370
    %v993 = vunpack.c.h.b16 %v370
    %v994 = vunpack.c.l.b16 %v371
    %v995 = vunpack.c.h.b16 %v371
    %v996 = vunpack.c.l.b16 %v372
    %v997 = vunpack.c.h.b16 %v372
    %v998 = vunpack.c.l.b16 %v373
    %v999 = vunpack.c.h.b16 %v373
    %v1000 = vunpack.c.l.b16 %v374
    %v1001 = vunpack.c.h.b16 %v374
    %v1002 = vunpack.c.l.b16 %v375
    %v1003 = vunpack.c.h.b16 %v375
    %v1004 = vunpack.c.l.b16 %v376
    %v1005 = vunpack.c.h.b16 %v376
    %v1006 = vunpack.c.l.b16 %v377
    %v1007 = vunpack.c.h.b16 %v377
    %v1008 = vunpack.c.l.b16 %v378
    %v1009 = vunpack.c.h.b16 %v378
    %v1010 = vunpack.c.l.b16 %v379
    %v1011 = vunpack.c.h.b16 %v379
    %v1012 = vunpack.c.l.b16 %v380
    %v1013 = vunpack.c.h.b16 %v380
    %v1014 = vunpack.c.l.b16 %v381
    %v1015 = vunpack.c.h.b16 %v381
    %v1016 = vpack.c.b16 %v866, %v864
    %v1017 = vpack.c.b16 %v867, %v865
    %v1018 = vpack.c.b16 %v870, %v868
    %v1019 = vpack.c.b16 %v871, %v869
    %v1020 = vpack.c.b16 %v874, %v872
    %v1021 = vpack.c.b16 %v875, %v873
    %v1022 = vpack.c.b16 %v878, %v876
    %v1023 = vpack.c.b16 %v879, %v877
    %v1024 = vpack.c.b16 %v882, %v880
    %v1025 = vpack.c.b16 %v883, %v881
    %v1026 = vpack.c.b16 %v886, %v884
    %v1027 = vpack.c.b16 %v887, %v885
    %v1028 = vpack.c.b16 %v890, %v888
    %v1029 = vpack.c.b16 %v891, %v889
    %v1030 = vpack.c.b16 %v894, %v892
    %v1031 = vpack.c.b16 %v895, %v893
    %v1032 = vpack.c.b16 %v898, %v896
    %v1033 = vpack.c.b16 %v899, %v897
    %v1034 = vpack.c.b16 %v902, %v900
    %v1035 = vpack.c.b16 %v903, %v901
    %v1036 = vpack.c.b16 %v906, %v904
    %v1037 = vpack.c.b16 %v907, %v905
    %v1038 = vpack.c.b16 %v910, %v908
    %v1039 = vpack.c.b16 %v911, %v909
    %v1040 = vpack.c.b16 %v914, %v912
    %v1041 = vpack.c.b16 %v915, %v913
    %v1042 = vpack.c.b16 %v918, %v916
    %v1043 = vpack.c.b16 %v919, %v917
    %v1044 = vpack.c.b16 %v922, %v920
    %v1045 = vpack.c.b16 %v923, %v921
    %v1046 = vpack.c.b16 %v926, %v924
    %v1047 = vpack.c.b16 %v927, %v925
    %v1048 = vpack.c.b16 %v930, %v928
    %v1049 = vpack.c.b16 %v931, %v929
    %v1050 = vpack.c.b16 %v934, %v932
    %v1051 = vpack.c.b16 %v935, %v933
    %v1052 = vpack.c.b16 %v938, %v936
    %v1053 = vpack.c.b16 %v939, %v937
    %v1054 = vpack.c.b16 %v942, %v940
    %v1055 = vpack.c.b16 %v943, %v941
    %v1056 = vpack.c.b16 %v946, %v944
    %v1057 = vpack.c.b16 %v947, %v945
    %v1058 = vpack.c.b16 %v950, %v948
    %v1059 = vpack.c.b16 %v951, %v949
    %v1060 = vpack.c.b16 %v954, %v952
    %v1061 = vpack.c.b16 %v955, %v953
    %v1062 = vpack.c.b16 %v958, %v956
    %v1063 = vpack.c.b16 %v959, %v957
    %v1064 = vpack.c.b16 %v962, %v960
    %v1065 = vpack.c.b16 %v963, %v961
    %v1066 = vpack.c.b16 %v966, %v964
    %v1067 = vpack.c.b16 %v967, %v965
    %v1068 = vpack.c.b16 %v970, %v968
    %v1069 = vpack.c.b16 %v971, %v969
    %v1070 = vpack.c.b16 %v974, %v972
    %v1071 = vpack.c.b16 %v975, %v973
    %v1072 = vpack.c.b16 %v978, %v976
    %v1073 = vpack.c.b16 %v979, %v977
    %v1074 = vpack.c.b16 %v982, %v980
    %v1075 = vpack.c.b16 %v983, %v981
    %v1076 = vpack.c.b16 %v986, %v984
    %v1077 = vpack.c.b16 %v987, %v985
    %v1078 = vpack.c.b16 %v990, %v988
    %v1079 = vpack.c.b16 %v991, %v989
    %v1080 = vpack.c.b16 %v994, %v992
    %v1081 = vpack.c.b16 %v995, %v993
    %v1082 = vpack.c.b16 %v998, %v996
    %v1083 = vpack.c.b16 %v999, %v997
    %v1084 = vpack.c.b16 %v1002, %v1000
    %v1085 = vpack.c.b16 %v1003, %v1001
    %v1086 = vpack.c.b16 %v1006, %v1004
    %v1087 = vpack.c.b16 %v1007, %v1005
    %v1088 = vpack.c.b16 %v1010, %v1008
    %v1089 = vpack.c.b16 %v1011, %v1009
    %v1090 = vpack.c.b16 %v1014, %v1012
    %v1091 = vpack.c.b16 %v1015, %v1013
    %vm1166 = vcmask 736256
    %v1168 = vsel %vm1166, %v648, 0
    %v1171 = vsel %vm1166, %v653, 0
    %v1174 = vsel %vm1166, %v658, 0
    %v1177 = vsel %vm1166, %v663, 0
    %v1180 = vsel %vm1166, %v668, 0
    %v1183 = vsel %vm1166, %v673, 0
    %v1186 = vsel %vm1166, %v678, 0
    %v1189 = vsel %vm1166, %v683, 0
    %v1192 = vsel %vm1166, %v688, 0
    %v1195 = vsel %vm1166, %v693, 0
    %v1198 = vsel %vm1166, %v698, 0
    %v1201 = vsel %vm1166, %v703, 0
    %v1204 = vsel %vm1166, %v708, 0
    %v1207 = vsel %vm1166, %v713, 0
    %v1210 = vsel %vm1166, %v718, 0
    %v1213 = vsel %vm1166, %v723, 0
    %vm1215 = vcmask 1044480
    %v1217 = vsel %vm1215, %v1090, 0
    %v1220 = vsel %vm1215, %v1091, 0
    %1222 = vmatpush.bf16.msra.mxu0 %v1030
    %1223 = vmatpush.bf16.msra.mxu0 %v1028
    %1224 = vmatpush.bf16.msra.mxu0 %v1026
    %1225 = vmatpush.bf16.msra.mxu0 %v1024
    %1226 = vmatpush.bf16.msra.mxu0 %v1022
    %1227 = vmatpush.bf16.msra.mxu0 %v1020
    %1228 = vmatpush.bf16.msra.mxu0 %v1018
    %1229 = vmatpush.bf16.msra.mxu0 %v1016
    %1230 = vmatmul.bf16.gmra.mxu0 %v644
    %v1231 = vpop.f32.mrf.mxu0
    %v1232 = vadd.f32 %v384, %v1231
    %v1233 = vpop.f32.mrf.mxu0
    %v1234 = vadd.f32 %v384, %v1233
    %1235 = vmatmul.bf16.gmra.mxu0 %v649
    %v1236 = vpop.f32.mrf.mxu0
    %v1237 = vadd.f32 %v384, %v1236
    %v1238 = vpop.f32.mrf.mxu0
    %v1239 = vadd.f32 %v384, %v1238
    %1240 = vmatmul.bf16.gmra.mxu0 %v654
    %v1241 = vpop.f32.mrf.mxu0
    %v1242 = vadd.f32 %v384, %v1241
    %v1243 = vpop.f32.mrf.mxu0
    %v1244 = vadd.f32 %v384, %v1243
    %1245 = vmatmul.bf16.gmra.mxu0 %v659
    %v1246 = vpop.f32.mrf.mxu0
    %v1247 = vadd.f32 %v384, %v1246
    %v1248 = vpop.f32.mrf.mxu0
    %v1249 = vadd.f32 %v384, %v1248
    %1250 = vmatmul.bf16.gmra.mxu0 %v664
    %v1251 = vpop.f32.mrf.mxu0
    %v1252 = vadd.f32 %v384, %v1251
    %v1253 = vpop.f32.mrf.mxu0
    %v1254 = vadd.f32 %v384, %v1253
    %1255 = vmatmul.bf16.gmra.mxu0 %v669
    %v1256 = vpop.f32.mrf.mxu0
    %v1257 = vadd.f32 %v384, %v1256
    %v1258 = vpop.f32.mrf.mxu0
    %v1259 = vadd.f32 %v384, %v1258
    %1260 = vmatmul.bf16.gmra.mxu0 %v674
    %v1261 = vpop.f32.mrf.mxu0
    %v1262 = vadd.f32 %v384, %v1261
    %v1263 = vpop.f32.mrf.mxu0
    %v1264 = vadd.f32 %v384, %v1263
    %1265 = vmatmul.bf16.gmra.mxu0 %v679
    %v1266 = vpop.f32.mrf.mxu0
    %v1267 = vadd.f32 %v384, %v1266
    %v1268 = vpop.f32.mrf.mxu0
    %v1269 = vadd.f32 %v384, %v1268
    %1270 = vmatmul.bf16.gmra.mxu0 %v684
    %v1271 = vpop.f32.mrf.mxu0
    %v1272 = vadd.f32 %v384, %v1271
    %v1273 = vpop.f32.mrf.mxu0
    %v1274 = vadd.f32 %v384, %v1273
    %1275 = vmatmul.bf16.gmra.mxu0 %v689
    %v1276 = vpop.f32.mrf.mxu0
    %v1277 = vadd.f32 %v384, %v1276
    %v1278 = vpop.f32.mrf.mxu0
    %v1279 = vadd.f32 %v384, %v1278
    %1280 = vmatmul.bf16.gmra.mxu0 %v694
    %v1281 = vpop.f32.mrf.mxu0
    %v1282 = vadd.f32 %v384, %v1281
    %v1283 = vpop.f32.mrf.mxu0
    %v1284 = vadd.f32 %v384, %v1283
    %1285 = vmatmul.bf16.gmra.mxu0 %v699
    %v1286 = vpop.f32.mrf.mxu0
    %v1287 = vadd.f32 %v384, %v1286
    %v1288 = vpop.f32.mrf.mxu0
    %v1289 = vadd.f32 %v384, %v1288
    %1290 = vmatmul.bf16.gmra.mxu0 %v704
    %v1291 = vpop.f32.mrf.mxu0
    %v1292 = vadd.f32 %v384, %v1291
    %v1293 = vpop.f32.mrf.mxu0
    %v1294 = vadd.f32 %v384, %v1293
    %1295 = vmatmul.bf16.gmra.mxu0 %v709
    %v1296 = vpop.f32.mrf.mxu0
    %v1297 = vadd.f32 %v384, %v1296
    %v1298 = vpop.f32.mrf.mxu0
    %v1299 = vadd.f32 %v384, %v1298
    %1300 = vmatmul.bf16.gmra.mxu0 %v714
    %v1301 = vpop.f32.mrf.mxu0
    %v1302 = vadd.f32 %v384, %v1301
    %v1303 = vpop.f32.mrf.mxu0
    %v1304 = vadd.f32 %v384, %v1303
    %1305 = vmatmul.bf16.gmra.mxu0 %v719
    %v1306 = vpop.f32.mrf.mxu0
    %v1307 = vadd.f32 %v384, %v1306
    %v1308 = vpop.f32.mrf.mxu0
    %v1309 = vadd.f32 %v384, %v1308
    %1310 = vdwg.mxu0
    %1311 = vmatpush.bf16.msra.mxu0 %v1046
    %1312 = vmatpush.bf16.msra.mxu0 %v1044
    %1313 = vmatpush.bf16.msra.mxu0 %v1042
    %1314 = vmatpush.bf16.msra.mxu0 %v1040
    %1315 = vmatpush.bf16.msra.mxu0 %v1038
    %1316 = vmatpush.bf16.msra.mxu0 %v1036
    %1317 = vmatpush.bf16.msra.mxu0 %v1034
    %1318 = vmatpush.bf16.msra.mxu0 %v1032
    %1319 = vmatmul.bf16.gmra.mxu0 %v645
    %v1320 = vpop.f32.mrf.mxu0
    %v1321 = vadd.f32 %v1232, %v1320
    %v1322 = vpop.f32.mrf.mxu0
    %v1323 = vadd.f32 %v1234, %v1322
    %1324 = vmatmul.bf16.gmra.mxu0 %v650
    %v1325 = vpop.f32.mrf.mxu0
    %v1326 = vadd.f32 %v1237, %v1325
    %v1327 = vpop.f32.mrf.mxu0
    %v1328 = vadd.f32 %v1239, %v1327
    %1329 = vmatmul.bf16.gmra.mxu0 %v655
    %v1330 = vpop.f32.mrf.mxu0
    %v1331 = vadd.f32 %v1242, %v1330
    %v1332 = vpop.f32.mrf.mxu0
    %v1333 = vadd.f32 %v1244, %v1332
    %1334 = vmatmul.bf16.gmra.mxu0 %v660
    %v1335 = vpop.f32.mrf.mxu0
    %v1336 = vadd.f32 %v1247, %v1335
    %v1337 = vpop.f32.mrf.mxu0
    %v1338 = vadd.f32 %v1249, %v1337
    %1339 = vmatmul.bf16.gmra.mxu0 %v665
    %v1340 = vpop.f32.mrf.mxu0
    %v1341 = vadd.f32 %v1252, %v1340
    %v1342 = vpop.f32.mrf.mxu0
    %v1343 = vadd.f32 %v1254, %v1342
    %1344 = vmatmul.bf16.gmra.mxu0 %v670
    %v1345 = vpop.f32.mrf.mxu0
    %v1346 = vadd.f32 %v1257, %v1345
    %v1347 = vpop.f32.mrf.mxu0
    %v1348 = vadd.f32 %v1259, %v1347
    %1349 = vmatmul.bf16.gmra.mxu0 %v675
    %v1350 = vpop.f32.mrf.mxu0
    %v1351 = vadd.f32 %v1262, %v1350
    %v1352 = vpop.f32.mrf.mxu0
    %v1353 = vadd.f32 %v1264, %v1352
    %1354 = vmatmul.bf16.gmra.mxu0 %v680
    %v1355 = vpop.f32.mrf.mxu0
    %v1356 = vadd.f32 %v1267, %v1355
    %v1357 = vpop.f32.mrf.mxu0
    %v1358 = vadd.f32 %v1269, %v1357
    %1359 = vmatmul.bf16.gmra.mxu0 %v685
    %v1360 = vpop.f32.mrf.mxu0
    %v1361 = vadd.f32 %v1272, %v1360
    %v1362 = vpop.f32.mrf.mxu0
    %v1363 = vadd.f32 %v1274, %v1362
    %1364 = vmatmul.bf16.gmra.mxu0 %v690
    %v1365 = vpop.f32.mrf.mxu0
    %v1366 = vadd.f32 %v1277, %v1365
    %v1367 = vpop.f32.mrf.mxu0
    %v1368 = vadd.f32 %v1279, %v1367
    %1369 = vmatmul.bf16.gmra.mxu0 %v695
    %v1370 = vpop.f32.mrf.mxu0
    %v1371 = vadd.f32 %v1282, %v1370
    %v1372 = vpop.f32.mrf.mxu0
    %v1373 = vadd.f32 %v1284, %v1372
    %1374 = vmatmul.bf16.gmra.mxu0 %v700
    %v1375 = vpop.f32.mrf.mxu0
    %v1376 = vadd.f32 %v1287, %v1375
    %v1377 = vpop.f32.mrf.mxu0
    %v1378 = vadd.f32 %v1289, %v1377
    %1379 = vmatmul.bf16.gmra.mxu0 %v705
    %v1380 = vpop.f32.mrf.mxu0
    %v1381 = vadd.f32 %v1292, %v1380
    %v1382 = vpop.f32.mrf.mxu0
    %v1383 = vadd.f32 %v1294, %v1382
    %1384 = vmatmul.bf16.gmra.mxu0 %v710
    %v1385 = vpop.f32.mrf.mxu0
    %v1386 = vadd.f32 %v1297, %v1385
    %v1387 = vpop.f32.mrf.mxu0
    %v1388 = vadd.f32 %v1299, %v1387
    %1389 = vmatmul.bf16.gmra.mxu0 %v715
    %v1390 = vpop.f32.mrf.mxu0
    %v1391 = vadd.f32 %v1302, %v1390
    %v1392 = vpop.f32.mrf.mxu0
    %v1393 = vadd.f32 %v1304, %v1392
    %1394 = vmatmul.bf16.gmra.mxu0 %v720
    %v1395 = vpop.f32.mrf.mxu0
    %v1396 = vadd.f32 %v1307, %v1395
    %v1397 = vpop.f32.mrf.mxu0
    %v1398 = vadd.f32 %v1309, %v1397
    %1399 = vdwg.mxu0
    %1400 = vmatpush.bf16.msra.mxu0 %v1062
    %1401 = vmatpush.bf16.msra.mxu0 %v1060
    %1402 = vmatpush.bf16.msra.mxu0 %v1058
    %1403 = vmatpush.bf16.msra.mxu0 %v1056
    %1404 = vmatpush.bf16.msra.mxu0 %v1054
    %1405 = vmatpush.bf16.msra.mxu0 %v1052
    %1406 = vmatpush.bf16.msra.mxu0 %v1050
    %1407 = vmatpush.bf16.msra.mxu0 %v1048
    %1408 = vmatmul.bf16.gmra.mxu0 %v646
    %v1409 = vpop.f32.mrf.mxu0
    %v1410 = vadd.f32 %v1321, %v1409
    %v1411 = vpop.f32.mrf.mxu0
    %v1412 = vadd.f32 %v1323, %v1411
    %1413 = vmatmul.bf16.gmra.mxu0 %v651
    %v1414 = vpop.f32.mrf.mxu0
    %v1415 = vadd.f32 %v1326, %v1414
    %v1416 = vpop.f32.mrf.mxu0
    %v1417 = vadd.f32 %v1328, %v1416
    %1418 = vmatmul.bf16.gmra.mxu0 %v656
    %v1419 = vpop.f32.mrf.mxu0
    %v1420 = vadd.f32 %v1331, %v1419
    %v1421 = vpop.f32.mrf.mxu0
    %v1422 = vadd.f32 %v1333, %v1421
    %1423 = vmatmul.bf16.gmra.mxu0 %v661
    %v1424 = vpop.f32.mrf.mxu0
    %v1425 = vadd.f32 %v1336, %v1424
    %v1426 = vpop.f32.mrf.mxu0
    %v1427 = vadd.f32 %v1338, %v1426
    %1428 = vmatmul.bf16.gmra.mxu0 %v666
    %v1429 = vpop.f32.mrf.mxu0
    %v1430 = vadd.f32 %v1341, %v1429
    %v1431 = vpop.f32.mrf.mxu0
    %v1432 = vadd.f32 %v1343, %v1431
    %1433 = vmatmul.bf16.gmra.mxu0 %v671
    %v1434 = vpop.f32.mrf.mxu0
    %v1435 = vadd.f32 %v1346, %v1434
    %v1436 = vpop.f32.mrf.mxu0
    %v1437 = vadd.f32 %v1348, %v1436
    %1438 = vmatmul.bf16.gmra.mxu0 %v676
    %v1439 = vpop.f32.mrf.mxu0
    %v1440 = vadd.f32 %v1351, %v1439
    %v1441 = vpop.f32.mrf.mxu0
    %v1442 = vadd.f32 %v1353, %v1441
    %1443 = vmatmul.bf16.gmra.mxu0 %v681
    %v1444 = vpop.f32.mrf.mxu0
    %v1445 = vadd.f32 %v1356, %v1444
    %v1446 = vpop.f32.mrf.mxu0
    %v1447 = vadd.f32 %v1358, %v1446
    %1448 = vmatmul.bf16.gmra.mxu0 %v686
    %v1449 = vpop.f32.mrf.mxu0
    %v1450 = vadd.f32 %v1361, %v1449
    %v1451 = vpop.f32.mrf.mxu0
    %v1452 = vadd.f32 %v1363, %v1451
    %1453 = vmatmul.bf16.gmra.mxu0 %v691
    %v1454 = vpop.f32.mrf.mxu0
    %v1455 = vadd.f32 %v1366, %v1454
    %v1456 = vpop.f32.mrf.mxu0
    %v1457 = vadd.f32 %v1368, %v1456
    %1458 = vmatmul.bf16.gmra.mxu0 %v696
    %v1459 = vpop.f32.mrf.mxu0
    %v1460 = vadd.f32 %v1371, %v1459
    %v1461 = vpop.f32.mrf.mxu0
    %v1462 = vadd.f32 %v1373, %v1461
    %1463 = vmatmul.bf16.gmra.mxu0 %v701
    %v1464 = vpop.f32.mrf.mxu0
    %v1465 = vadd.f32 %v1376, %v1464
    %v1466 = vpop.f32.mrf.mxu0
    %v1467 = vadd.f32 %v1378, %v1466
    %1468 = vmatmul.bf16.gmra.mxu0 %v706
    %v1469 = vpop.f32.mrf.mxu0
    %v1470 = vadd.f32 %v1381, %v1469
    %v1471 = vpop.f32.mrf.mxu0
    %v1472 = vadd.f32 %v1383, %v1471
    %1473 = vmatmul.bf16.gmra.mxu0 %v711
    %v1474 = vpop.f32.mrf.mxu0
    %v1475 = vadd.f32 %v1386, %v1474
    %v1476 = vpop.f32.mrf.mxu0
    %v1477 = vadd.f32 %v1388, %v1476
    %1478 = vmatmul.bf16.gmra.mxu0 %v716
    %v1479 = vpop.f32.mrf.mxu0
    %v1480 = vadd.f32 %v1391, %v1479
    %v1481 = vpop.f32.mrf.mxu0
    %v1482 = vadd.f32 %v1393, %v1481
    %1483 = vmatmul.bf16.gmra.mxu0 %v721
    %v1484 = vpop.f32.mrf.mxu0
    %v1485 = vadd.f32 %v1396, %v1484
    %v1486 = vpop.f32.mrf.mxu0
    %v1487 = vadd.f32 %v1398, %v1486
    %1488 = vdwg.mxu0
    %1489 = vmatpush.bf16.msra.mxu0 %v1078
    %1490 = vmatpush.bf16.msra.mxu0 %v1076
    %1491 = vmatpush.bf16.msra.mxu0 %v1074
    %1492 = vmatpush.bf16.msra.mxu0 %v1072
    %1493 = vmatpush.bf16.msra.mxu0 %v1070
    %1494 = vmatpush.bf16.msra.mxu0 %v1068
    %1495 = vmatpush.bf16.msra.mxu0 %v1066
    %1496 = vmatpush.bf16.msra.mxu0 %v1064
    %1497 = vmatmul.bf16.gmra.mxu0 %v647
    %v1498 = vpop.f32.mrf.mxu0
    %v1499 = vadd.f32 %v1410, %v1498
    %v1500 = vpop.f32.mrf.mxu0
    %v1501 = vadd.f32 %v1412, %v1500
    %1502 = vmatmul.bf16.gmra.mxu0 %v652
    %v1503 = vpop.f32.mrf.mxu0
    %v1504 = vadd.f32 %v1415, %v1503
    %v1505 = vpop.f32.mrf.mxu0
    %v1506 = vadd.f32 %v1417, %v1505
    %1507 = vmatmul.bf16.gmra.mxu0 %v657
    %v1508 = vpop.f32.mrf.mxu0
    %v1509 = vadd.f32 %v1420, %v1508
    %v1510 = vpop.f32.mrf.mxu0
    %v1511 = vadd.f32 %v1422, %v1510
    %1512 = vmatmul.bf16.gmra.mxu0 %v662
    %v1513 = vpop.f32.mrf.mxu0
    %v1514 = vadd.f32 %v1425, %v1513
    %v1515 = vpop.f32.mrf.mxu0
    %v1516 = vadd.f32 %v1427, %v1515
    %1517 = vmatmul.bf16.gmra.mxu0 %v667
    %v1518 = vpop.f32.mrf.mxu0
    %v1519 = vadd.f32 %v1430, %v1518
    %v1520 = vpop.f32.mrf.mxu0
    %v1521 = vadd.f32 %v1432, %v1520
    %1522 = vmatmul.bf16.gmra.mxu0 %v672
    %v1523 = vpop.f32.mrf.mxu0
    %v1524 = vadd.f32 %v1435, %v1523
    %v1525 = vpop.f32.mrf.mxu0
    %v1526 = vadd.f32 %v1437, %v1525
    %1527 = vmatmul.bf16.gmra.mxu0 %v677
    %v1528 = vpop.f32.mrf.mxu0
    %v1529 = vadd.f32 %v1440, %v1528
    %v1530 = vpop.f32.mrf.mxu0
    %v1531 = vadd.f32 %v1442, %v1530
    %1532 = vmatmul.bf16.gmra.mxu0 %v682
    %v1533 = vpop.f32.mrf.mxu0
    %v1534 = vadd.f32 %v1445, %v1533
    %v1535 = vpop.f32.mrf.mxu0
    %v1536 = vadd.f32 %v1447, %v1535
    %1537 = vmatmul.bf16.gmra.mxu0 %v687
    %v1538 = vpop.f32.mrf.mxu0
    %v1539 = vadd.f32 %v1450, %v1538
    %v1540 = vpop.f32.mrf.mxu0
    %v1541 = vadd.f32 %v1452, %v1540
    %1542 = vmatmul.bf16.gmra.mxu0 %v692
    %v1543 = vpop.f32.mrf.mxu0
    %v1544 = vadd.f32 %v1455, %v1543
    %v1545 = vpop.f32.mrf.mxu0
    %v1546 = vadd.f32 %v1457, %v1545
    %1547 = vmatmul.bf16.gmra.mxu0 %v697
    %v1548 = vpop.f32.mrf.mxu0
    %v1549 = vadd.f32 %v1460, %v1548
    %v1550 = vpop.f32.mrf.mxu0
    %v1551 = vadd.f32 %v1462, %v1550
    %1552 = vmatmul.bf16.gmra.mxu0 %v702
    %v1553 = vpop.f32.mrf.mxu0
    %v1554 = vadd.f32 %v1465, %v1553
    %v1555 = vpop.f32.mrf.mxu0
    %v1556 = vadd.f32 %v1467, %v1555
    %1557 = vmatmul.bf16.gmra.mxu0 %v707
    %v1558 = vpop.f32.mrf.mxu0
    %v1559 = vadd.f32 %v1470, %v1558
    %v1560 = vpop.f32.mrf.mxu0
    %v1561 = vadd.f32 %v1472, %v1560
    %1562 = vmatmul.bf16.gmra.mxu0 %v712
    %v1563 = vpop.f32.mrf.mxu0
    %v1564 = vadd.f32 %v1475, %v1563
    %v1565 = vpop.f32.mrf.mxu0
    %v1566 = vadd.f32 %v1477, %v1565
    %1567 = vmatmul.bf16.gmra.mxu0 %v717
    %v1568 = vpop.f32.mrf.mxu0
    %v1569 = vadd.f32 %v1480, %v1568
    %v1570 = vpop.f32.mrf.mxu0
    %v1571 = vadd.f32 %v1482, %v1570
    %1572 = vmatmul.bf16.gmra.mxu0 %v722
    %v1573 = vpop.f32.mrf.mxu0
    %v1574 = vadd.f32 %v1485, %v1573
    %v1575 = vpop.f32.mrf.mxu0
    %v1576 = vadd.f32 %v1487, %v1575
    %1577 = vdwg.mxu0
    %1578 = vmatpush.bf16.msra.mxu0 0
    %1579 = vmatpush.bf16.msra.mxu0 0
    %1580 = vmatpush.bf16.msra.mxu0 %v1217
    %1581 = vmatpush.bf16.msra.mxu0 %v1088
    %1582 = vmatpush.bf16.msra.mxu0 %v1086
    %1583 = vmatpush.bf16.msra.mxu0 %v1084
    %1584 = vmatpush.bf16.msra.mxu0 %v1082
    %1585 = vmatpush.bf16.msra.mxu0 %v1080
    %1586 = vmatmul.bf16.gmra.mxu0 %v1168
    %v1587 = vpop.f32.mrf.mxu0
    %v1588 = vadd.f32 %v1499, %v1587
    %v1589 = vpop.f32.mrf.mxu0
    %v1590 = vadd.f32 %v1501, %v1589
    %1591 = vmatmul.bf16.gmra.mxu0 %v1171
    %v1592 = vpop.f32.mrf.mxu0
    %v1593 = vadd.f32 %v1504, %v1592
    %v1594 = vpop.f32.mrf.mxu0
    %v1595 = vadd.f32 %v1506, %v1594
    %1596 = vmatmul.bf16.gmra.mxu0 %v1174
    %v1597 = vpop.f32.mrf.mxu0
    %v1598 = vadd.f32 %v1509, %v1597
    %v1599 = vpop.f32.mrf.mxu0
    %v1600 = vadd.f32 %v1511, %v1599
    %1601 = vmatmul.bf16.gmra.mxu0 %v1177
    %v1602 = vpop.f32.mrf.mxu0
    %v1603 = vadd.f32 %v1514, %v1602
    %v1604 = vpop.f32.mrf.mxu0
    %v1605 = vadd.f32 %v1516, %v1604
    %1606 = vmatmul.bf16.gmra.mxu0 %v1180
    %v1607 = vpop.f32.mrf.mxu0
    %v1608 = vadd.f32 %v1519, %v1607
    %v1609 = vpop.f32.mrf.mxu0
    %v1610 = vadd.f32 %v1521, %v1609
    %1611 = vmatmul.bf16.gmra.mxu0 %v1183
    %v1612 = vpop.f32.mrf.mxu0
    %v1613 = vadd.f32 %v1524, %v1612
    %v1614 = vpop.f32.mrf.mxu0
    %v1615 = vadd.f32 %v1526, %v1614
    %1616 = vmatmul.bf16.gmra.mxu0 %v1186
    %v1617 = vpop.f32.mrf.mxu0
    %v1618 = vadd.f32 %v1529, %v1617
    %v1619 = vpop.f32.mrf.mxu0
    %v1620 = vadd.f32 %v1531, %v1619
    %1621 = vmatmul.bf16.gmra.mxu0 %v1189
    %v1622 = vpop.f32.mrf.mxu0
    %v1623 = vadd.f32 %v1534, %v1622
    %v1624 = vpop.f32.mrf.mxu0
    %v1625 = vadd.f32 %v1536, %v1624
    %1626 = vmatmul.bf16.gmra.mxu0 %v1192
    %v1627 = vpop.f32.mrf.mxu0
    %v1628 = vadd.f32 %v1539, %v1627
    %v1629 = vpop.f32.mrf.mxu0
    %v1630 = vadd.f32 %v1541, %v1629
    %1631 = vmatmul.bf16.gmra.mxu0 %v1195
    %v1632 = vpop.f32.mrf.mxu0
    %v1633 = vadd.f32 %v1544, %v1632
    %v1634 = vpop.f32.mrf.mxu0
    %v1635 = vadd.f32 %v1546, %v1634
    %1636 = vmatmul.bf16.gmra.mxu0 %v1198
    %v1637 = vpop.f32.mrf.mxu0
    %v1638 = vadd.f32 %v1549, %v1637
    %v1639 = vpop.f32.mrf.mxu0
    %v1640 = vadd.f32 %v1551, %v1639
    %1641 = vmatmul.bf16.gmra.mxu0 %v1201
    %v1642 = vpop.f32.mrf.mxu0
    %v1643 = vadd.f32 %v1554, %v1642
    %v1644 = vpop.f32.mrf.mxu0
    %v1645 = vadd.f32 %v1556, %v1644
    %1646 = vmatmul.bf16.gmra.mxu0 %v1204
    %v1647 = vpop.f32.mrf.mxu0
    %v1648 = vadd.f32 %v1559, %v1647
    %v1649 = vpop.f32.mrf.mxu0
    %v1650 = vadd.f32 %v1561, %v1649
    %1651 = vmatmul.bf16.gmra.mxu0 %v1207
    %v1652 = vpop.f32.mrf.mxu0
    %v1653 = vadd.f32 %v1564, %v1652
    %v1654 = vpop.f32.mrf.mxu0
    %v1655 = vadd.f32 %v1566, %v1654
    %1656 = vmatmul.bf16.gmra.mxu0 %v1210
    %v1657 = vpop.f32.mrf.mxu0
    %v1658 = vadd.f32 %v1569, %v1657
    %v1659 = vpop.f32.mrf.mxu0
    %v1660 = vadd.f32 %v1571, %v1659
    %1661 = vmatmul.bf16.gmra.mxu0 %v1213
    %v1662 = vpop.f32.mrf.mxu0
    %v1663 = vadd.f32 %v1574, %v1662
    %v1664 = vpop.f32.mrf.mxu0
    %v1665 = vadd.f32 %v1576, %v1664
    %1666 = vdwg.mxu0
    %1667 = vmatpush.bf16.msra.mxu0 %v1031
    %1668 = vmatpush.bf16.msra.mxu0 %v1029
    %1669 = vmatpush.bf16.msra.mxu0 %v1027
    %1670 = vmatpush.bf16.msra.mxu0 %v1025
    %1671 = vmatpush.bf16.msra.mxu0 %v1023
    %1672 = vmatpush.bf16.msra.mxu0 %v1021
    %1673 = vmatpush.bf16.msra.mxu0 %v1019
    %1674 = vmatpush.bf16.msra.mxu0 %v1017
    %1675 = vmatmul.bf16.gmra.mxu0 %v644
    %v1676 = vpop.f32.mrf.mxu0
    %v1677 = vadd.f32 %v385, %v1676
    %v1678 = vpop.f32.mrf.mxu0
    %v1679 = vadd.f32 %v385, %v1678
    %1680 = vmatmul.bf16.gmra.mxu0 %v649
    %v1681 = vpop.f32.mrf.mxu0
    %v1682 = vadd.f32 %v385, %v1681
    %v1683 = vpop.f32.mrf.mxu0
    %v1684 = vadd.f32 %v385, %v1683
    %1685 = vmatmul.bf16.gmra.mxu0 %v654
    %v1686 = vpop.f32.mrf.mxu0
    %v1687 = vadd.f32 %v385, %v1686
    %v1688 = vpop.f32.mrf.mxu0
    %v1689 = vadd.f32 %v385, %v1688
    %1690 = vmatmul.bf16.gmra.mxu0 %v659
    %v1691 = vpop.f32.mrf.mxu0
    %v1692 = vadd.f32 %v385, %v1691
    %v1693 = vpop.f32.mrf.mxu0
    %v1694 = vadd.f32 %v385, %v1693
    %1695 = vmatmul.bf16.gmra.mxu0 %v664
    %v1696 = vpop.f32.mrf.mxu0
    %v1697 = vadd.f32 %v385, %v1696
    %v1698 = vpop.f32.mrf.mxu0
    %v1699 = vadd.f32 %v385, %v1698
    %1700 = vmatmul.bf16.gmra.mxu0 %v669
    %v1701 = vpop.f32.mrf.mxu0
    %v1702 = vadd.f32 %v385, %v1701
    %v1703 = vpop.f32.mrf.mxu0
    %v1704 = vadd.f32 %v385, %v1703
    %1705 = vmatmul.bf16.gmra.mxu0 %v674
    %v1706 = vpop.f32.mrf.mxu0
    %v1707 = vadd.f32 %v385, %v1706
    %v1708 = vpop.f32.mrf.mxu0
    %v1709 = vadd.f32 %v385, %v1708
    %1710 = vmatmul.bf16.gmra.mxu0 %v679
    %v1711 = vpop.f32.mrf.mxu0
    %v1712 = vadd.f32 %v385, %v1711
    %v1713 = vpop.f32.mrf.mxu0
    %v1714 = vadd.f32 %v385, %v1713
    %1715 = vmatmul.bf16.gmra.mxu0 %v684
    %v1716 = vpop.f32.mrf.mxu0
    %v1717 = vadd.f32 %v385, %v1716
    %v1718 = vpop.f32.mrf.mxu0
    %v1719 = vadd.f32 %v385, %v1718
    %1720 = vmatmul.bf16.gmra.mxu0 %v689
    %v1721 = vpop.f32.mrf.mxu0
    %v1722 = vadd.f32 %v385, %v1721
    %v1723 = vpop.f32.mrf.mxu0
    %v1724 = vadd.f32 %v385, %v1723
    %1725 = vmatmul.bf16.gmra.mxu0 %v694
    %v1726 = vpop.f32.mrf.mxu0
    %v1727 = vadd.f32 %v385, %v1726
    %v1728 = vpop.f32.mrf.mxu0
    %v1729 = vadd.f32 %v385, %v1728
    %1730 = vmatmul.bf16.gmra.mxu0 %v699
    %v1731 = vpop.f32.mrf.mxu0
    %v1732 = vadd.f32 %v385, %v1731
    %v1733 = vpop.f32.mrf.mxu0
    %v1734 = vadd.f32 %v385, %v1733
    %1735 = vmatmul.bf16.gmra.mxu0 %v704
    %v1736 = vpop.f32.mrf.mxu0
    %v1737 = vadd.f32 %v385, %v1736
    %v1738 = vpop.f32.mrf.mxu0
    %v1739 = vadd.f32 %v385, %v1738
    %1740 = vmatmul.bf16.gmra.mxu0 %v709
    %v1741 = vpop.f32.mrf.mxu0
    %v1742 = vadd.f32 %v385, %v1741
    %v1743 = vpop.f32.mrf.mxu0
    %v1744 = vadd.f32 %v385, %v1743
    %1745 = vmatmul.bf16.gmra.mxu0 %v714
    %v1746 = vpop.f32.mrf.mxu0
    %v1747 = vadd.f32 %v385, %v1746
    %v1748 = vpop.f32.mrf.mxu0
    %v1749 = vadd.f32 %v385, %v1748
    %1750 = vmatmul.bf16.gmra.mxu0 %v719
    %v1751 = vpop.f32.mrf.mxu0
    %v1752 = vadd.f32 %v385, %v1751
    %v1753 = vpop.f32.mrf.mxu0
    %v1754 = vadd.f32 %v385, %v1753
    %1755 = vdwg.mxu0
    %1756 = vmatpush.bf16.msra.mxu0 %v1047
    %1757 = vmatpush.bf16.msra.mxu0 %v1045
    %1758 = vmatpush.bf16.msra.mxu0 %v1043
    %1759 = vmatpush.bf16.msra.mxu0 %v1041
    %1760 = vmatpush.bf16.msra.mxu0 %v1039
    %1761 = vmatpush.bf16.msra.mxu0 %v1037
    %1762 = vmatpush.bf16.msra.mxu0 %v1035
    %1763 = vmatpush.bf16.msra.mxu0 %v1033
    %1764 = vmatmul.bf16.gmra.mxu0 %v645
    %v1765 = vpop.f32.mrf.mxu0
    %v1766 = vadd.f32 %v1677, %v1765
    %v1767 = vpop.f32.mrf.mxu0
    %v1768 = vadd.f32 %v1679, %v1767
    %1769 = vmatmul.bf16.gmra.mxu0 %v650
    %v1770 = vpop.f32.mrf.mxu0
    %v1771 = vadd.f32 %v1682, %v1770
    %v1772 = vpop.f32.mrf.mxu0
    %v1773 = vadd.f32 %v1684, %v1772
    %1774 = vmatmul.bf16.gmra.mxu0 %v655
    %v1775 = vpop.f32.mrf.mxu0
    %v1776 = vadd.f32 %v1687, %v1775
    %v1777 = vpop.f32.mrf.mxu0
    %v1778 = vadd.f32 %v1689, %v1777
    %1779 = vmatmul.bf16.gmra.mxu0 %v660
    %v1780 = vpop.f32.mrf.mxu0
    %v1781 = vadd.f32 %v1692, %v1780
    %v1782 = vpop.f32.mrf.mxu0
    %v1783 = vadd.f32 %v1694, %v1782
    %1784 = vmatmul.bf16.gmra.mxu0 %v665
    %v1785 = vpop.f32.mrf.mxu0
    %v1786 = vadd.f32 %v1697, %v1785
    %v1787 = vpop.f32.mrf.mxu0
    %v1788 = vadd.f32 %v1699, %v1787
    %1789 = vmatmul.bf16.gmra.mxu0 %v670
    %v1790 = vpop.f32.mrf.mxu0
    %v1791 = vadd.f32 %v1702, %v1790
    %v1792 = vpop.f32.mrf.mxu0
    %v1793 = vadd.f32 %v1704, %v1792
    %1794 = vmatmul.bf16.gmra.mxu0 %v675
    %v1795 = vpop.f32.mrf.mxu0
    %v1796 = vadd.f32 %v1707, %v1795
    %v1797 = vpop.f32.mrf.mxu0
    %v1798 = vadd.f32 %v1709, %v1797
    %1799 = vmatmul.bf16.gmra.mxu0 %v680
    %v1800 = vpop.f32.mrf.mxu0
    %v1801 = vadd.f32 %v1712, %v1800
    %v1802 = vpop.f32.mrf.mxu0
    %v1803 = vadd.f32 %v1714, %v1802
    %1804 = vmatmul.bf16.gmra.mxu0 %v685
    %v1805 = vpop.f32.mrf.mxu0
    %v1806 = vadd.f32 %v1717, %v1805
    %v1807 = vpop.f32.mrf.mxu0
    %v1808 = vadd.f32 %v1719, %v1807
    %1809 = vmatmul.bf16.gmra.mxu0 %v690
    %v1810 = vpop.f32.mrf.mxu0
    %v1811 = vadd.f32 %v1722, %v1810
    %v1812 = vpop.f32.mrf.mxu0
    %v1813 = vadd.f32 %v1724, %v1812
    %1814 = vmatmul.bf16.gmra.mxu0 %v695
    %v1815 = vpop.f32.mrf.mxu0
    %v1816 = vadd.f32 %v1727, %v1815
    %v1817 = vpop.f32.mrf.mxu0
    %v1818 = vadd.f32 %v1729, %v1817
    %1819 = vmatmul.bf16.gmra.mxu0 %v700
    %v1820 = vpop.f32.mrf.mxu0
    %v1821 = vadd.f32 %v1732, %v1820
    %v1822 = vpop.f32.mrf.mxu0
    %v1823 = vadd.f32 %v1734, %v1822
    %1824 = vmatmul.bf16.gmra.mxu0 %v705
    %v1825 = vpop.f32.mrf.mxu0
    %v1826 = vadd.f32 %v1737, %v1825
    %v1827 = vpop.f32.mrf.mxu0
    %v1828 = vadd.f32 %v1739, %v1827
    %1829 = vmatmul.bf16.gmra.mxu0 %v710
    %v1830 = vpop.f32.mrf.mxu0
    %v1831 = vadd.f32 %v1742, %v1830
    %v1832 = vpop.f32.mrf.mxu0
    %v1833 = vadd.f32 %v1744, %v1832
    %1834 = vmatmul.bf16.gmra.mxu0 %v715
    %v1835 = vpop.f32.mrf.mxu0
    %v1836 = vadd.f32 %v1747, %v1835
    %v1837 = vpop.f32.mrf.mxu0
    %v1838 = vadd.f32 %v1749, %v1837
    %1839 = vmatmul.bf16.gmra.mxu0 %v720
    %v1840 = vpop.f32.mrf.mxu0
    %v1841 = vadd.f32 %v1752, %v1840
    %v1842 = vpop.f32.mrf.mxu0
    %v1843 = vadd.f32 %v1754, %v1842
    %1844 = vdwg.mxu0
    %1845 = vmatpush.bf16.msra.mxu0 %v1063
    %1846 = vmatpush.bf16.msra.mxu0 %v1061
    %1847 = vmatpush.bf16.msra.mxu0 %v1059
    %1848 = vmatpush.bf16.msra.mxu0 %v1057
    %1849 = vmatpush.bf16.msra.mxu0 %v1055
    %1850 = vmatpush.bf16.msra.mxu0 %v1053
    %1851 = vmatpush.bf16.msra.mxu0 %v1051
    %1852 = vmatpush.bf16.msra.mxu0 %v1049
    %1853 = vmatmul.bf16.gmra.mxu0 %v646
    %v1854 = vpop.f32.mrf.mxu0
    %v1855 = vadd.f32 %v1766, %v1854
    %v1856 = vpop.f32.mrf.mxu0
    %v1857 = vadd.f32 %v1768, %v1856
    %1858 = vmatmul.bf16.gmra.mxu0 %v651
    %v1859 = vpop.f32.mrf.mxu0
    %v1860 = vadd.f32 %v1771, %v1859
    %v1861 = vpop.f32.mrf.mxu0
    %v1862 = vadd.f32 %v1773, %v1861
    %1863 = vmatmul.bf16.gmra.mxu0 %v656
    %v1864 = vpop.f32.mrf.mxu0
    %v1865 = vadd.f32 %v1776, %v1864
    %v1866 = vpop.f32.mrf.mxu0
    %v1867 = vadd.f32 %v1778, %v1866
    %1868 = vmatmul.bf16.gmra.mxu0 %v661
    %v1869 = vpop.f32.mrf.mxu0
    %v1870 = vadd.f32 %v1781, %v1869
    %v1871 = vpop.f32.mrf.mxu0
    %v1872 = vadd.f32 %v1783, %v1871
    %1873 = vmatmul.bf16.gmra.mxu0 %v666
    %v1874 = vpop.f32.mrf.mxu0
    %v1875 = vadd.f32 %v1786, %v1874
    %v1876 = vpop.f32.mrf.mxu0
    %v1877 = vadd.f32 %v1788, %v1876
    %1878 = vmatmul.bf16.gmra.mxu0 %v671
    %v1879 = vpop.f32.mrf.mxu0
    %v1880 = vadd.f32 %v1791, %v1879
    %v1881 = vpop.f32.mrf.mxu0
    %v1882 = vadd.f32 %v1793, %v1881
    %1883 = vmatmul.bf16.gmra.mxu0 %v676
    %v1884 = vpop.f32.mrf.mxu0
    %v1885 = vadd.f32 %v1796, %v1884
    %v1886 = vpop.f32.mrf.mxu0
    %v1887 = vadd.f32 %v1798, %v1886
    %1888 = vmatmul.bf16.gmra.mxu0 %v681
    %v1889 = vpop.f32.mrf.mxu0
    %v1890 = vadd.f32 %v1801, %v1889
    %v1891 = vpop.f32.mrf.mxu0
    %v1892 = vadd.f32 %v1803, %v1891
    %1893 = vmatmul.bf16.gmra.mxu0 %v686
    %v1894 = vpop.f32.mrf.mxu0
    %v1895 = vadd.f32 %v1806, %v1894
    %v1896 = vpop.f32.mrf.mxu0
    %v1897 = vadd.f32 %v1808, %v1896
    %1898 = vmatmul.bf16.gmra.mxu0 %v691
    %v1899 = vpop.f32.mrf.mxu0
    %v1900 = vadd.f32 %v1811, %v1899
    %v1901 = vpop.f32.mrf.mxu0
    %v1902 = vadd.f32 %v1813, %v1901
    %1903 = vmatmul.bf16.gmra.mxu0 %v696
    %v1904 = vpop.f32.mrf.mxu0
    %v1905 = vadd.f32 %v1816, %v1904
    %v1906 = vpop.f32.mrf.mxu0
    %v1907 = vadd.f32 %v1818, %v1906
    %1908 = vmatmul.bf16.gmra.mxu0 %v701
    %v1909 = vpop.f32.mrf.mxu0
    %v1910 = vadd.f32 %v1821, %v1909
    %v1911 = vpop.f32.mrf.mxu0
    %v1912 = vadd.f32 %v1823, %v1911
    %1913 = vmatmul.bf16.gmra.mxu0 %v706
    %v1914 = vpop.f32.mrf.mxu0
    %v1915 = vadd.f32 %v1826, %v1914
    %v1916 = vpop.f32.mrf.mxu0
    %v1917 = vadd.f32 %v1828, %v1916
    %1918 = vmatmul.bf16.gmra.mxu0 %v711
    %v1919 = vpop.f32.mrf.mxu0
    %v1920 = vadd.f32 %v1831, %v1919
    %v1921 = vpop.f32.mrf.mxu0
    %v1922 = vadd.f32 %v1833, %v1921
    %1923 = vmatmul.bf16.gmra.mxu0 %v716
    %v1924 = vpop.f32.mrf.mxu0
    %v1925 = vadd.f32 %v1836, %v1924
    %v1926 = vpop.f32.mrf.mxu0
    %v1927 = vadd.f32 %v1838, %v1926
    %1928 = vmatmul.bf16.gmra.mxu0 %v721
    %v1929 = vpop.f32.mrf.mxu0
    %v1930 = vadd.f32 %v1841, %v1929
    %v1931 = vpop.f32.mrf.mxu0
    %v1932 = vadd.f32 %v1843, %v1931
    %1933 = vdwg.mxu0
    %1934 = vmatpush.bf16.msra.mxu0 %v1079
    %1935 = vmatpush.bf16.msra.mxu0 %v1077
    %1936 = vmatpush.bf16.msra.mxu0 %v1075
    %1937 = vmatpush.bf16.msra.mxu0 %v1073
    %1938 = vmatpush.bf16.msra.mxu0 %v1071
    %1939 = vmatpush.bf16.msra.mxu0 %v1069
    %1940 = vmatpush.bf16.msra.mxu0 %v1067
    %1941 = vmatpush.bf16.msra.mxu0 %v1065
    %1942 = vmatmul.bf16.gmra.mxu0 %v647
    %v1943 = vpop.f32.mrf.mxu0
    %v1944 = vadd.f32 %v1855, %v1943
    %v1945 = vpop.f32.mrf.mxu0
    %v1946 = vadd.f32 %v1857, %v1945
    %1947 = vmatmul.bf16.gmra.mxu0 %v652
    %v1948 = vpop.f32.mrf.mxu0
    %v1949 = vadd.f32 %v1860, %v1948
    %v1950 = vpop.f32.mrf.mxu0
    %v1951 = vadd.f32 %v1862, %v1950
    %1952 = vmatmul.bf16.gmra.mxu0 %v657
    %v1953 = vpop.f32.mrf.mxu0
    %v1954 = vadd.f32 %v1865, %v1953
    %v1955 = vpop.f32.mrf.mxu0
    %v1956 = vadd.f32 %v1867, %v1955
    %1957 = vmatmul.bf16.gmra.mxu0 %v662
    %v1958 = vpop.f32.mrf.mxu0
    %v1959 = vadd.f32 %v1870, %v1958
    %v1960 = vpop.f32.mrf.mxu0
    %v1961 = vadd.f32 %v1872, %v1960
    %1962 = vmatmul.bf16.gmra.mxu0 %v667
    %v1963 = vpop.f32.mrf.mxu0
    %v1964 = vadd.f32 %v1875, %v1963
    %v1965 = vpop.f32.mrf.mxu0
    %v1966 = vadd.f32 %v1877, %v1965
    %1967 = vmatmul.bf16.gmra.mxu0 %v672
    %v1968 = vpop.f32.mrf.mxu0
    %v1969 = vadd.f32 %v1880, %v1968
    %v1970 = vpop.f32.mrf.mxu0
    %v1971 = vadd.f32 %v1882, %v1970
    %1972 = vmatmul.bf16.gmra.mxu0 %v677
    %v1973 = vpop.f32.mrf.mxu0
    %v1974 = vadd.f32 %v1885, %v1973
    %v1975 = vpop.f32.mrf.mxu0
    %v1976 = vadd.f32 %v1887, %v1975
    %1977 = vmatmul.bf16.gmra.mxu0 %v682
    %v1978 = vpop.f32.mrf.mxu0
    %v1979 = vadd.f32 %v1890, %v1978
    %v1980 = vpop.f32.mrf.mxu0
    %v1981 = vadd.f32 %v1892, %v1980
    %1982 = vmatmul.bf16.gmra.mxu0 %v687
    %v1983 = vpop.f32.mrf.mxu0
    %v1984 = vadd.f32 %v1895, %v1983
    %v1985 = vpop.f32.mrf.mxu0
    %v1986 = vadd.f32 %v1897, %v1985
    %1987 = vmatmul.bf16.gmra.mxu0 %v692
    %v1988 = vpop.f32.mrf.mxu0
    %v1989 = vadd.f32 %v1900, %v1988
    %v1990 = vpop.f32.mrf.mxu0
    %v1991 = vadd.f32 %v1902, %v1990
    %1992 = vmatmul.bf16.gmra.mxu0 %v697
    %v1993 = vpop.f32.mrf.mxu0
    %v1994 = vadd.f32 %v1905, %v1993
    %v1995 = vpop.f32.mrf.mxu0
    %v1996 = vadd.f32 %v1907, %v1995
    %1997 = vmatmul.bf16.gmra.mxu0 %v702
    %v1998 = vpop.f32.mrf.mxu0
    %v1999 = vadd.f32 %v1910, %v1998
    %v2000 = vpop.f32.mrf.mxu0
    %v2001 = vadd.f32 %v1912, %v2000
    %2002 = vmatmul.bf16.gmra.mxu0 %v707
    %v2003 = vpop.f32.mrf.mxu0
    %v2004 = vadd.f32 %v1915, %v2003
    %v2005 = vpop.f32.mrf.mxu0
    %v2006 = vadd.f32 %v1917, %v2005
    %2007 = vmatmul.bf16.gmra.mxu0 %v712
    %v2008 = vpop.f32.mrf.mxu0
    %v2009 = vadd.f32 %v1920, %v2008
    %v2010 = vpop.f32.mrf.mxu0
    %v2011 = vadd.f32 %v1922, %v2010
    %2012 = vmatmul.bf16.gmra.mxu0 %v717
    %v2013 = vpop.f32.mrf.mxu0
    %v2014 = vadd.f32 %v1925, %v2013
    %v2015 = vpop.f32.mrf.mxu0
    %v2016 = vadd.f32 %v1927, %v2015
    %2017 = vmatmul.bf16.gmra.mxu0 %v722
    %v2018 = vpop.f32.mrf.mxu0
    %v2019 = vadd.f32 %v1930, %v2018
    %v2020 = vpop.f32.mrf.mxu0
    %v2021 = vadd.f32 %v1932, %v2020
    %2022 = vdwg.mxu0
    %2023 = vmatpush.bf16.msra.mxu0 0
    %2024 = vmatpush.bf16.msra.mxu0 0
    %2025 = vmatpush.bf16.msra.mxu0 %v1220
    %2026 = vmatpush.bf16.msra.mxu0 %v1089
    %2027 = vmatpush.bf16.msra.mxu0 %v1087
    %2028 = vmatpush.bf16.msra.mxu0 %v1085
    %2029 = vmatpush.bf16.msra.mxu0 %v1083
    %2030 = vmatpush.bf16.msra.mxu0 %v1081
    %2031 = vmatmul.bf16.gmra.mxu0 %v1168
    %v2032 = vpop.f32.mrf.mxu0
    %v2033 = vadd.f32 %v1944, %v2032
    %v2034 = vpop.f32.mrf.mxu0
    %v2035 = vadd.f32 %v1946, %v2034
    %2036 = vmatmul.bf16.gmra.mxu0 %v1171
    %v2037 = vpop.f32.mrf.mxu0
    %v2038 = vadd.f32 %v1949, %v2037
    %v2039 = vpop.f32.mrf.mxu0
    %v2040 = vadd.f32 %v1951, %v2039
    %2041 = vmatmul.bf16.gmra.mxu0 %v1174
    %v2042 = vpop.f32.mrf.mxu0
    %v2043 = vadd.f32 %v1954, %v2042
    %v2044 = vpop.f32.mrf.mxu0
    %v2045 = vadd.f32 %v1956, %v2044
    %2046 = vmatmul.bf16.gmra.mxu0 %v1177
    %v2047 = vpop.f32.mrf.mxu0
    %v2048 = vadd.f32 %v1959, %v2047
    %v2049 = vpop.f32.mrf.mxu0
    %v2050 = vadd.f32 %v1961, %v2049
    %2051 = vmatmul.bf16.gmra.mxu0 %v1180
    %v2052 = vpop.f32.mrf.mxu0
    %v2053 = vadd.f32 %v1964, %v2052
    %v2054 = vpop.f32.mrf.mxu0
    %v2055 = vadd.f32 %v1966, %v2054
    %2056 = vmatmul.bf16.gmra.mxu0 %v1183
    %v2057 = vpop.f32.mrf.mxu0
    %v2058 = vadd.f32 %v1969, %v2057
    %v2059 = vpop.f32.mrf.mxu0
    %v2060 = vadd.f32 %v1971, %v2059
    %2061 = vmatmul.bf16.gmra.mxu0 %v1186
    %v2062 = vpop.f32.mrf.mxu0
    %v2063 = vadd.f32 %v1974, %v2062
    %v2064 = vpop.f32.mrf.mxu0
    %v2065 = vadd.f32 %v1976, %v2064
    %2066 = vmatmul.bf16.gmra.mxu0 %v1189
    %v2067 = vpop.f32.mrf.mxu0
    %v2068 = vadd.f32 %v1979, %v2067
    %v2069 = vpop.f32.mrf.mxu0
    %v2070 = vadd.f32 %v1981, %v2069
    %2071 = vmatmul.bf16.gmra.mxu0 %v1192
    %v2072 = vpop.f32.mrf.mxu0
    %v2073 = vadd.f32 %v1984, %v2072
    %v2074 = vpop.f32.mrf.mxu0
    %v2075 = vadd.f32 %v1986, %v2074
    %2076 = vmatmul.bf16.gmra.mxu0 %v1195
    %v2077 = vpop.f32.mrf.mxu0
    %v2078 = vadd.f32 %v1989, %v2077
    %v2079 = vpop.f32.mrf.mxu0
    %v2080 = vadd.f32 %v1991, %v2079
    %2081 = vmatmul.bf16.gmra.mxu0 %v1198
    %v2082 = vpop.f32.mrf.mxu0
    %v2083 = vadd.f32 %v1994, %v2082
    %v2084 = vpop.f32.mrf.mxu0
    %v2085 = vadd.f32 %v1996, %v2084
    %2086 = vmatmul.bf16.gmra.mxu0 %v1201
    %v2087 = vpop.f32.mrf.mxu0
    %v2088 = vadd.f32 %v1999, %v2087
    %v2089 = vpop.f32.mrf.mxu0
    %v2090 = vadd.f32 %v2001, %v2089
    %2091 = vmatmul.bf16.gmra.mxu0 %v1204
    %v2092 = vpop.f32.mrf.mxu0
    %v2093 = vadd.f32 %v2004, %v2092
    %v2094 = vpop.f32.mrf.mxu0
    %v2095 = vadd.f32 %v2006, %v2094
    %2096 = vmatmul.bf16.gmra.mxu0 %v1207
    %v2097 = vpop.f32.mrf.mxu0
    %v2098 = vadd.f32 %v2009, %v2097
    %v2099 = vpop.f32.mrf.mxu0
    %v2100 = vadd.f32 %v2011, %v2099
    %2101 = vmatmul.bf16.gmra.mxu0 %v1210
    %v2102 = vpop.f32.mrf.mxu0
    %v2103 = vadd.f32 %v2014, %v2102
    %v2104 = vpop.f32.mrf.mxu0
    %v2105 = vadd.f32 %v2016, %v2104
    %2106 = vmatmul.bf16.gmra.mxu0 %v1213
    %v2107 = vpop.f32.mrf.mxu0
    %v2108 = vadd.f32 %v2019, %v2107
    %v2109 = vpop.f32.mrf.mxu0
    %v2110 = vadd.f32 %v2021, %v2109
    %2111 = vdwg.mxu0
    %v2112 = vmax.f32 %v1588, 0.0
    %v2113 = vmax.f32 %v2033, 0.0
    %v2114 = vmax.f32 %v1590, 0.0
    %v2115 = vmax.f32 %v2035, 0.0
    %v2116 = vmax.f32 %v1593, 0.0
    %v2117 = vmax.f32 %v2038, 0.0
    %v2118 = vmax.f32 %v1595, 0.0
    %v2119 = vmax.f32 %v2040, 0.0
    %v2120 = vmax.f32 %v1598, 0.0
    %v2121 = vmax.f32 %v2043, 0.0
    %v2122 = vmax.f32 %v1600, 0.0
    %v2123 = vmax.f32 %v2045, 0.0
    %v2124 = vmax.f32 %v1603, 0.0
    %v2125 = vmax.f32 %v2048, 0.0
    %v2126 = vmax.f32 %v1605, 0.0
    %v2127 = vmax.f32 %v2050, 0.0
    %v2128 = vmax.f32 %v1608, 0.0
    %v2129 = vmax.f32 %v2053, 0.0
    %v2130 = vmax.f32 %v1610, 0.0
    %v2131 = vmax.f32 %v2055, 0.0
    %v2132 = vmax.f32 %v1613, 0.0
    %v2133 = vmax.f32 %v2058, 0.0
    %v2134 = vmax.f32 %v1615, 0.0
    %v2135 = vmax.f32 %v2060, 0.0
    %v2136 = vmax.f32 %v1618, 0.0
    %v2137 = vmax.f32 %v2063, 0.0
    %v2138 = vmax.f32 %v1620, 0.0
    %v2139 = vmax.f32 %v2065, 0.0
    %v2140 = vmax.f32 %v1623, 0.0
    %v2141 = vmax.f32 %v2068, 0.0
    %v2142 = vmax.f32 %v1625, 0.0
    %v2143 = vmax.f32 %v2070, 0.0
    %v2144 = vmax.f32 %v1628, 0.0
    %v2145 = vmax.f32 %v2073, 0.0
    %v2146 = vmax.f32 %v1630, 0.0
    %v2147 = vmax.f32 %v2075, 0.0
    %v2148 = vmax.f32 %v1633, 0.0
    %v2149 = vmax.f32 %v2078, 0.0
    %v2150 = vmax.f32 %v1635, 0.0
    %v2151 = vmax.f32 %v2080, 0.0
    %v2152 = vmax.f32 %v1638, 0.0
    %v2153 = vmax.f32 %v2083, 0.0
    %v2154 = vmax.f32 %v1640, 0.0
    %v2155 = vmax.f32 %v2085, 0.0
    %v2156 = vmax.f32 %v1643, 0.0
    %v2157 = vmax.f32 %v2088, 0.0
    %v2158 = vmax.f32 %v1645, 0.0
    %v2159 = vmax.f32 %v2090, 0.0
    %v2160 = vmax.f32 %v1648, 0.0
    %v2161 = vmax.f32 %v2093, 0.0
    %v2162 = vmax.f32 %v1650, 0.0
    %v2163 = vmax.f32 %v2095, 0.0
    %v2164 = vmax.f32 %v1653, 0.0
    %v2165 = vmax.f32 %v2098, 0.0
    %v2166 = vmax.f32 %v1655, 0.0
    %v2167 = vmax.f32 %v2100, 0.0
    %v2168 = vmax.f32 %v1658, 0.0
    %v2169 = vmax.f32 %v2103, 0.0
    %v2170 = vmax.f32 %v1660, 0.0
    %v2171 = vmax.f32 %v2105, 0.0
    %v2172 = vmax.f32 %v1663, 0.0
    %v2173 = vmax.f32 %v2108, 0.0
    %v2174 = vmax.f32 %v1665, 0.0
    %v2175 = vmax.f32 %v2110, 0.0
    %v2176 = vpack.c.bf16 %v2114, %v2112
    %v2177 = vpack.c.bf16 %v2115, %v2113
    %v2178 = vpack.c.bf16 %v2118, %v2116
    %v2179 = vpack.c.bf16 %v2119, %v2117
    %v2180 = vpack.c.bf16 %v2122, %v2120
    %v2181 = vpack.c.bf16 %v2123, %v2121
    %v2182 = vpack.c.bf16 %v2126, %v2124
    %v2183 = vpack.c.bf16 %v2127, %v2125
    %v2184 = vpack.c.bf16 %v2130, %v2128
    %v2185 = vpack.c.bf16 %v2131, %v2129
    %v2186 = vpack.c.bf16 %v2134, %v2132
    %v2187 = vpack.c.bf16 %v2135, %v2133
    %v2188 = vpack.c.bf16 %v2138, %v2136
    %v2189 = vpack.c.bf16 %v2139, %v2137
    %v2190 = vpack.c.bf16 %v2142, %v2140
    %v2191 = vpack.c.bf16 %v2143, %v2141
    %v2192 = vpack.c.bf16 %v2146, %v2144
    %v2193 = vpack.c.bf16 %v2147, %v2145
    %v2194 = vpack.c.bf16 %v2150, %v2148
    %v2195 = vpack.c.bf16 %v2151, %v2149
    %v2196 = vpack.c.bf16 %v2154, %v2152
    %v2197 = vpack.c.bf16 %v2155, %v2153
    %v2198 = vpack.c.bf16 %v2158, %v2156
    %v2199 = vpack.c.bf16 %v2159, %v2157
    %v2200 = vpack.c.bf16 %v2162, %v2160
    %v2201 = vpack.c.bf16 %v2163, %v2161
    %v2202 = vpack.c.bf16 %v2166, %v2164
    %v2203 = vpack.c.bf16 %v2167, %v2165
    %v2204 = vpack.c.bf16 %v2170, %v2168
    %v2205 = vpack.c.bf16 %v2171, %v2169
    %v2206 = vpack.c.bf16 %v2174, %v2172
    %v2207 = vpack.c.bf16 %v2175, %v2173
    %v2208 = vld [vmem:[%s3] sm:$0xff]
    %v2209 = vld [vmem:[%s3 + $0x8] sm:$0xff]
    %v2210 = vld [vmem:[%s3 + $0x10] sm:$0xff]
    %v2211 = vld [vmem:[%s3 + $0x18] sm:$0xff]
    %v2212 = vld [vmem:[%s3 + $0x20] sm:$0xff]
    %v2213 = vld [vmem:[%s3 + $0x28] sm:$0xff]
    %v2214 = vld [vmem:[%s3 + $0x30] sm:$0xff]
    %v2215 = vld [vmem:[%s3 + $0x38] sm:$0xff]
    %v2216 = vld [vmem:[%s3 + $0x40] sm:$0xff]
    %v2217 = vld [vmem:[%s3 + $0x48] sm:$0xff]
    %v2218 = vld [vmem:[%s3 + $0x50] sm:$0xff]
    %v2219 = vld [vmem:[%s3 + $0x58] sm:$0xff]
    %v2220 = vld [vmem:[%s3 + $0x60] sm:$0xff]
    %v2221 = vld [vmem:[%s3 + $0x68] sm:$0xff]
    %v2222 = vld [vmem:[%s3 + $0x70] sm:$0xff]
    %v2223 = vld [vmem:[%s3 + $0x78] sm:$0xff]
    %v2224 = vld [vmem:[%s3 + $0x80] sm:$0xff]
    %v2225 = vld [vmem:[%s3 + $0x88] sm:$0xff]
    %v2226 = vld [vmem:[%s3 + $0x90] sm:$0xff]
    %v2227 = vld [vmem:[%s3 + $0x98] sm:$0xff]
    %v2228 = vld [vmem:[%s3 + $0xa0] sm:$0xff]
    %v2229 = vld [vmem:[%s3 + $0xa8] sm:$0xff]
    %v2230 = vld [vmem:[%s3 + $0xb0] sm:$0xff]
    %v2231 = vld [vmem:[%s3 + $0xb8] sm:$0xff]
    %v2232 = vld [vmem:[%s3 + $0xc0] sm:$0xff]
    %v2233 = vld [vmem:[%s3 + $0xc8] sm:$0xff]
    %v2234 = vld [vmem:[%s3 + $0xd0] sm:$0xff]
    %v2235 = vld [vmem:[%s3 + $0xd8] sm:$0xff]
    %v2236 = vld [vmem:[%s3 + $0xe0] sm:$0xff]
    %v2237 = vld [vmem:[%s3 + $0xe8] sm:$0xff]
    %v2238 = vld [vmem:[%s3 + $0xf0] sm:$0xff]
    %v2239 = vld [vmem:[%s3 + $0xf8] sm:$0xff]
    %v2240 = vld [vmem:[%s4] sm:$0x3]
    %v2242 = vperm.slane %v2240, 0
    %v2243 = vperm.slane %v2240, 1
    %v2278 = vunpack.c.l.b16 %v2208
    %v2279 = vunpack.c.h.b16 %v2208
    %v2280 = vunpack.c.l.b16 %v2209
    %v2281 = vunpack.c.h.b16 %v2209
    %v2282 = vunpack.c.l.b16 %v2210
    %v2283 = vunpack.c.h.b16 %v2210
    %v2284 = vunpack.c.l.b16 %v2211
    %v2285 = vunpack.c.h.b16 %v2211
    %v2286 = vunpack.c.l.b16 %v2212
    %v2287 = vunpack.c.h.b16 %v2212
    %v2288 = vunpack.c.l.b16 %v2213
    %v2289 = vunpack.c.h.b16 %v2213
    %v2290 = vunpack.c.l.b16 %v2214
    %v2291 = vunpack.c.h.b16 %v2214
    %v2292 = vunpack.c.l.b16 %v2215
    %v2293 = vunpack.c.h.b16 %v2215
    %v2294 = vunpack.c.l.b16 %v2216
    %v2295 = vunpack.c.h.b16 %v2216
    %v2296 = vunpack.c.l.b16 %v2217
    %v2297 = vunpack.c.h.b16 %v2217
    %v2298 = vunpack.c.l.b16 %v2218
    %v2299 = vunpack.c.h.b16 %v2218
    %v2300 = vunpack.c.l.b16 %v2219
    %v2301 = vunpack.c.h.b16 %v2219
    %v2302 = vunpack.c.l.b16 %v2220
    %v2303 = vunpack.c.h.b16 %v2220
    %v2304 = vunpack.c.l.b16 %v2221
    %v2305 = vunpack.c.h.b16 %v2221
    %v2306 = vunpack.c.l.b16 %v2222
    %v2307 = vunpack.c.h.b16 %v2222
    %v2308 = vunpack.c.l.b16 %v2223
    %v2309 = vunpack.c.h.b16 %v2223
    %v2310 = vunpack.c.l.b16 %v2224
    %v2311 = vunpack.c.h.b16 %v2224
    %v2312 = vunpack.c.l.b16 %v2225
    %v2313 = vunpack.c.h.b16 %v2225
    %v2314 = vunpack.c.l.b16 %v2226
    %v2315 = vunpack.c.h.b16 %v2226
    %v2316 = vunpack.c.l.b16 %v2227
    %v2317 = vunpack.c.h.b16 %v2227
    %v2318 = vunpack.c.l.b16 %v2228
    %v2319 = vunpack.c.h.b16 %v2228
    %v2320 = vunpack.c.l.b16 %v2229
    %v2321 = vunpack.c.h.b16 %v2229
    %v2322 = vunpack.c.l.b16 %v2230
    %v2323 = vunpack.c.h.b16 %v2230
    %v2324 = vunpack.c.l.b16 %v2231
    %v2325 = vunpack.c.h.b16 %v2231
    %v2326 = vunpack.c.l.b16 %v2232
    %v2327 = vunpack.c.h.b16 %v2232
    %v2328 = vunpack.c.l.b16 %v2233
    %v2329 = vunpack.c.h.b16 %v2233
    %v2330 = vunpack.c.l.b16 %v2234
    %v2331 = vunpack.c.h.b16 %v2234
    %v2332 = vunpack.c.l.b16 %v2235
    %v2333 = vunpack.c.h.b16 %v2235
    %v2334 = vunpack.c.l.b16 %v2236
    %v2335 = vunpack.c.h.b16 %v2236
    %v2336 = vunpack.c.l.b16 %v2237
    %v2337 = vunpack.c.h.b16 %v2237
    %v2338 = vunpack.c.l.b16 %v2238
    %v2339 = vunpack.c.h.b16 %v2238
    %v2340 = vunpack.c.l.b16 %v2239
    %v2341 = vunpack.c.h.b16 %v2239
    %v2342 = vpack.c.b16 %v2280, %v2278
    %v2343 = vpack.c.b16 %v2281, %v2279
    %v2344 = vpack.c.b16 %v2284, %v2282
    %v2345 = vpack.c.b16 %v2285, %v2283
    %v2346 = vpack.c.b16 %v2288, %v2286
    %v2347 = vpack.c.b16 %v2289, %v2287
    %v2348 = vpack.c.b16 %v2292, %v2290
    %v2349 = vpack.c.b16 %v2293, %v2291
    %v2350 = vpack.c.b16 %v2296, %v2294
    %v2351 = vpack.c.b16 %v2297, %v2295
    %v2352 = vpack.c.b16 %v2300, %v2298
    %v2353 = vpack.c.b16 %v2301, %v2299
    %v2354 = vpack.c.b16 %v2304, %v2302
    %v2355 = vpack.c.b16 %v2305, %v2303
    %v2356 = vpack.c.b16 %v2308, %v2306
    %v2357 = vpack.c.b16 %v2309, %v2307
    %v2358 = vpack.c.b16 %v2312, %v2310
    %v2359 = vpack.c.b16 %v2313, %v2311
    %v2360 = vpack.c.b16 %v2316, %v2314
    %v2361 = vpack.c.b16 %v2317, %v2315
    %v2362 = vpack.c.b16 %v2320, %v2318
    %v2363 = vpack.c.b16 %v2321, %v2319
    %v2364 = vpack.c.b16 %v2324, %v2322
    %v2365 = vpack.c.b16 %v2325, %v2323
    %v2366 = vpack.c.b16 %v2328, %v2326
    %v2367 = vpack.c.b16 %v2329, %v2327
    %v2368 = vpack.c.b16 %v2332, %v2330
    %v2369 = vpack.c.b16 %v2333, %v2331
    %v2370 = vpack.c.b16 %v2336, %v2334
    %v2371 = vpack.c.b16 %v2337, %v2335
    %v2372 = vpack.c.b16 %v2340, %v2338
    %v2373 = vpack.c.b16 %v2341, %v2339
    %2406 = vmatpush.bf16.msra.mxu0 %v2356
    %2407 = vmatpush.bf16.msra.mxu0 %v2354
    %2408 = vmatpush.bf16.msra.mxu0 %v2352
    %2409 = vmatpush.bf16.msra.mxu0 %v2350
    %2410 = vmatpush.bf16.msra.mxu0 %v2348
    %2411 = vmatpush.bf16.msra.mxu0 %v2346
    %2412 = vmatpush.bf16.msra.mxu0 %v2344
    %2413 = vmatpush.bf16.msra.mxu0 %v2342
    %2414 = vmatmul.bf16.gmra.mxu0 %v2176
    %v2415 = vpop.f32.mrf.mxu0
    %v2416 = vadd.f32 %v2242, %v2415
    %v2417 = vpop.f32.mrf.mxu0
    %v2418 = vadd.f32 %v2242, %v2417
    %2419 = vmatmul.bf16.gmra.mxu0 %v2178
    %v2420 = vpop.f32.mrf.mxu0
    %v2421 = vadd.f32 %v2242, %v2420
    %v2422 = vpop.f32.mrf.mxu0
    %v2423 = vadd.f32 %v2242, %v2422
    %2424 = vmatmul.bf16.gmra.mxu0 %v2180
    %v2425 = vpop.f32.mrf.mxu0
    %v2426 = vadd.f32 %v2242, %v2425
    %v2427 = vpop.f32.mrf.mxu0
    %v2428 = vadd.f32 %v2242, %v2427
    %2429 = vmatmul.bf16.gmra.mxu0 %v2182
    %v2430 = vpop.f32.mrf.mxu0
    %v2431 = vadd.f32 %v2242, %v2430
    %v2432 = vpop.f32.mrf.mxu0
    %v2433 = vadd.f32 %v2242, %v2432
    %2434 = vmatmul.bf16.gmra.mxu0 %v2184
    %v2435 = vpop.f32.mrf.mxu0
    %v2436 = vadd.f32 %v2242, %v2435
    %v2437 = vpop.f32.mrf.mxu0
    %v2438 = vadd.f32 %v2242, %v2437
    %2439 = vmatmul.bf16.gmra.mxu0 %v2186
    %v2440 = vpop.f32.mrf.mxu0
    %v2441 = vadd.f32 %v2242, %v2440
    %v2442 = vpop.f32.mrf.mxu0
    %v2443 = vadd.f32 %v2242, %v2442
    %2444 = vmatmul.bf16.gmra.mxu0 %v2188
    %v2445 = vpop.f32.mrf.mxu0
    %v2446 = vadd.f32 %v2242, %v2445
    %v2447 = vpop.f32.mrf.mxu0
    %v2448 = vadd.f32 %v2242, %v2447
    %2449 = vmatmul.bf16.gmra.mxu0 %v2190
    %v2450 = vpop.f32.mrf.mxu0
    %v2451 = vadd.f32 %v2242, %v2450
    %v2452 = vpop.f32.mrf.mxu0
    %v2453 = vadd.f32 %v2242, %v2452
    %2454 = vmatmul.bf16.gmra.mxu0 %v2192
    %v2455 = vpop.f32.mrf.mxu0
    %v2456 = vadd.f32 %v2242, %v2455
    %v2457 = vpop.f32.mrf.mxu0
    %v2458 = vadd.f32 %v2242, %v2457
    %2459 = vmatmul.bf16.gmra.mxu0 %v2194
    %v2460 = vpop.f32.mrf.mxu0
    %v2461 = vadd.f32 %v2242, %v2460
    %v2462 = vpop.f32.mrf.mxu0
    %v2463 = vadd.f32 %v2242, %v2462
    %2464 = vmatmul.bf16.gmra.mxu0 %v2196
    %v2465 = vpop.f32.mrf.mxu0
    %v2466 = vadd.f32 %v2242, %v2465
    %v2467 = vpop.f32.mrf.mxu0
    %v2468 = vadd.f32 %v2242, %v2467
    %2469 = vmatmul.bf16.gmra.mxu0 %v2198
    %v2470 = vpop.f32.mrf.mxu0
    %v2471 = vadd.f32 %v2242, %v2470
    %v2472 = vpop.f32.mrf.mxu0
    %v2473 = vadd.f32 %v2242, %v2472
    %2474 = vmatmul.bf16.gmra.mxu0 %v2200
    %v2475 = vpop.f32.mrf.mxu0
    %v2476 = vadd.f32 %v2242, %v2475
    %v2477 = vpop.f32.mrf.mxu0
    %v2478 = vadd.f32 %v2242, %v2477
    %2479 = vmatmul.bf16.gmra.mxu0 %v2202
    %v2480 = vpop.f32.mrf.mxu0
    %v2481 = vadd.f32 %v2242, %v2480
    %v2482 = vpop.f32.mrf.mxu0
    %v2483 = vadd.f32 %v2242, %v2482
    %2484 = vmatmul.bf16.gmra.mxu0 %v2204
    %v2485 = vpop.f32.mrf.mxu0
    %v2486 = vadd.f32 %v2242, %v2485
    %v2487 = vpop.f32.mrf.mxu0
    %v2488 = vadd.f32 %v2242, %v2487
    %2489 = vmatmul.bf16.gmra.mxu0 %v2206
    %v2490 = vpop.f32.mrf.mxu0
    %v2491 = vadd.f32 %v2242, %v2490
    %v2492 = vpop.f32.mrf.mxu0
    %v2493 = vadd.f32 %v2242, %v2492
    %2494 = vdwg.mxu0
    %2495 = vmatpush.bf16.msra.mxu0 %v2372
    %2496 = vmatpush.bf16.msra.mxu0 %v2370
    %2497 = vmatpush.bf16.msra.mxu0 %v2368
    %2498 = vmatpush.bf16.msra.mxu0 %v2366
    %2499 = vmatpush.bf16.msra.mxu0 %v2364
    %2500 = vmatpush.bf16.msra.mxu0 %v2362
    %2501 = vmatpush.bf16.msra.mxu0 %v2360
    %2502 = vmatpush.bf16.msra.mxu0 %v2358
    %2503 = vmatmul.bf16.gmra.mxu0 %v2177
    %v2504 = vpop.f32.mrf.mxu0
    %v2505 = vadd.f32 %v2416, %v2504
    %v2506 = vpop.f32.mrf.mxu0
    %v2507 = vadd.f32 %v2418, %v2506
    %2508 = vmatmul.bf16.gmra.mxu0 %v2179
    %v2509 = vpop.f32.mrf.mxu0
    %v2510 = vadd.f32 %v2421, %v2509
    %v2511 = vpop.f32.mrf.mxu0
    %v2512 = vadd.f32 %v2423, %v2511
    %2513 = vmatmul.bf16.gmra.mxu0 %v2181
    %v2514 = vpop.f32.mrf.mxu0
    %v2515 = vadd.f32 %v2426, %v2514
    %v2516 = vpop.f32.mrf.mxu0
    %v2517 = vadd.f32 %v2428, %v2516
    %2518 = vmatmul.bf16.gmra.mxu0 %v2183
    %v2519 = vpop.f32.mrf.mxu0
    %v2520 = vadd.f32 %v2431, %v2519
    %v2521 = vpop.f32.mrf.mxu0
    %v2522 = vadd.f32 %v2433, %v2521
    %2523 = vmatmul.bf16.gmra.mxu0 %v2185
    %v2524 = vpop.f32.mrf.mxu0
    %v2525 = vadd.f32 %v2436, %v2524
    %v2526 = vpop.f32.mrf.mxu0
    %v2527 = vadd.f32 %v2438, %v2526
    %2528 = vmatmul.bf16.gmra.mxu0 %v2187
    %v2529 = vpop.f32.mrf.mxu0
    %v2530 = vadd.f32 %v2441, %v2529
    %v2531 = vpop.f32.mrf.mxu0
    %v2532 = vadd.f32 %v2443, %v2531
    %2533 = vmatmul.bf16.gmra.mxu0 %v2189
    %v2534 = vpop.f32.mrf.mxu0
    %v2535 = vadd.f32 %v2446, %v2534
    %v2536 = vpop.f32.mrf.mxu0
    %v2537 = vadd.f32 %v2448, %v2536
    %2538 = vmatmul.bf16.gmra.mxu0 %v2191
    %v2539 = vpop.f32.mrf.mxu0
    %v2540 = vadd.f32 %v2451, %v2539
    %v2541 = vpop.f32.mrf.mxu0
    %v2542 = vadd.f32 %v2453, %v2541
    %2543 = vmatmul.bf16.gmra.mxu0 %v2193
    %v2544 = vpop.f32.mrf.mxu0
    %v2545 = vadd.f32 %v2456, %v2544
    %v2546 = vpop.f32.mrf.mxu0
    %v2547 = vadd.f32 %v2458, %v2546
    %2548 = vmatmul.bf16.gmra.mxu0 %v2195
    %v2549 = vpop.f32.mrf.mxu0
    %v2550 = vadd.f32 %v2461, %v2549
    %v2551 = vpop.f32.mrf.mxu0
    %v2552 = vadd.f32 %v2463, %v2551
    %2553 = vmatmul.bf16.gmra.mxu0 %v2197
    %v2554 = vpop.f32.mrf.mxu0
    %v2555 = vadd.f32 %v2466, %v2554
    %v2556 = vpop.f32.mrf.mxu0
    %v2557 = vadd.f32 %v2468, %v2556
    %2558 = vmatmul.bf16.gmra.mxu0 %v2199
    %v2559 = vpop.f32.mrf.mxu0
    %v2560 = vadd.f32 %v2471, %v2559
    %v2561 = vpop.f32.mrf.mxu0
    %v2562 = vadd.f32 %v2473, %v2561
    %2563 = vmatmul.bf16.gmra.mxu0 %v2201
    %v2564 = vpop.f32.mrf.mxu0
    %v2565 = vadd.f32 %v2476, %v2564
    %v2566 = vpop.f32.mrf.mxu0
    %v2567 = vadd.f32 %v2478, %v2566
    %2568 = vmatmul.bf16.gmra.mxu0 %v2203
    %v2569 = vpop.f32.mrf.mxu0
    %v2570 = vadd.f32 %v2481, %v2569
    %v2571 = vpop.f32.mrf.mxu0
    %v2572 = vadd.f32 %v2483, %v2571
    %2573 = vmatmul.bf16.gmra.mxu0 %v2205
    %v2574 = vpop.f32.mrf.mxu0
    %v2575 = vadd.f32 %v2486, %v2574
    %v2576 = vpop.f32.mrf.mxu0
    %v2577 = vadd.f32 %v2488, %v2576
    %2578 = vmatmul.bf16.gmra.mxu0 %v2207
    %v2579 = vpop.f32.mrf.mxu0
    %v2580 = vadd.f32 %v2491, %v2579
    %v2581 = vpop.f32.mrf.mxu0
    %v2582 = vadd.f32 %v2493, %v2581
    %2583 = vdwg.mxu0
    %2584 = vmatpush.bf16.msra.mxu0 %v2357
    %2585 = vmatpush.bf16.msra.mxu0 %v2355
    %2586 = vmatpush.bf16.msra.mxu0 %v2353
    %2587 = vmatpush.bf16.msra.mxu0 %v2351
    %2588 = vmatpush.bf16.msra.mxu0 %v2349
    %2589 = vmatpush.bf16.msra.mxu0 %v2347
    %2590 = vmatpush.bf16.msra.mxu0 %v2345
    %2591 = vmatpush.bf16.msra.mxu0 %v2343
    %2592 = vmatmul.bf16.gmra.mxu0 %v2176
    %v2593 = vpop.f32.mrf.mxu0
    %v2594 = vadd.f32 %v2243, %v2593
    %v2595 = vpop.f32.mrf.mxu0
    %v2596 = vadd.f32 %v2243, %v2595
    %2597 = vmatmul.bf16.gmra.mxu0 %v2178
    %v2598 = vpop.f32.mrf.mxu0
    %v2599 = vadd.f32 %v2243, %v2598
    %v2600 = vpop.f32.mrf.mxu0
    %v2601 = vadd.f32 %v2243, %v2600
    %2602 = vmatmul.bf16.gmra.mxu0 %v2180
    %v2603 = vpop.f32.mrf.mxu0
    %v2604 = vadd.f32 %v2243, %v2603
    %v2605 = vpop.f32.mrf.mxu0
    %v2606 = vadd.f32 %v2243, %v2605
    %2607 = vmatmul.bf16.gmra.mxu0 %v2182
    %v2608 = vpop.f32.mrf.mxu0
    %v2609 = vadd.f32 %v2243, %v2608
    %v2610 = vpop.f32.mrf.mxu0
    %v2611 = vadd.f32 %v2243, %v2610
    %2612 = vmatmul.bf16.gmra.mxu0 %v2184
    %v2613 = vpop.f32.mrf.mxu0
    %v2614 = vadd.f32 %v2243, %v2613
    %v2615 = vpop.f32.mrf.mxu0
    %v2616 = vadd.f32 %v2243, %v2615
    %2617 = vmatmul.bf16.gmra.mxu0 %v2186
    %v2618 = vpop.f32.mrf.mxu0
    %v2619 = vadd.f32 %v2243, %v2618
    %v2620 = vpop.f32.mrf.mxu0
    %v2621 = vadd.f32 %v2243, %v2620
    %2622 = vmatmul.bf16.gmra.mxu0 %v2188
    %v2623 = vpop.f32.mrf.mxu0
    %v2624 = vadd.f32 %v2243, %v2623
    %v2625 = vpop.f32.mrf.mxu0
    %v2626 = vadd.f32 %v2243, %v2625
    %2627 = vmatmul.bf16.gmra.mxu0 %v2190
    %v2628 = vpop.f32.mrf.mxu0
    %v2629 = vadd.f32 %v2243, %v2628
    %v2630 = vpop.f32.mrf.mxu0
    %v2631 = vadd.f32 %v2243, %v2630
    %2632 = vmatmul.bf16.gmra.mxu0 %v2192
    %v2633 = vpop.f32.mrf.mxu0
    %v2634 = vadd.f32 %v2243, %v2633
    %v2635 = vpop.f32.mrf.mxu0
    %v2636 = vadd.f32 %v2243, %v2635
    %2637 = vmatmul.bf16.gmra.mxu0 %v2194
    %v2638 = vpop.f32.mrf.mxu0
    %v2639 = vadd.f32 %v2243, %v2638
    %v2640 = vpop.f32.mrf.mxu0
    %v2641 = vadd.f32 %v2243, %v2640
    %2642 = vmatmul.bf16.gmra.mxu0 %v2196
    %v2643 = vpop.f32.mrf.mxu0
    %v2644 = vadd.f32 %v2243, %v2643
    %v2645 = vpop.f32.mrf.mxu0
    %v2646 = vadd.f32 %v2243, %v2645
    %2647 = vmatmul.bf16.gmra.mxu0 %v2198
    %v2648 = vpop.f32.mrf.mxu0
    %v2649 = vadd.f32 %v2243, %v2648
    %v2650 = vpop.f32.mrf.mxu0
    %v2651 = vadd.f32 %v2243, %v2650
    %2652 = vmatmul.bf16.gmra.mxu0 %v2200
    %v2653 = vpop.f32.mrf.mxu0
    %v2654 = vadd.f32 %v2243, %v2653
    %v2655 = vpop.f32.mrf.mxu0
    %v2656 = vadd.f32 %v2243, %v2655
    %2657 = vmatmul.bf16.gmra.mxu0 %v2202
    %v2658 = vpop.f32.mrf.mxu0
    %v2659 = vadd.f32 %v2243, %v2658
    %v2660 = vpop.f32.mrf.mxu0
    %v2661 = vadd.f32 %v2243, %v2660
    %2662 = vmatmul.bf16.gmra.mxu0 %v2204
    %v2663 = vpop.f32.mrf.mxu0
    %v2664 = vadd.f32 %v2243, %v2663
    %v2665 = vpop.f32.mrf.mxu0
    %v2666 = vadd.f32 %v2243, %v2665
    %2667 = vmatmul.bf16.gmra.mxu0 %v2206
    %v2668 = vpop.f32.mrf.mxu0
    %v2669 = vadd.f32 %v2243, %v2668
    %v2670 = vpop.f32.mrf.mxu0
    %v2671 = vadd.f32 %v2243, %v2670
    %2672 = vdwg.mxu0
    %2673 = vmatpush.bf16.msra.mxu0 %v2373
    %2674 = vmatpush.bf16.msra.mxu0 %v2371
    %2675 = vmatpush.bf16.msra.mxu0 %v2369
    %2676 = vmatpush.bf16.msra.mxu0 %v2367
    %2677 = vmatpush.bf16.msra.mxu0 %v2365
    %2678 = vmatpush.bf16.msra.mxu0 %v2363
    %2679 = vmatpush.bf16.msra.mxu0 %v2361
    %2680 = vmatpush.bf16.msra.mxu0 %v2359
    %2681 = vmatmul.bf16.gmra.mxu0 %v2177
    %v2682 = vpop.f32.mrf.mxu0
    %v2683 = vadd.f32 %v2594, %v2682
    %v2684 = vpop.f32.mrf.mxu0
    %v2685 = vadd.f32 %v2596, %v2684
    %2686 = vmatmul.bf16.gmra.mxu0 %v2179
    %v2687 = vpop.f32.mrf.mxu0
    %v2688 = vadd.f32 %v2599, %v2687
    %v2689 = vpop.f32.mrf.mxu0
    %v2690 = vadd.f32 %v2601, %v2689
    %2691 = vmatmul.bf16.gmra.mxu0 %v2181
    %v2692 = vpop.f32.mrf.mxu0
    %v2693 = vadd.f32 %v2604, %v2692
    %v2694 = vpop.f32.mrf.mxu0
    %v2695 = vadd.f32 %v2606, %v2694
    %2696 = vmatmul.bf16.gmra.mxu0 %v2183
    %v2697 = vpop.f32.mrf.mxu0
    %v2698 = vadd.f32 %v2609, %v2697
    %v2699 = vpop.f32.mrf.mxu0
    %v2700 = vadd.f32 %v2611, %v2699
    %2701 = vmatmul.bf16.gmra.mxu0 %v2185
    %v2702 = vpop.f32.mrf.mxu0
    %v2703 = vadd.f32 %v2614, %v2702
    %v2704 = vpop.f32.mrf.mxu0
    %v2705 = vadd.f32 %v2616, %v2704
    %2706 = vmatmul.bf16.gmra.mxu0 %v2187
    %v2707 = vpop.f32.mrf.mxu0
    %v2708 = vadd.f32 %v2619, %v2707
    %v2709 = vpop.f32.mrf.mxu0
    %v2710 = vadd.f32 %v2621, %v2709
    %2711 = vmatmul.bf16.gmra.mxu0 %v2189
    %v2712 = vpop.f32.mrf.mxu0
    %v2713 = vadd.f32 %v2624, %v2712
    %v2714 = vpop.f32.mrf.mxu0
    %v2715 = vadd.f32 %v2626, %v2714
    %2716 = vmatmul.bf16.gmra.mxu0 %v2191
    %v2717 = vpop.f32.mrf.mxu0
    %v2718 = vadd.f32 %v2629, %v2717
    %v2719 = vpop.f32.mrf.mxu0
    %v2720 = vadd.f32 %v2631, %v2719
    %2721 = vmatmul.bf16.gmra.mxu0 %v2193
    %v2722 = vpop.f32.mrf.mxu0
    %v2723 = vadd.f32 %v2634, %v2722
    %v2724 = vpop.f32.mrf.mxu0
    %v2725 = vadd.f32 %v2636, %v2724
    %2726 = vmatmul.bf16.gmra.mxu0 %v2195
    %v2727 = vpop.f32.mrf.mxu0
    %v2728 = vadd.f32 %v2639, %v2727
    %v2729 = vpop.f32.mrf.mxu0
    %v2730 = vadd.f32 %v2641, %v2729
    %2731 = vmatmul.bf16.gmra.mxu0 %v2197
    %v2732 = vpop.f32.mrf.mxu0
    %v2733 = vadd.f32 %v2644, %v2732
    %v2734 = vpop.f32.mrf.mxu0
    %v2735 = vadd.f32 %v2646, %v2734
    %2736 = vmatmul.bf16.gmra.mxu0 %v2199
    %v2737 = vpop.f32.mrf.mxu0
    %v2738 = vadd.f32 %v2649, %v2737
    %v2739 = vpop.f32.mrf.mxu0
    %v2740 = vadd.f32 %v2651, %v2739
    %2741 = vmatmul.bf16.gmra.mxu0 %v2201
    %v2742 = vpop.f32.mrf.mxu0
    %v2743 = vadd.f32 %v2654, %v2742
    %v2744 = vpop.f32.mrf.mxu0
    %v2745 = vadd.f32 %v2656, %v2744
    %2746 = vmatmul.bf16.gmra.mxu0 %v2203
    %v2747 = vpop.f32.mrf.mxu0
    %v2748 = vadd.f32 %v2659, %v2747
    %v2749 = vpop.f32.mrf.mxu0
    %v2750 = vadd.f32 %v2661, %v2749
    %2751 = vmatmul.bf16.gmra.mxu0 %v2205
    %v2752 = vpop.f32.mrf.mxu0
    %v2753 = vadd.f32 %v2664, %v2752
    %v2754 = vpop.f32.mrf.mxu0
    %v2755 = vadd.f32 %v2666, %v2754
    %2756 = vmatmul.bf16.gmra.mxu0 %v2207
    %v2757 = vpop.f32.mrf.mxu0
    %v2758 = vadd.f32 %v2669, %v2757
    %v2759 = vpop.f32.mrf.mxu0
    %v2760 = vadd.f32 %v2671, %v2759
    %2761 = vdwg.mxu0
    %v2762 = vmax.f32 %v2505, 0.0
    %v2763 = vmax.f32 %v2683, 0.0
    %v2764 = vmax.f32 %v2507, 0.0
    %v2765 = vmax.f32 %v2685, 0.0
    %v2766 = vmax.f32 %v2510, 0.0
    %v2767 = vmax.f32 %v2688, 0.0
    %v2768 = vmax.f32 %v2512, 0.0
    %v2769 = vmax.f32 %v2690, 0.0
    %v2770 = vmax.f32 %v2515, 0.0
    %v2771 = vmax.f32 %v2693, 0.0
    %v2772 = vmax.f32 %v2517, 0.0
    %v2773 = vmax.f32 %v2695, 0.0
    %v2774 = vmax.f32 %v2520, 0.0
    %v2775 = vmax.f32 %v2698, 0.0
    %v2776 = vmax.f32 %v2522, 0.0
    %v2777 = vmax.f32 %v2700, 0.0
    %v2778 = vmax.f32 %v2525, 0.0
    %v2779 = vmax.f32 %v2703, 0.0
    %v2780 = vmax.f32 %v2527, 0.0
    %v2781 = vmax.f32 %v2705, 0.0
    %v2782 = vmax.f32 %v2530, 0.0
    %v2783 = vmax.f32 %v2708, 0.0
    %v2784 = vmax.f32 %v2532, 0.0
    %v2785 = vmax.f32 %v2710, 0.0
    %v2786 = vmax.f32 %v2535, 0.0
    %v2787 = vmax.f32 %v2713, 0.0
    %v2788 = vmax.f32 %v2537, 0.0
    %v2789 = vmax.f32 %v2715, 0.0
    %v2790 = vmax.f32 %v2540, 0.0
    %v2791 = vmax.f32 %v2718, 0.0
    %v2792 = vmax.f32 %v2542, 0.0
    %v2793 = vmax.f32 %v2720, 0.0
    %v2794 = vmax.f32 %v2545, 0.0
    %v2795 = vmax.f32 %v2723, 0.0
    %v2796 = vmax.f32 %v2547, 0.0
    %v2797 = vmax.f32 %v2725, 0.0
    %v2798 = vmax.f32 %v2550, 0.0
    %v2799 = vmax.f32 %v2728, 0.0
    %v2800 = vmax.f32 %v2552, 0.0
    %v2801 = vmax.f32 %v2730, 0.0
    %v2802 = vmax.f32 %v2555, 0.0
    %v2803 = vmax.f32 %v2733, 0.0
    %v2804 = vmax.f32 %v2557, 0.0
    %v2805 = vmax.f32 %v2735, 0.0
    %v2806 = vmax.f32 %v2560, 0.0
    %v2807 = vmax.f32 %v2738, 0.0
    %v2808 = vmax.f32 %v2562, 0.0
    %v2809 = vmax.f32 %v2740, 0.0
    %v2810 = vmax.f32 %v2565, 0.0
    %v2811 = vmax.f32 %v2743, 0.0
    %v2812 = vmax.f32 %v2567, 0.0
    %v2813 = vmax.f32 %v2745, 0.0
    %v2814 = vmax.f32 %v2570, 0.0
    %v2815 = vmax.f32 %v2748, 0.0
    %v2816 = vmax.f32 %v2572, 0.0
    %v2817 = vmax.f32 %v2750, 0.0
    %v2818 = vmax.f32 %v2575, 0.0
    %v2819 = vmax.f32 %v2753, 0.0
    %v2820 = vmax.f32 %v2577, 0.0
    %v2821 = vmax.f32 %v2755, 0.0
    %v2822 = vmax.f32 %v2580, 0.0
    %v2823 = vmax.f32 %v2758, 0.0
    %v2824 = vmax.f32 %v2582, 0.0
    %v2825 = vmax.f32 %v2760, 0.0
    %v2826 = vpack.c.bf16 %v2764, %v2762
    %v2827 = vpack.c.bf16 %v2765, %v2763
    %v2828 = vpack.c.bf16 %v2768, %v2766
    %v2829 = vpack.c.bf16 %v2769, %v2767
    %v2830 = vpack.c.bf16 %v2772, %v2770
    %v2831 = vpack.c.bf16 %v2773, %v2771
    %v2832 = vpack.c.bf16 %v2776, %v2774
    %v2833 = vpack.c.bf16 %v2777, %v2775
    %v2834 = vpack.c.bf16 %v2780, %v2778
    %v2835 = vpack.c.bf16 %v2781, %v2779
    %v2836 = vpack.c.bf16 %v2784, %v2782
    %v2837 = vpack.c.bf16 %v2785, %v2783
    %v2838 = vpack.c.bf16 %v2788, %v2786
    %v2839 = vpack.c.bf16 %v2789, %v2787
    %v2840 = vpack.c.bf16 %v2792, %v2790
    %v2841 = vpack.c.bf16 %v2793, %v2791
    %v2842 = vpack.c.bf16 %v2796, %v2794
    %v2843 = vpack.c.bf16 %v2797, %v2795
    %v2844 = vpack.c.bf16 %v2800, %v2798
    %v2845 = vpack.c.bf16 %v2801, %v2799
    %v2846 = vpack.c.bf16 %v2804, %v2802
    %v2847 = vpack.c.bf16 %v2805, %v2803
    %v2848 = vpack.c.bf16 %v2808, %v2806
    %v2849 = vpack.c.bf16 %v2809, %v2807
    %v2850 = vpack.c.bf16 %v2812, %v2810
    %v2851 = vpack.c.bf16 %v2813, %v2811
    %v2852 = vpack.c.bf16 %v2816, %v2814
    %v2853 = vpack.c.bf16 %v2817, %v2815
    %v2854 = vpack.c.bf16 %v2820, %v2818
    %v2855 = vpack.c.bf16 %v2821, %v2819
    %v2856 = vpack.c.bf16 %v2824, %v2822
    %v2857 = vpack.c.bf16 %v2825, %v2823
    %v2858 = vld [vmem:[%s5] sm:$0xf]
    %v2859 = vld [vmem:[%s5 + $0x4] sm:$0xf]
    %v2860 = vld [vmem:[%s5 + $0x8] sm:$0xf]
    %v2861 = vld [vmem:[%s5 + $0xc] sm:$0xf]
    %v2862 = vld [vmem:[%s5 + $0x10] sm:$0xf]
    %v2863 = vld [vmem:[%s5 + $0x14] sm:$0xf]
    %v2864 = vld [vmem:[%s5 + $0x18] sm:$0xf]
    %v2865 = vld [vmem:[%s5 + $0x1c] sm:$0xf]
    %v2866 = vld [vmem:[%s5 + $0x20] sm:$0xf]
    %v2867 = vld [vmem:[%s5 + $0x24] sm:$0xf]
    %v2868 = vld [vmem:[%s5 + $0x28] sm:$0xf]
    %v2869 = vld [vmem:[%s5 + $0x2c] sm:$0xf]
    %v2870 = vld [vmem:[%s5 + $0x30] sm:$0xf]
    %v2871 = vld [vmem:[%s5 + $0x34] sm:$0xf]
    %v2872 = vld [vmem:[%s5 + $0x38] sm:$0xf]
    %v2873 = vld [vmem:[%s5 + $0x3c] sm:$0xf]
    %v2874 = vld [vmem:[%s5 + $0x40] sm:$0xf]
    %v2875 = vld [vmem:[%s5 + $0x44] sm:$0xf]
    %v2876 = vld [vmem:[%s5 + $0x48] sm:$0xf]
    %v2877 = vld [vmem:[%s5 + $0x4c] sm:$0xf]
    %v2878 = vld [vmem:[%s5 + $0x50] sm:$0xf]
    %v2879 = vld [vmem:[%s5 + $0x54] sm:$0xf]
    %v2880 = vld [vmem:[%s5 + $0x58] sm:$0xf]
    %v2881 = vld [vmem:[%s5 + $0x5c] sm:$0xf]
    %v2882 = vld [vmem:[%s5 + $0x60] sm:$0xf]
    %v2883 = vld [vmem:[%s5 + $0x64] sm:$0xf]
    %v2884 = vld [vmem:[%s5 + $0x68] sm:$0xf]
    %v2885 = vld [vmem:[%s5 + $0x6c] sm:$0xf]
    %v2886 = vld [vmem:[%s5 + $0x70] sm:$0xf]
    %v2887 = vld [vmem:[%s5 + $0x74] sm:$0xf]
    %v2888 = vld [vmem:[%s5 + $0x78] sm:$0xf]
    %v2889 = vld [vmem:[%s5 + $0x7c] sm:$0xf]
    %v2890 = vld [vmem:[%s6] sm:$0x1]
    %v2892 = vperm.slane %v2890, 0
    %v2926 = vunpack.c.l.b16 %v2858
    %v2927 = vunpack.c.l.b16 %v2859
    %v2928 = vunpack.c.l.b16 %v2860
    %v2929 = vunpack.c.l.b16 %v2861
    %v2930 = vunpack.c.l.b16 %v2862
    %v2931 = vunpack.c.l.b16 %v2863
    %v2932 = vunpack.c.l.b16 %v2864
    %v2933 = vunpack.c.l.b16 %v2865
    %v2934 = vunpack.c.l.b16 %v2866
    %v2935 = vunpack.c.l.b16 %v2867
    %v2936 = vunpack.c.l.b16 %v2868
    %v2937 = vunpack.c.l.b16 %v2869
    %v2938 = vunpack.c.l.b16 %v2870
    %v2939 = vunpack.c.l.b16 %v2871
    %v2940 = vunpack.c.l.b16 %v2872
    %v2941 = vunpack.c.l.b16 %v2873
    %v2942 = vunpack.c.l.b16 %v2874
    %v2943 = vunpack.c.l.b16 %v2875
    %v2944 = vunpack.c.l.b16 %v2876
    %v2945 = vunpack.c.l.b16 %v2877
    %v2946 = vunpack.c.l.b16 %v2878
    %v2947 = vunpack.c.l.b16 %v2879
    %v2948 = vunpack.c.l.b16 %v2880
    %v2949 = vunpack.c.l.b16 %v2881
    %v2950 = vunpack.c.l.b16 %v2882
    %v2951 = vunpack.c.l.b16 %v2883
    %v2952 = vunpack.c.l.b16 %v2884
    %v2953 = vunpack.c.l.b16 %v2885
    %v2954 = vunpack.c.l.b16 %v2886
    %v2955 = vunpack.c.l.b16 %v2887
    %v2956 = vunpack.c.l.b16 %v2888
    %v2957 = vunpack.c.l.b16 %v2889
    %v2958 = vpack.c.b16 %v2927, %v2926
    %v2959 = vpack.c.b16 %v2929, %v2928
    %v2960 = vpack.c.b16 %v2931, %v2930
    %v2961 = vpack.c.b16 %v2933, %v2932
    %v2962 = vpack.c.b16 %v2935, %v2934
    %v2963 = vpack.c.b16 %v2937, %v2936
    %v2964 = vpack.c.b16 %v2939, %v2938
    %v2965 = vpack.c.b16 %v2941, %v2940
    %v2966 = vpack.c.b16 %v2943, %v2942
    %v2967 = vpack.c.b16 %v2945, %v2944
    %v2968 = vpack.c.b16 %v2947, %v2946
    %v2969 = vpack.c.b16 %v2949, %v2948
    %v2970 = vpack.c.b16 %v2951, %v2950
    %v2971 = vpack.c.b16 %v2953, %v2952
    %v2972 = vpack.c.b16 %v2955, %v2954
    %v2973 = vpack.c.b16 %v2957, %v2956
    %2990 = vmatpush.bf16.msra.mxu0 %v2965
    %2991 = vmatpush.bf16.msra.mxu0 %v2964
    %2992 = vmatpush.bf16.msra.mxu0 %v2963
    %2993 = vmatpush.bf16.msra.mxu0 %v2962
    %2994 = vmatpush.bf16.msra.mxu0 %v2961
    %2995 = vmatpush.bf16.msra.mxu0 %v2960
    %2996 = vmatpush.bf16.msra.mxu0 %v2959
    %2997 = vmatpush.bf16.msra.mxu0 %v2958
    %2998 = vmatmul.bf16.gmra.mxu0 %v2826
    %v2999 = vpop.f32.mrf.mxu0
    %v3000 = vadd.f32 %v2892, %v2999
    %v3001 = vpop.f32.mrf.mxu0
    %v3002 = vadd.f32 %v2892, %v3001
    %3003 = vmatmul.bf16.gmra.mxu0 %v2828
    %v3004 = vpop.f32.mrf.mxu0
    %v3005 = vadd.f32 %v2892, %v3004
    %v3006 = vpop.f32.mrf.mxu0
    %v3007 = vadd.f32 %v2892, %v3006
    %3008 = vmatmul.bf16.gmra.mxu0 %v2830
    %v3009 = vpop.f32.mrf.mxu0
    %v3010 = vadd.f32 %v2892, %v3009
    %v3011 = vpop.f32.mrf.mxu0
    %v3012 = vadd.f32 %v2892, %v3011
    %3013 = vmatmul.bf16.gmra.mxu0 %v2832
    %v3014 = vpop.f32.mrf.mxu0
    %v3015 = vadd.f32 %v2892, %v3014
    %v3016 = vpop.f32.mrf.mxu0
    %v3017 = vadd.f32 %v2892, %v3016
    %3018 = vmatmul.bf16.gmra.mxu0 %v2834
    %v3019 = vpop.f32.mrf.mxu0
    %v3020 = vadd.f32 %v2892, %v3019
    %v3021 = vpop.f32.mrf.mxu0
    %v3022 = vadd.f32 %v2892, %v3021
    %3023 = vmatmul.bf16.gmra.mxu0 %v2836
    %v3024 = vpop.f32.mrf.mxu0
    %v3025 = vadd.f32 %v2892, %v3024
    %v3026 = vpop.f32.mrf.mxu0
    %v3027 = vadd.f32 %v2892, %v3026
    %3028 = vmatmul.bf16.gmra.mxu0 %v2838
    %v3029 = vpop.f32.mrf.mxu0
    %v3030 = vadd.f32 %v2892, %v3029
    %v3031 = vpop.f32.mrf.mxu0
    %v3032 = vadd.f32 %v2892, %v3031
    %3033 = vmatmul.bf16.gmra.mxu0 %v2840
    %v3034 = vpop.f32.mrf.mxu0
    %v3035 = vadd.f32 %v2892, %v3034
    %v3036 = vpop.f32.mrf.mxu0
    %v3037 = vadd.f32 %v2892, %v3036
    %3038 = vmatmul.bf16.gmra.mxu0 %v2842
    %v3039 = vpop.f32.mrf.mxu0
    %v3040 = vadd.f32 %v2892, %v3039
    %v3041 = vpop.f32.mrf.mxu0
    %v3042 = vadd.f32 %v2892, %v3041
    %3043 = vmatmul.bf16.gmra.mxu0 %v2844
    %v3044 = vpop.f32.mrf.mxu0
    %v3045 = vadd.f32 %v2892, %v3044
    %v3046 = vpop.f32.mrf.mxu0
    %v3047 = vadd.f32 %v2892, %v3046
    %3048 = vmatmul.bf16.gmra.mxu0 %v2846
    %v3049 = vpop.f32.mrf.mxu0
    %v3050 = vadd.f32 %v2892, %v3049
    %v3051 = vpop.f32.mrf.mxu0
    %v3052 = vadd.f32 %v2892, %v3051
    %3053 = vmatmul.bf16.gmra.mxu0 %v2848
    %v3054 = vpop.f32.mrf.mxu0
    %v3055 = vadd.f32 %v2892, %v3054
    %v3056 = vpop.f32.mrf.mxu0
    %v3057 = vadd.f32 %v2892, %v3056
    %3058 = vmatmul.bf16.gmra.mxu0 %v2850
    %v3059 = vpop.f32.mrf.mxu0
    %v3060 = vadd.f32 %v2892, %v3059
    %v3061 = vpop.f32.mrf.mxu0
    %v3062 = vadd.f32 %v2892, %v3061
    %3063 = vmatmul.bf16.gmra.mxu0 %v2852
    %v3064 = vpop.f32.mrf.mxu0
    %v3065 = vadd.f32 %v2892, %v3064
    %v3066 = vpop.f32.mrf.mxu0
    %v3067 = vadd.f32 %v2892, %v3066
    %3068 = vmatmul.bf16.gmra.mxu0 %v2854
    %v3069 = vpop.f32.mrf.mxu0
    %v3070 = vadd.f32 %v2892, %v3069
    %v3071 = vpop.f32.mrf.mxu0
    %v3072 = vadd.f32 %v2892, %v3071
    %3073 = vmatmul.bf16.gmra.mxu0 %v2856
    %v3074 = vpop.f32.mrf.mxu0
    %v3075 = vadd.f32 %v2892, %v3074
    %v3076 = vpop.f32.mrf.mxu0
    %v3077 = vadd.f32 %v2892, %v3076
    %3078 = vdwg.mxu0
    %3079 = vmatpush.bf16.msra.mxu0 %v2973
    %3080 = vmatpush.bf16.msra.mxu0 %v2972
    %3081 = vmatpush.bf16.msra.mxu0 %v2971
    %3082 = vmatpush.bf16.msra.mxu0 %v2970
    %3083 = vmatpush.bf16.msra.mxu0 %v2969
    %3084 = vmatpush.bf16.msra.mxu0 %v2968
    %3085 = vmatpush.bf16.msra.mxu0 %v2967
    %3086 = vmatpush.bf16.msra.mxu0 %v2966
    %3087 = vmatmul.bf16.gmra.mxu0 %v2827
    %v3088 = vpop.f32.mrf.mxu0
    %v3089 = vadd.f32 %v3000, %v3088
    %v3090 = vpop.f32.mrf.mxu0
    %v3091 = vadd.f32 %v3002, %v3090
    %3092 = vmatmul.bf16.gmra.mxu0 %v2829
    %v3093 = vpop.f32.mrf.mxu0
    %v3094 = vadd.f32 %v3005, %v3093
    %v3095 = vpop.f32.mrf.mxu0
    %v3096 = vadd.f32 %v3007, %v3095
    %3097 = vmatmul.bf16.gmra.mxu0 %v2831
    %v3098 = vpop.f32.mrf.mxu0
    %v3099 = vadd.f32 %v3010, %v3098
    %v3100 = vpop.f32.mrf.mxu0
    %v3101 = vadd.f32 %v3012, %v3100
    %3102 = vmatmul.bf16.gmra.mxu0 %v2833
    %v3103 = vpop.f32.mrf.mxu0
    %v3104 = vadd.f32 %v3015, %v3103
    %v3105 = vpop.f32.mrf.mxu0
    %v3106 = vadd.f32 %v3017, %v3105
    %3107 = vmatmul.bf16.gmra.mxu0 %v2835
    %v3108 = vpop.f32.mrf.mxu0
    %v3109 = vadd.f32 %v3020, %v3108
    %v3110 = vpop.f32.mrf.mxu0
    %v3111 = vadd.f32 %v3022, %v3110
    %3112 = vmatmul.bf16.gmra.mxu0 %v2837
    %v3113 = vpop.f32.mrf.mxu0
    %v3114 = vadd.f32 %v3025, %v3113
    %v3115 = vpop.f32.mrf.mxu0
    %v3116 = vadd.f32 %v3027, %v3115
    %3117 = vmatmul.bf16.gmra.mxu0 %v2839
    %v3118 = vpop.f32.mrf.mxu0
    %v3119 = vadd.f32 %v3030, %v3118
    %v3120 = vpop.f32.mrf.mxu0
    %v3121 = vadd.f32 %v3032, %v3120
    %3122 = vmatmul.bf16.gmra.mxu0 %v2841
    %v3123 = vpop.f32.mrf.mxu0
    %v3124 = vadd.f32 %v3035, %v3123
    %v3125 = vpop.f32.mrf.mxu0
    %v3126 = vadd.f32 %v3037, %v3125
    %3127 = vmatmul.bf16.gmra.mxu0 %v2843
    %v3128 = vpop.f32.mrf.mxu0
    %v3129 = vadd.f32 %v3040, %v3128
    %v3130 = vpop.f32.mrf.mxu0
    %v3131 = vadd.f32 %v3042, %v3130
    %3132 = vmatmul.bf16.gmra.mxu0 %v2845
    %v3133 = vpop.f32.mrf.mxu0
    %v3134 = vadd.f32 %v3045, %v3133
    %v3135 = vpop.f32.mrf.mxu0
    %v3136 = vadd.f32 %v3047, %v3135
    %3137 = vmatmul.bf16.gmra.mxu0 %v2847
    %v3138 = vpop.f32.mrf.mxu0
    %v3139 = vadd.f32 %v3050, %v3138
    %v3140 = vpop.f32.mrf.mxu0
    %v3141 = vadd.f32 %v3052, %v3140
    %3142 = vmatmul.bf16.gmra.mxu0 %v2849
    %v3143 = vpop.f32.mrf.mxu0
    %v3144 = vadd.f32 %v3055, %v3143
    %v3145 = vpop.f32.mrf.mxu0
    %v3146 = vadd.f32 %v3057, %v3145
    %3147 = vmatmul.bf16.gmra.mxu0 %v2851
    %v3148 = vpop.f32.mrf.mxu0
    %v3149 = vadd.f32 %v3060, %v3148
    %v3150 = vpop.f32.mrf.mxu0
    %v3151 = vadd.f32 %v3062, %v3150
    %3152 = vmatmul.bf16.gmra.mxu0 %v2853
    %v3153 = vpop.f32.mrf.mxu0
    %v3154 = vadd.f32 %v3065, %v3153
    %v3155 = vpop.f32.mrf.mxu0
    %v3156 = vadd.f32 %v3067, %v3155
    %3157 = vmatmul.bf16.gmra.mxu0 %v2855
    %v3158 = vpop.f32.mrf.mxu0
    %v3159 = vadd.f32 %v3070, %v3158
    %v3160 = vpop.f32.mrf.mxu0
    %v3161 = vadd.f32 %v3072, %v3160
    %3162 = vmatmul.bf16.gmra.mxu0 %v2857
    %v3163 = vpop.f32.mrf.mxu0
    %v3164 = vadd.f32 %v3075, %v3163
    %v3165 = vpop.f32.mrf.mxu0
    %v3166 = vadd.f32 %v3077, %v3165
    %3167 = vdwg.mxu0
    %v3168 = vmax.f32 %v3089, 0.0
    %v3169 = vmax.f32 %v3091, 0.0
    %v3170 = vmax.f32 %v3094, 0.0
    %v3171 = vmax.f32 %v3096, 0.0
    %v3172 = vmax.f32 %v3099, 0.0
    %v3173 = vmax.f32 %v3101, 0.0
    %v3174 = vmax.f32 %v3104, 0.0
    %v3175 = vmax.f32 %v3106, 0.0
    %v3176 = vmax.f32 %v3109, 0.0
    %v3177 = vmax.f32 %v3111, 0.0
    %v3178 = vmax.f32 %v3114, 0.0
    %v3179 = vmax.f32 %v3116, 0.0
    %v3180 = vmax.f32 %v3119, 0.0
    %v3181 = vmax.f32 %v3121, 0.0
    %v3182 = vmax.f32 %v3124, 0.0
    %v3183 = vmax.f32 %v3126, 0.0
    %v3184 = vmax.f32 %v3129, 0.0
    %v3185 = vmax.f32 %v3131, 0.0
    %v3186 = vmax.f32 %v3134, 0.0
    %v3187 = vmax.f32 %v3136, 0.0
    %v3188 = vmax.f32 %v3139, 0.0
    %v3189 = vmax.f32 %v3141, 0.0
    %v3190 = vmax.f32 %v3144, 0.0
    %v3191 = vmax.f32 %v3146, 0.0
    %v3192 = vmax.f32 %v3149, 0.0
    %v3193 = vmax.f32 %v3151, 0.0
    %v3194 = vmax.f32 %v3154, 0.0
    %v3195 = vmax.f32 %v3156, 0.0
    %v3196 = vmax.f32 %v3159, 0.0
    %v3197 = vmax.f32 %v3161, 0.0
    %v3198 = vmax.f32 %v3164, 0.0
    %v3199 = vmax.f32 %v3166, 0.0
    %v3200 = vpack.c.bf16 %v3169, %v3168
    %v3201 = vpack.c.bf16 %v3171, %v3170
    %v3202 = vpack.c.bf16 %v3173, %v3172
    %v3203 = vpack.c.bf16 %v3175, %v3174
    %v3204 = vpack.c.bf16 %v3177, %v3176
    %v3205 = vpack.c.bf16 %v3179, %v3178
    %v3206 = vpack.c.bf16 %v3181, %v3180
    %v3207 = vpack.c.bf16 %v3183, %v3182
    %v3208 = vpack.c.bf16 %v3185, %v3184
    %v3209 = vpack.c.bf16 %v3187, %v3186
    %v3210 = vpack.c.bf16 %v3189, %v3188
    %v3211 = vpack.c.bf16 %v3191, %v3190
    %v3212 = vpack.c.bf16 %v3193, %v3192
    %v3213 = vpack.c.bf16 %v3195, %v3194
    %v3214 = vpack.c.bf16 %v3197, %v3196
    %v3215 = vpack.c.bf16 %v3199, %v3198
    %v3216 = vld [vmem:[%s7] sm:$0x1]
    %v3217 = vld [vmem:[%s8] sm:$0x1]
    %vm3218 = vcmask 15360
    %v3220 = vsel %vm3218, %v3200, 0
    %v3223 = vsel %vm3218, %v3201, 0
    %v3226 = vsel %vm3218, %v3202, 0
    %v3229 = vsel %vm3218, %v3203, 0
    %v3232 = vsel %vm3218, %v3204, 0
    %v3235 = vsel %vm3218, %v3205, 0
    %v3238 = vsel %vm3218, %v3206, 0
    %v3241 = vsel %vm3218, %v3207, 0
    %v3244 = vsel %vm3218, %v3208, 0
    %v3247 = vsel %vm3218, %v3209, 0
    %v3250 = vsel %vm3218, %v3210, 0
    %v3253 = vsel %vm3218, %v3211, 0
    %v3256 = vsel %vm3218, %v3212, 0
    %v3259 = vsel %vm3218, %v3213, 0
    %v3262 = vsel %vm3218, %v3214, 0
    %v3265 = vsel %vm3218, %v3215, 0
    %vm3267 = vcmask 1040384
    %v3269 = vsel %vm3267, %v3217, 0
    %3271 = vmatpush.bf16.msra.mxu0 0
    %3272 = vmatpush.bf16.msra.mxu0 0
    %3273 = vmatpush.bf16.msra.mxu0 0
    %3274 = vmatpush.bf16.msra.mxu0 0
    %3275 = vmatpush.bf16.msra.mxu0 0
    %3276 = vmatpush.bf16.msra.mxu0 0
    %3277 = vmatpush.bf16.msra.mxu0 0
    %3278 = vmatpush.bf16.msra.mxu0 %v3269
    %3279 = vmatmul.bf16.gmra.mxu0 %v3220
    %v3280 = vpop.f32.mrf.mxu0
    %v3281 = vadd.f32 0.0, %v3280
    %v3282 = vpop.f32.mrf.mxu0
    %v3283 = vadd.f32 0.0, %v3282
    %3284 = vmatmul.bf16.gmra.mxu0 %v3223
    %v3285 = vpop.f32.mrf.mxu0
    %v3286 = vadd.f32 0.0, %v3285
    %v3287 = vpop.f32.mrf.mxu0
    %v3288 = vadd.f32 0.0, %v3287
    %3289 = vmatmul.bf16.gmra.mxu0 %v3226
    %v3290 = vpop.f32.mrf.mxu0
    %v3291 = vadd.f32 0.0, %v3290
    %v3292 = vpop.f32.mrf.mxu0
    %v3293 = vadd.f32 0.0, %v3292
    %3294 = vmatmul.bf16.gmra.mxu0 %v3229
    %v3295 = vpop.f32.mrf.mxu0
    %v3296 = vadd.f32 0.0, %v3295
    %v3297 = vpop.f32.mrf.mxu0
    %v3298 = vadd.f32 0.0, %v3297
    %3299 = vmatmul.bf16.gmra.mxu0 %v3232
    %v3300 = vpop.f32.mrf.mxu0
    %v3301 = vadd.f32 0.0, %v3300
    %v3302 = vpop.f32.mrf.mxu0
    %v3303 = vadd.f32 0.0, %v3302
    %3304 = vmatmul.bf16.gmra.mxu0 %v3235
    %v3305 = vpop.f32.mrf.mxu0
    %v3306 = vadd.f32 0.0, %v3305
    %v3307 = vpop.f32.mrf.mxu0
    %v3308 = vadd.f32 0.0, %v3307
    %3309 = vmatmul.bf16.gmra.mxu0 %v3238
    %v3310 = vpop.f32.mrf.mxu0
    %v3311 = vadd.f32 0.0, %v3310
    %v3312 = vpop.f32.mrf.mxu0
    %v3313 = vadd.f32 0.0, %v3312
    %3314 = vmatmul.bf16.gmra.mxu0 %v3241
    %v3315 = vpop.f32.mrf.mxu0
    %v3316 = vadd.f32 0.0, %v3315
    %v3317 = vpop.f32.mrf.mxu0
    %v3318 = vadd.f32 0.0, %v3317
    %3319 = vmatmul.bf16.gmra.mxu0 %v3244
    %v3320 = vpop.f32.mrf.mxu0
    %v3321 = vadd.f32 0.0, %v3320
    %v3322 = vpop.f32.mrf.mxu0
    %v3323 = vadd.f32 0.0, %v3322
    %3324 = vmatmul.bf16.gmra.mxu0 %v3247
    %v3325 = vpop.f32.mrf.mxu0
    %v3326 = vadd.f32 0.0, %v3325
    %v3327 = vpop.f32.mrf.mxu0
    %v3328 = vadd.f32 0.0, %v3327
    %3329 = vmatmul.bf16.gmra.mxu0 %v3250
    %v3330 = vpop.f32.mrf.mxu0
    %v3331 = vadd.f32 0.0, %v3330
    %v3332 = vpop.f32.mrf.mxu0
    %v3333 = vadd.f32 0.0, %v3332
    %3334 = vmatmul.bf16.gmra.mxu0 %v3253
    %v3335 = vpop.f32.mrf.mxu0
    %v3336 = vadd.f32 0.0, %v3335
    %v3337 = vpop.f32.mrf.mxu0
    %v3338 = vadd.f32 0.0, %v3337
    %3339 = vmatmul.bf16.gmra.mxu0 %v3256
    %v3340 = vpop.f32.mrf.mxu0
    %v3341 = vadd.f32 0.0, %v3340
    %v3342 = vpop.f32.mrf.mxu0
    %v3343 = vadd.f32 0.0, %v3342
    %3344 = vmatmul.bf16.gmra.mxu0 %v3259
    %v3345 = vpop.f32.mrf.mxu0
    %v3346 = vadd.f32 0.0, %v3345
    %v3347 = vpop.f32.mrf.mxu0
    %v3348 = vadd.f32 0.0, %v3347
    %3349 = vmatmul.bf16.gmra.mxu0 %v3262
    %v3350 = vpop.f32.mrf.mxu0
    %v3351 = vadd.f32 0.0, %v3350
    %v3352 = vpop.f32.mrf.mxu0
    %v3353 = vadd.f32 0.0, %v3352
    %3354 = vmatmul.bf16.gmra.mxu0 %v3265
    %v3355 = vpop.f32.mrf.mxu0
    %v3356 = vadd.f32 0.0, %v3355
    %v3357 = vpop.f32.mrf.mxu0
    %v3358 = vadd.f32 0.0, %v3357
    %3359 = vdwg.mxu0
    %v3361 = vsel %vm3218, %v644, 0
    %v3364 = vsel %vm3218, %v649, 0
    %v3367 = vsel %vm3218, %v654, 0
    %v3370 = vsel %vm3218, %v659, 0
    %v3373 = vsel %vm3218, %v664, 0
    %v3376 = vsel %vm3218, %v669, 0
    %v3379 = vsel %vm3218, %v674, 0
    %v3382 = vsel %vm3218, %v679, 0
    %v3385 = vsel %vm3218, %v684, 0
    %v3388 = vsel %vm3218, %v689, 0
    %v3391 = vsel %vm3218, %v694, 0
    %v3394 = vsel %vm3218, %v699, 0
    %v3397 = vsel %vm3218, %v704, 0
    %v3400 = vsel %vm3218, %v709, 0
    %v3403 = vsel %vm3218, %v714, 0
    %v3406 = vsel %vm3218, %v719, 0
    %v3409 = vsel %vm3267, %v3216, 0
    %3411 = vmatpush.bf16.msra.mxu0 0
    %3412 = vmatpush.bf16.msra.mxu0 0
    %3413 = vmatpush.bf16.msra.mxu0 0
    %3414 = vmatpush.bf16.msra.mxu0 0
    %3415 = vmatpush.bf16.msra.mxu0 0
    %3416 = vmatpush.bf16.msra.mxu0 0
    %3417 = vmatpush.bf16.msra.mxu0 0
    %3418 = vmatpush.bf16.msra.mxu0 %v3409
    %3419 = vmatmul.bf16.gmra.mxu0 %v3361
    %v3420 = vpop.f32.mrf.mxu0
    %v3421 = vadd.f32 %v3281, %v3420
    %v3422 = vpop.f32.mrf.mxu0
    %v3423 = vadd.f32 %v3283, %v3422
    %3424 = vmatmul.bf16.gmra.mxu0 %v3364
    %v3425 = vpop.f32.mrf.mxu0
    %v3426 = vadd.f32 %v3286, %v3425
    %v3427 = vpop.f32.mrf.mxu0
    %v3428 = vadd.f32 %v3288, %v3427
    %3429 = vmatmul.bf16.gmra.mxu0 %v3367
    %v3430 = vpop.f32.mrf.mxu0
    %v3431 = vadd.f32 %v3291, %v3430
    %v3432 = vpop.f32.mrf.mxu0
    %v3433 = vadd.f32 %v3293, %v3432
    %3434 = vmatmul.bf16.gmra.mxu0 %v3370
    %v3435 = vpop.f32.mrf.mxu0
    %v3436 = vadd.f32 %v3296, %v3435
    %v3437 = vpop.f32.mrf.mxu0
    %v3438 = vadd.f32 %v3298, %v3437
    %3439 = vmatmul.bf16.gmra.mxu0 %v3373
    %v3440 = vpop.f32.mrf.mxu0
    %v3441 = vadd.f32 %v3301, %v3440
    %v3442 = vpop.f32.mrf.mxu0
    %v3443 = vadd.f32 %v3303, %v3442
    %3444 = vmatmul.bf16.gmra.mxu0 %v3376
    %v3445 = vpop.f32.mrf.mxu0
    %v3446 = vadd.f32 %v3306, %v3445
    %v3447 = vpop.f32.mrf.mxu0
    %v3448 = vadd.f32 %v3308, %v3447
    %3449 = vmatmul.bf16.gmra.mxu0 %v3379
    %v3450 = vpop.f32.mrf.mxu0
    %v3451 = vadd.f32 %v3311, %v3450
    %v3452 = vpop.f32.mrf.mxu0
    %v3453 = vadd.f32 %v3313, %v3452
    %3454 = vmatmul.bf16.gmra.mxu0 %v3382
    %v3455 = vpop.f32.mrf.mxu0
    %v3456 = vadd.f32 %v3316, %v3455
    %v3457 = vpop.f32.mrf.mxu0
    %v3458 = vadd.f32 %v3318, %v3457
    %3459 = vmatmul.bf16.gmra.mxu0 %v3385
    %v3460 = vpop.f32.mrf.mxu0
    %v3461 = vadd.f32 %v3321, %v3460
    %v3462 = vpop.f32.mrf.mxu0
    %v3463 = vadd.f32 %v3323, %v3462
    %3464 = vmatmul.bf16.gmra.mxu0 %v3388
    %v3465 = vpop.f32.mrf.mxu0
    %v3466 = vadd.f32 %v3326, %v3465
    %v3467 = vpop.f32.mrf.mxu0
    %v3468 = vadd.f32 %v3328, %v3467
    %3469 = vmatmul.bf16.gmra.mxu0 %v3391
    %v3470 = vpop.f32.mrf.mxu0
    %v3471 = vadd.f32 %v3331, %v3470
    %v3472 = vpop.f32.mrf.mxu0
    %v3473 = vadd.f32 %v3333, %v3472
    %3474 = vmatmul.bf16.gmra.mxu0 %v3394
    %v3475 = vpop.f32.mrf.mxu0
    %v3476 = vadd.f32 %v3336, %v3475
    %v3477 = vpop.f32.mrf.mxu0
    %v3478 = vadd.f32 %v3338, %v3477
    %3479 = vmatmul.bf16.gmra.mxu0 %v3397
    %v3480 = vpop.f32.mrf.mxu0
    %v3481 = vadd.f32 %v3341, %v3480
    %v3482 = vpop.f32.mrf.mxu0
    %v3483 = vadd.f32 %v3343, %v3482
    %3484 = vmatmul.bf16.gmra.mxu0 %v3400
    %v3485 = vpop.f32.mrf.mxu0
    %v3486 = vadd.f32 %v3346, %v3485
    %v3487 = vpop.f32.mrf.mxu0
    %v3488 = vadd.f32 %v3348, %v3487
    %3489 = vmatmul.bf16.gmra.mxu0 %v3403
    %v3490 = vpop.f32.mrf.mxu0
    %v3491 = vadd.f32 %v3351, %v3490
    %v3492 = vpop.f32.mrf.mxu0
    %v3493 = vadd.f32 %v3353, %v3492
    %3494 = vmatmul.bf16.gmra.mxu0 %v3406
    %v3495 = vpop.f32.mrf.mxu0
    %v3496 = vadd.f32 %v3356, %v3495
    %v3497 = vpop.f32.mrf.mxu0
    %v3498 = vadd.f32 %v3358, %v3497
    %3499 = vdwg.mxu0
    %v3500 = vld [vmem:[%s9] sm:$0x1]
    %v3502 = vperm.slane %v3500, 0
    %v3504 = vadd.f32 %v3421, %v3502
    %v3505 = vadd.f32 %v3423, %v3502
    %v3506 = vadd.f32 %v3426, %v3502
    %v3507 = vadd.f32 %v3428, %v3502
    %v3508 = vadd.f32 %v3431, %v3502
    %v3509 = vadd.f32 %v3433, %v3502
    %v3510 = vadd.f32 %v3436, %v3502
    %v3511 = vadd.f32 %v3438, %v3502
    %v3512 = vadd.f32 %v3441, %v3502
    %v3513 = vadd.f32 %v3443, %v3502
    %v3514 = vadd.f32 %v3446, %v3502
    %v3515 = vadd.f32 %v3448, %v3502
    %v3516 = vadd.f32 %v3451, %v3502
    %v3517 = vadd.f32 %v3453, %v3502
    %v3518 = vadd.f32 %v3456, %v3502
    %v3519 = vadd.f32 %v3458, %v3502
    %v3520 = vadd.f32 %v3461, %v3502
    %v3521 = vadd.f32 %v3463, %v3502
    %v3522 = vadd.f32 %v3466, %v3502
    %v3523 = vadd.f32 %v3468, %v3502
    %v3524 = vadd.f32 %v3471, %v3502
    %v3525 = vadd.f32 %v3473, %v3502
    %v3526 = vadd.f32 %v3476, %v3502
    %v3527 = vadd.f32 %v3478, %v3502
    %v3528 = vadd.f32 %v3481, %v3502
    %v3529 = vadd.f32 %v3483, %v3502
    %v3530 = vadd.f32 %v3486, %v3502
    %v3531 = vadd.f32 %v3488, %v3502
    %v3532 = vadd.f32 %v3491, %v3502
    %v3533 = vadd.f32 %v3493, %v3502
    %v3534 = vadd.f32 %v3496, %v3502
    %v3535 = vadd.f32 %v3498, %v3502
    %v3536 = vmax.f32 %v3504, 0.0
    %v3537 = vmax.f32 %v3505, 0.0
    %v3538 = vmax.f32 %v3506, 0.0
    %v3539 = vmax.f32 %v3507, 0.0
    %v3540 = vmax.f32 %v3508, 0.0
    %v3541 = vmax.f32 %v3509, 0.0
    %v3542 = vmax.f32 %v3510, 0.0
    %v3543 = vmax.f32 %v3511, 0.0
    %v3544 = vmax.f32 %v3512, 0.0
    %v3545 = vmax.f32 %v3513, 0.0
    %v3546 = vmax.f32 %v3514, 0.0
    %v3547 = vmax.f32 %v3515, 0.0
    %v3548 = vmax.f32 %v3516, 0.0
    %v3549 = vmax.f32 %v3517, 0.0
    %v3550 = vmax.f32 %v3518, 0.0
    %v3551 = vmax.f32 %v3519, 0.0
    %v3552 = vmax.f32 %v3520, 0.0
    %v3553 = vmax.f32 %v3521, 0.0
    %v3554 = vmax.f32 %v3522, 0.0
    %v3555 = vmax.f32 %v3523, 0.0
    %v3556 = vmax.f32 %v3524, 0.0
    %v3557 = vmax.f32 %v3525, 0.0
    %v3558 = vmax.f32 %v3526, 0.0
    %v3559 = vmax.f32 %v3527, 0.0
    %v3560 = vmax.f32 %v3528, 0.0
    %v3561 = vmax.f32 %v3529, 0.0
    %v3562 = vmax.f32 %v3530, 0.0
    %v3563 = vmax.f32 %v3531, 0.0
    %v3564 = vmax.f32 %v3532, 0.0
    %v3565 = vmax.f32 %v3533, 0.0
    %v3566 = vmax.f32 %v3534, 0.0
    %v3567 = vmax.f32 %v3535, 0.0
    %v3568 = vpack.c.bf16 %v3537, %v3536
    %v3569 = vpack.c.bf16 %v3539, %v3538
    %v3570 = vpack.c.bf16 %v3541, %v3540
    %v3571 = vpack.c.bf16 %v3543, %v3542
    %v3572 = vpack.c.bf16 %v3545, %v3544
    %v3573 = vpack.c.bf16 %v3547, %v3546
    %v3574 = vpack.c.bf16 %v3549, %v3548
    %v3575 = vpack.c.bf16 %v3551, %v3550
    %v3576 = vpack.c.bf16 %v3553, %v3552
    %v3577 = vpack.c.bf16 %v3555, %v3554
    %v3578 = vpack.c.bf16 %v3557, %v3556
    %v3579 = vpack.c.bf16 %v3559, %v3558
    %v3580 = vpack.c.bf16 %v3561, %v3560
    %v3581 = vpack.c.bf16 %v3563, %v3562
    %v3582 = vpack.c.bf16 %v3565, %v3564
    %v3583 = vpack.c.bf16 %v3567, %v3566
    %v3584 = vld [vmem:[%s10] sm:$0xf]
    %v3585 = vld [vmem:[%s10 + $0x4] sm:$0xf]
    %v3586 = vld [vmem:[%s10 + $0x8] sm:$0xf]
    %v3587 = vld [vmem:[%s10 + $0xc] sm:$0xf]
    %v3588 = vld [vmem:[%s11] sm:$0x1]
    %v3590 = vperm.slane %v3588, 0
    %v3596 = vunpack.c.l.b16 %v3584
    %v3597 = vunpack.c.l.b16 %v3585
    %v3598 = vunpack.c.l.b16 %v3586
    %v3599 = vunpack.c.l.b16 %v3587
    %v3600 = vpack.c.b16 %v3597, %v3596
    %v3601 = vpack.c.b16 %v3599, %v3598
    %vm3604 = vcmask 261120
    %v3606 = vsel %vm3604, %v3568, 0
    %v3609 = vsel %vm3604, %v3569, 0
    %v3612 = vsel %vm3604, %v3570, 0
    %v3615 = vsel %vm3604, %v3571, 0
    %v3618 = vsel %vm3604, %v3572, 0
    %v3621 = vsel %vm3604, %v3573, 0
    %v3624 = vsel %vm3604, %v3574, 0
    %v3627 = vsel %vm3604, %v3575, 0
    %v3630 = vsel %vm3604, %v3576, 0
    %v3633 = vsel %vm3604, %v3577, 0
    %v3636 = vsel %vm3604, %v3578, 0
    %v3639 = vsel %vm3604, %v3579, 0
    %v3642 = vsel %vm3604, %v3580, 0
    %v3645 = vsel %vm3604, %v3581, 0
    %v3648 = vsel %vm3604, %v3582, 0
    %v3651 = vsel %vm3604, %v3583, 0
    %3653 = vmatpush.bf16.msra.mxu0 0
    %3654 = vmatpush.bf16.msra.mxu0 0
    %3655 = vmatpush.bf16.msra.mxu0 0
    %3656 = vmatpush.bf16.msra.mxu0 0
    %3657 = vmatpush.bf16.msra.mxu0 0
    %3658 = vmatpush.bf16.msra.mxu0 0
    %3659 = vmatpush.bf16.msra.mxu0 %v3601
    %3660 = vmatpush.bf16.msra.mxu0 %v3600
    %3661 = vmatmul.bf16.gmra.mxu0 %v3606
    %v3662 = vpop.f32.mrf.mxu0
    %v3663 = vadd.f32 %v3590, %v3662
    %v3664 = vpop.f32.mrf.mxu0
    %v3665 = vadd.f32 %v3590, %v3664
    %3666 = vmatmul.bf16.gmra.mxu0 %v3609
    %v3667 = vpop.f32.mrf.mxu0
    %v3668 = vadd.f32 %v3590, %v3667
    %v3669 = vpop.f32.mrf.mxu0
    %v3670 = vadd.f32 %v3590, %v3669
    %3671 = vmatmul.bf16.gmra.mxu0 %v3612
    %v3672 = vpop.f32.mrf.mxu0
    %v3673 = vadd.f32 %v3590, %v3672
    %v3674 = vpop.f32.mrf.mxu0
    %v3675 = vadd.f32 %v3590, %v3674
    %3676 = vmatmul.bf16.gmra.mxu0 %v3615
    %v3677 = vpop.f32.mrf.mxu0
    %v3678 = vadd.f32 %v3590, %v3677
    %v3679 = vpop.f32.mrf.mxu0
    %v3680 = vadd.f32 %v3590, %v3679
    %3681 = vmatmul.bf16.gmra.mxu0 %v3618
    %v3682 = vpop.f32.mrf.mxu0
    %v3683 = vadd.f32 %v3590, %v3682
    %v3684 = vpop.f32.mrf.mxu0
    %v3685 = vadd.f32 %v3590, %v3684
    %3686 = vmatmul.bf16.gmra.mxu0 %v3621
    %v3687 = vpop.f32.mrf.mxu0
    %v3688 = vadd.f32 %v3590, %v3687
    %v3689 = vpop.f32.mrf.mxu0
    %v3690 = vadd.f32 %v3590, %v3689
    %3691 = vmatmul.bf16.gmra.mxu0 %v3624
    %v3692 = vpop.f32.mrf.mxu0
    %v3693 = vadd.f32 %v3590, %v3692
    %v3694 = vpop.f32.mrf.mxu0
    %v3695 = vadd.f32 %v3590, %v3694
    %3696 = vmatmul.bf16.gmra.mxu0 %v3627
    %v3697 = vpop.f32.mrf.mxu0
    %v3698 = vadd.f32 %v3590, %v3697
    %v3699 = vpop.f32.mrf.mxu0
    %v3700 = vadd.f32 %v3590, %v3699
    %3701 = vmatmul.bf16.gmra.mxu0 %v3630
    %v3702 = vpop.f32.mrf.mxu0
    %v3703 = vadd.f32 %v3590, %v3702
    %v3704 = vpop.f32.mrf.mxu0
    %v3705 = vadd.f32 %v3590, %v3704
    %3706 = vmatmul.bf16.gmra.mxu0 %v3633
    %v3707 = vpop.f32.mrf.mxu0
    %v3708 = vadd.f32 %v3590, %v3707
    %v3709 = vpop.f32.mrf.mxu0
    %v3710 = vadd.f32 %v3590, %v3709
    %3711 = vmatmul.bf16.gmra.mxu0 %v3636
    %v3712 = vpop.f32.mrf.mxu0
    %v3713 = vadd.f32 %v3590, %v3712
    %v3714 = vpop.f32.mrf.mxu0
    %v3715 = vadd.f32 %v3590, %v3714
    %3716 = vmatmul.bf16.gmra.mxu0 %v3639
    %v3717 = vpop.f32.mrf.mxu0
    %v3718 = vadd.f32 %v3590, %v3717
    %v3719 = vpop.f32.mrf.mxu0
    %v3720 = vadd.f32 %v3590, %v3719
    %3721 = vmatmul.bf16.gmra.mxu0 %v3642
    %v3722 = vpop.f32.mrf.mxu0
    %v3723 = vadd.f32 %v3590, %v3722
    %v3724 = vpop.f32.mrf.mxu0
    %v3725 = vadd.f32 %v3590, %v3724
    %3726 = vmatmul.bf16.gmra.mxu0 %v3645
    %v3727 = vpop.f32.mrf.mxu0
    %v3728 = vadd.f32 %v3590, %v3727
    %v3729 = vpop.f32.mrf.mxu0
    %v3730 = vadd.f32 %v3590, %v3729
    %3731 = vmatmul.bf16.gmra.mxu0 %v3648
    %v3732 = vpop.f32.mrf.mxu0
    %v3733 = vadd.f32 %v3590, %v3732
    %v3734 = vpop.f32.mrf.mxu0
    %v3735 = vadd.f32 %v3590, %v3734
    %3736 = vmatmul.bf16.gmra.mxu0 %v3651
    %v3737 = vpop.f32.mrf.mxu0
    %v3738 = vadd.f32 %v3590, %v3737
    %v3739 = vpop.f32.mrf.mxu0
    %v3740 = vadd.f32 %v3590, %v3739
    %3741 = vdwg.mxu0
    %v3742 = vmax.f32 %v3663, 0.0
    %v3743 = vmax.f32 %v3665, 0.0
    %v3744 = vmax.f32 %v3668, 0.0
    %v3745 = vmax.f32 %v3670, 0.0
    %v3746 = vmax.f32 %v3673, 0.0
    %v3747 = vmax.f32 %v3675, 0.0
    %v3748 = vmax.f32 %v3678, 0.0
    %v3749 = vmax.f32 %v3680, 0.0
    %v3750 = vmax.f32 %v3683, 0.0
    %v3751 = vmax.f32 %v3685, 0.0
    %v3752 = vmax.f32 %v3688, 0.0
    %v3753 = vmax.f32 %v3690, 0.0
    %v3754 = vmax.f32 %v3693, 0.0
    %v3755 = vmax.f32 %v3695, 0.0
    %v3756 = vmax.f32 %v3698, 0.0
    %v3757 = vmax.f32 %v3700, 0.0
    %v3758 = vmax.f32 %v3703, 0.0
    %v3759 = vmax.f32 %v3705, 0.0
    %v3760 = vmax.f32 %v3708, 0.0
    %v3761 = vmax.f32 %v3710, 0.0
    %v3762 = vmax.f32 %v3713, 0.0
    %v3763 = vmax.f32 %v3715, 0.0
    %v3764 = vmax.f32 %v3718, 0.0
    %v3765 = vmax.f32 %v3720, 0.0
    %v3766 = vmax.f32 %v3723, 0.0
    %v3767 = vmax.f32 %v3725, 0.0
    %v3768 = vmax.f32 %v3728, 0.0
    %v3769 = vmax.f32 %v3730, 0.0
    %v3770 = vmax.f32 %v3733, 0.0
    %v3771 = vmax.f32 %v3735, 0.0
    %v3772 = vmax.f32 %v3738, 0.0
    %v3773 = vmax.f32 %v3740, 0.0
    %v3774 = vpack.c.bf16 %v3743, %v3742
    %v3775 = vpack.c.bf16 %v3745, %v3744
    %v3776 = vpack.c.bf16 %v3747, %v3746
    %v3777 = vpack.c.bf16 %v3749, %v3748
    %v3778 = vpack.c.bf16 %v3751, %v3750
    %v3779 = vpack.c.bf16 %v3753, %v3752
    %v3780 = vpack.c.bf16 %v3755, %v3754
    %v3781 = vpack.c.bf16 %v3757, %v3756
    %v3782 = vpack.c.bf16 %v3759, %v3758
    %v3783 = vpack.c.bf16 %v3761, %v3760
    %v3784 = vpack.c.bf16 %v3763, %v3762
    %v3785 = vpack.c.bf16 %v3765, %v3764
    %v3786 = vpack.c.bf16 %v3767, %v3766
    %v3787 = vpack.c.bf16 %v3769, %v3768
    %v3788 = vpack.c.bf16 %v3771, %v3770
    %v3789 = vpack.c.bf16 %v3773, %v3772
    %v3790 = vld [vmem:[%s12] sm:$0xf]
    %v3791 = vld [vmem:[%s12 + $0x4] sm:$0xf]
    %v3792 = vld [vmem:[%s12 + $0x8] sm:$0xf]
    %v3793 = vld [vmem:[%s12 + $0xc] sm:$0xf]
    %v3794 = vld [vmem:[#allocation2] sm:$0x1]
    %v3796 = vperm.slane %v3794, 0
    %v3802 = vunpack.c.l.b16 %v3790
    %v3803 = vunpack.c.l.b16 %v3791
    %v3804 = vunpack.c.l.b16 %v3792
    %v3805 = vunpack.c.l.b16 %v3793
    %v3806 = vpack.c.b16 %v3803, %v3802
    %v3807 = vpack.c.b16 %v3805, %v3804
    %v3811 = vsel %vm3604, %v3774, 0
    %v3814 = vsel %vm3604, %v3775, 0
    %v3817 = vsel %vm3604, %v3776, 0
    %v3820 = vsel %vm3604, %v3777, 0
    %v3823 = vsel %vm3604, %v3778, 0
    %v3826 = vsel %vm3604, %v3779, 0
    %v3829 = vsel %vm3604, %v3780, 0
    %v3832 = vsel %vm3604, %v3781, 0
    %v3835 = vsel %vm3604, %v3782, 0
    %v3838 = vsel %vm3604, %v3783, 0
    %v3841 = vsel %vm3604, %v3784, 0
    %v3844 = vsel %vm3604, %v3785, 0
    %v3847 = vsel %vm3604, %v3786, 0
    %v3850 = vsel %vm3604, %v3787, 0
    %v3853 = vsel %vm3604, %v3788, 0
    %v3856 = vsel %vm3604, %v3789, 0
    %3858 = vmatpush.bf16.msra.mxu0 0
    %3859 = vmatpush.bf16.msra.mxu0 0
    %3860 = vmatpush.bf16.msra.mxu0 0
    %3861 = vmatpush.bf16.msra.mxu0 0
    %3862 = vmatpush.bf16.msra.mxu0 0
    %3863 = vmatpush.bf16.msra.mxu0 0
    %3864 = vmatpush.bf16.msra.mxu0 %v3807
    %3865 = vmatpush.bf16.msra.mxu0 %v3806
    %3866 = vmatmul.bf16.gmra.mxu0 %v3811
    %v3867 = vpop.f32.mrf.mxu0
    %v3868 = vadd.f32 %v3796, %v3867
    %v3869 = vpop.f32.mrf.mxu0
    %v3870 = vadd.f32 %v3796, %v3869
    %3871 = vmatmul.bf16.gmra.mxu0 %v3814
    %v3872 = vpop.f32.mrf.mxu0
    %v3873 = vadd.f32 %v3796, %v3872
    %v3874 = vpop.f32.mrf.mxu0
    %v3875 = vadd.f32 %v3796, %v3874
    %3876 = vmatmul.bf16.gmra.mxu0 %v3817
    %v3877 = vpop.f32.mrf.mxu0
    %v3878 = vadd.f32 %v3796, %v3877
    %v3879 = vpop.f32.mrf.mxu0
    %v3880 = vadd.f32 %v3796, %v3879
    %3881 = vmatmul.bf16.gmra.mxu0 %v3820
    %v3882 = vpop.f32.mrf.mxu0
    %v3883 = vadd.f32 %v3796, %v3882
    %v3884 = vpop.f32.mrf.mxu0
    %v3885 = vadd.f32 %v3796, %v3884
    %3886 = vmatmul.bf16.gmra.mxu0 %v3823
    %v3887 = vpop.f32.mrf.mxu0
    %v3888 = vadd.f32 %v3796, %v3887
    %v3889 = vpop.f32.mrf.mxu0
    %v3890 = vadd.f32 %v3796, %v3889
    %3891 = vmatmul.bf16.gmra.mxu0 %v3826
    %v3892 = vpop.f32.mrf.mxu0
    %v3893 = vadd.f32 %v3796, %v3892
    %v3894 = vpop.f32.mrf.mxu0
    %v3895 = vadd.f32 %v3796, %v3894
    %3896 = vmatmul.bf16.gmra.mxu0 %v3829
    %v3897 = vpop.f32.mrf.mxu0
    %v3898 = vadd.f32 %v3796, %v3897
    %v3899 = vpop.f32.mrf.mxu0
    %v3900 = vadd.f32 %v3796, %v3899
    %3901 = vmatmul.bf16.gmra.mxu0 %v3832
    %v3902 = vpop.f32.mrf.mxu0
    %v3903 = vadd.f32 %v3796, %v3902
    %v3904 = vpop.f32.mrf.mxu0
    %v3905 = vadd.f32 %v3796, %v3904
    %3906 = vmatmul.bf16.gmra.mxu0 %v3835
    %v3907 = vpop.f32.mrf.mxu0
    %v3908 = vadd.f32 %v3796, %v3907
    %v3909 = vpop.f32.mrf.mxu0
    %v3910 = vadd.f32 %v3796, %v3909
    %3911 = vmatmul.bf16.gmra.mxu0 %v3838
    %v3912 = vpop.f32.mrf.mxu0
    %v3913 = vadd.f32 %v3796, %v3912
    %v3914 = vpop.f32.mrf.mxu0
    %v3915 = vadd.f32 %v3796, %v3914
    %3916 = vmatmul.bf16.gmra.mxu0 %v3841
    %v3917 = vpop.f32.mrf.mxu0
    %v3918 = vadd.f32 %v3796, %v3917
    %v3919 = vpop.f32.mrf.mxu0
    %v3920 = vadd.f32 %v3796, %v3919
    %3921 = vmatmul.bf16.gmra.mxu0 %v3844
    %v3922 = vpop.f32.mrf.mxu0
    %v3923 = vadd.f32 %v3796, %v3922
    %v3924 = vpop.f32.mrf.mxu0
    %v3925 = vadd.f32 %v3796, %v3924
    %3926 = vmatmul.bf16.gmra.mxu0 %v3847
    %v3927 = vpop.f32.mrf.mxu0
    %v3928 = vadd.f32 %v3796, %v3927
    %v3929 = vpop.f32.mrf.mxu0
    %v3930 = vadd.f32 %v3796, %v3929
    %3931 = vmatmul.bf16.gmra.mxu0 %v3850
    %v3932 = vpop.f32.mrf.mxu0
    %v3933 = vadd.f32 %v3796, %v3932
    %v3934 = vpop.f32.mrf.mxu0
    %v3935 = vadd.f32 %v3796, %v3934
    %3936 = vmatmul.bf16.gmra.mxu0 %v3853
    %v3937 = vpop.f32.mrf.mxu0
    %v3938 = vadd.f32 %v3796, %v3937
    %v3939 = vpop.f32.mrf.mxu0
    %v3940 = vadd.f32 %v3796, %v3939
    %3941 = vmatmul.bf16.gmra.mxu0 %v3856
    %v3942 = vpop.f32.mrf.mxu0
    %v3943 = vadd.f32 %v3796, %v3942
    %v3944 = vpop.f32.mrf.mxu0
    %v3945 = vadd.f32 %v3796, %v3944
    %3946 = vdwg.mxu0
    %v3947 = vtanh.pop %v3868
    %v3948 = vtanh.pop %v3870
    %v3949 = vtanh.pop %v3873
    %v3950 = vtanh.pop %v3875
    %v3951 = vtanh.pop %v3878
    %v3952 = vtanh.pop %v3880
    %v3953 = vtanh.pop %v3883
    %v3954 = vtanh.pop %v3885
    %v3955 = vtanh.pop %v3888
    %v3956 = vtanh.pop %v3890
    %v3957 = vtanh.pop %v3893
    %v3958 = vtanh.pop %v3895
    %v3959 = vtanh.pop %v3898
    %v3960 = vtanh.pop %v3900
    %v3961 = vtanh.pop %v3903
    %v3962 = vtanh.pop %v3905
    %v3963 = vtanh.pop %v3908
    %v3964 = vtanh.pop %v3910
    %v3965 = vtanh.pop %v3913
    %v3966 = vtanh.pop %v3915
    %v3967 = vtanh.pop %v3918
    %v3968 = vtanh.pop %v3920
    %v3969 = vtanh.pop %v3923
    %v3970 = vtanh.pop %v3925
    %v3971 = vtanh.pop %v3928
    %v3972 = vtanh.pop %v3930
    %v3973 = vtanh.pop %v3933
    %v3974 = vtanh.pop %v3935
    %v3975 = vtanh.pop %v3938
    %v3976 = vtanh.pop %v3940
    %v3977 = vtanh.pop %v3943
    %v3978 = vtanh.pop %v3945
    %vm3979 = vcmask 7168
    %3980 = vst.msk [vmem:[#allocation3] sm:$0xff] %vm3979, %v3947
    %3981 = vst.msk [vmem:[#allocation3 + $0x8] sm:$0xff] %vm3979, %v3948
    %3982 = vst.msk [vmem:[#allocation3 + $0x10] sm:$0xff] %vm3979, %v3949
    %3983 = vst.msk [vmem:[#allocation3 + $0x18] sm:$0xff] %vm3979, %v3950
    %3984 = vst.msk [vmem:[#allocation3 + $0x20] sm:$0xff] %vm3979, %v3951
    %3985 = vst.msk [vmem:[#allocation3 + $0x28] sm:$0xff] %vm3979, %v3952
    %3986 = vst.msk [vmem:[#allocation3 + $0x30] sm:$0xff] %vm3979, %v3953
    %3987 = vst.msk [vmem:[#allocation3 + $0x38] sm:$0xff] %vm3979, %v3954
    %3988 = vst.msk [vmem:[#allocation3 + $0x40] sm:$0xff] %vm3979, %v3955
    %3989 = vst.msk [vmem:[#allocation3 + $0x48] sm:$0xff] %vm3979, %v3956
    %3990 = vst.msk [vmem:[#allocation3 + $0x50] sm:$0xff] %vm3979, %v3957
    %3991 = vst.msk [vmem:[#allocation3 + $0x58] sm:$0xff] %vm3979, %v3958
    %3992 = vst.msk [vmem:[#allocation3 + $0x60] sm:$0xff] %vm3979, %v3959
    %3993 = vst.msk [vmem:[#allocation3 + $0x68] sm:$0xff] %vm3979, %v3960
    %3994 = vst.msk [vmem:[#allocation3 + $0x70] sm:$0xff] %vm3979, %v3961
    %3995 = vst.msk [vmem:[#allocation3 + $0x78] sm:$0xff] %vm3979, %v3962
    %3996 = vst.msk [vmem:[#allocation3 + $0x80] sm:$0xff] %vm3979, %v3963
    %3997 = vst.msk [vmem:[#allocation3 + $0x88] sm:$0xff] %vm3979, %v3964
    %3998 = vst.msk [vmem:[#allocation3 + $0x90] sm:$0xff] %vm3979, %v3965
    %3999 = vst.msk [vmem:[#allocation3 + $0x98] sm:$0xff] %vm3979, %v3966
    %4000 = vst.msk [vmem:[#allocation3 + $0xa0] sm:$0xff] %vm3979, %v3967
    %4001 = vst.msk [vmem:[#allocation3 + $0xa8] sm:$0xff] %vm3979, %v3968
    %4002 = vst.msk [vmem:[#allocation3 + $0xb0] sm:$0xff] %vm3979, %v3969
    %4003 = vst.msk [vmem:[#allocation3 + $0xb8] sm:$0xff] %vm3979, %v3970
    %4004 = vst.msk [vmem:[#allocation3 + $0xc0] sm:$0xff] %vm3979, %v3971
    %4005 = vst.msk [vmem:[#allocation3 + $0xc8] sm:$0xff] %vm3979, %v3972
    %4006 = vst.msk [vmem:[#allocation3 + $0xd0] sm:$0xff] %vm3979, %v3973
    %4007 = vst.msk [vmem:[#allocation3 + $0xd8] sm:$0xff] %vm3979, %v3974
    %4008 = vst.msk [vmem:[#allocation3 + $0xe0] sm:$0xff] %vm3979, %v3975
    %4009 = vst.msk [vmem:[#allocation3 + $0xe8] sm:$0xff] %vm3979, %v3976
    %4010 = vst.msk [vmem:[#allocation3 + $0xf0] sm:$0xff] %vm3979, %v3977
    %4011 = vst.msk [vmem:[#allocation3 + $0xf8] sm:$0xff] %vm3979, %v3978
    // Predicated region
    $region58: #{control_forward.1} parent=1 // pred_check
      _
    $region59: #{control_forward.1} parent=1 // pred_check_branch
      %4013 = sbr.rel (0) target = $region61
    $region60: #{control_forward.1} parent=1 // pred_region
      // Predicated region
      $region62: #{control_forward.1} parent=60 // pred_check
        _
      $region63: #{control_forward.1} parent=60 // pred_check_branch
        %4015 = sbr.rel (0) target = $region65
      $region64: #{control_forward.1} parent=60 // pred_region
        // Predicated region
        $region66: #{control_forward.1} parent=64 // pred_check
          _
        $region67: #{control_forward.1} parent=64 // pred_check_branch
          %4017 = sbr.rel (0) target = $region69
        $region68: #{control_forward.1} parent=64 // pred_region
          // Predicated region
          $region81: #{control_forward.1} parent=68 // pred_check
            _
          $region82: #{control_forward.1} parent=68 // pred_check_branch
            %4033 = sbr.rel (0) target = $region84
          $region83: #{control_forward.1} parent=68 // pred_region
            loop: start=0, step=1, limit=1
            $region85: #{control_forward.1} parent=83 // loop_pre_header
              _
            $region86: #{control_forward.1} parent=83 // loop_header
              %s4035 = sphi 0, %s4039
              %p4036 = scmp.ge.s32.totalorder %s4035, 1
              %s4040 = sphi [#allocation3], [#allocation3]
              %s4041 = sphi %s14, %s14
            $region87: #{control_forward.1} parent=83 // loop_header_branch
              %4038 = sbr.rel (%p4036) target = $region91
            $region88: #{control_forward.1} parent=83 // loop_body
              %v4042 = vld [vmem:[%s4040] sm:$0xff]
              %4043 = vst [vmem:[%s4041] sm:$0xff] %v4042
            $region89: #{control_forward.1} parent=83 // loop_footer
              %s4039 = sadd.s32 1, %s4035
            $region90: #{control_forward.1} parent=83 // loop_footer_branch
              %4034 = sbr.rel target = $region86
            $region91: #{control_forward.1} parent=83 // loop_exit
              _
          $region84: #{control_forward.1} parent=68 // pred_fallthru
            _
          // Predicated region
          $region92: #{control_forward.1} parent=68 // pred_check
            _
          $region93: #{control_forward.1} parent=68 // pred_check_branch
            %4045 = sbr.rel target = $region95
          $region94: #{control_forward.1} parent=68 // pred_region
            _
          $region95: #{control_forward.1} parent=68 // pred_fallthru
            _
        $region69: #{control_forward.1} parent=64 // pred_fallthru
          _
        // Predicated region
        $region70: #{control_forward.1} parent=64 // pred_check
          _
        $region71: #{control_forward.1} parent=64 // pred_check_branch
          %4019 = sbr.rel target = $region73
        $region72: #{control_forward.1} parent=64 // pred_region
          %s4021 = ssub.s32 256, 1
          loop: start=0, step=1, limit=1
          $region74: #{control_forward.1} parent=72 // loop_pre_header
            _
          $region75: #{control_forward.1} parent=72 // loop_header
            %s4023 = sphi 0, %s4027
            %p4024 = scmp.ge.s32.totalorder %s4023, 1
            %s4028 = sphi [#allocation3], [#allocation3]
            %s4029 = sphi %s14, %s14
          $region76: #{control_forward.1} parent=72 // loop_header_branch
            %4026 = sbr.rel (%p4024) target = $region80
          $region77: #{control_forward.1} parent=72 // loop_body
            %v4030 = vld [vmem:[%s4028] sm:%s4021]
            %4031 = vst [vmem:[%s4029] sm:%s4021] %v4030
          $region78: #{control_forward.1} parent=72 // loop_footer
            %s4027 = sadd.s32 1, %s4023
          $region79: #{control_forward.1} parent=72 // loop_footer_branch
            %4022 = sbr.rel target = $region75
          $region80: #{control_forward.1} parent=72 // loop_exit
            _
        $region73: #{control_forward.1} parent=64 // pred_fallthru
          _
      $region65: #{control_forward.1} parent=60 // pred_fallthru
        _
      %4046 = vnop
    $region61: #{control_forward.1} parent=1 // pred_fallthru
      _
    // Predicated region
    $region96: #{control_forward.1} parent=1 // pred_check
      _
    $region97: #{control_forward.1} parent=1 // pred_check_branch
      %4048 = sbr.rel (0) target = $region99
    $region98: #{control_forward.1} parent=1 // pred_region
      _
    $region99: #{control_forward.1} parent=1 // pred_fallthru
      _

</llo_original>
